<compile_context>
chip_gen: v6e
topology: v6e:2x2x1
jax: 0.10.0
libtpu: 0.0.40
codegen_flags: <defaults>
</compile_context>

<pallas_src>
import functools

import jax
import jax.numpy as jnp
from jax.experimental import pallas as pl
from jax.experimental.pallas import tpu as pltpu

BN_EPS = 1e-5


# ---------------------------------------------------------------------------
# Encoder kernel:  avg-pool  ->  linear  ->  BatchNorm1d  (single VMEM block).
# ---------------------------------------------------------------------------
def _encoder_kernel(conv_ref, w_ref, gamma_ref, beta_ref, out_ref, *, inv_hw):
    # conv_ref : [N, HW, C] bf16   (lane-dense trunk features, C on lanes)
    # w_ref    : [C, E]     bf16   (linear weight, transposed)
    # gamma_ref: [1, E]      f32   (BN weight),  beta_ref: [1, E] f32 (BN bias)
    # out_ref  : [N, E]      f32
    # Spatial SUM over the sublane axis, f32 accumulation, no explicit f32 copy.
    pooled = jnp.sum(conv_ref[...], axis=1, dtype=jnp.float32)          # [N, C]
    # MXU: bf16 x bf16 -> f32.  Linear bias omitted: an additive per-feature
    # constant is exactly cancelled by the training-mode BN mean subtraction.
    lin = jnp.dot(pooled.astype(jnp.bfloat16), w_ref[...],
                  preferred_element_type=jnp.float32) * inv_hw          # [N, E]
    # BatchNorm1d, training mode (biased batch statistics, eps=1e-5).
    mu = jnp.mean(lin, axis=0, keepdims=True)
    var = jnp.mean((lin - mu) * (lin - mu), axis=0, keepdims=True)
    out_ref[...] = ((lin - mu) * jax.lax.rsqrt(var + BN_EPS)
                    * gamma_ref[...] + beta_ref[...])


def encoder_forward(conv_lane_bf16, w, gamma, beta):
    """conv_lane_bf16: [N, HW, C] bf16 (lane-dense trunk output) -> [N, E] f32.

    The frozen trunk is expected to emit this layout directly so no extra HBM
    transpose/cast pass is needed in front of the kernel.
    """
    N, HW, C = conv_lane_bf16.shape
    E = w.shape[1]
    vmem = pl.BlockSpec(memory_space=pltpu.MemorySpace.VMEM)
    kernel = functools.partial(_encoder_kernel, inv_hw=float(1.0 / HW))
    # NOTE: for large production batches, split N over a leading "parallel"
    # grid axis (v7x: 2 TCs) and compute the batch-wide BN stats in a tiny
    # second pass; at N=8 a single block is fastest.
    return pl.pallas_call(
        kernel,
        out_shape=jax.ShapeDtypeStruct((N, E), jnp.float32),
        in_specs=[vmem, vmem, vmem, vmem],
        out_specs=vmem,
        compiler_params=pltpu.CompilerParams(
            vmem_limit_bytes=64 * 1024 * 1024),
    )(conv_lane_bf16,
      w.astype(jnp.bfloat16),
      gamma.reshape(1, E).astype(jnp.float32),
      beta.reshape(1, E).astype(jnp.float32))


# ---------------------------------------------------------------------------
# Decoder kernel: 2-layer LSTM (teacher forcing) + deferred vocab projection.
# ---------------------------------------------------------------------------
def _sigmoid(x):
    # exp + approximate reciprocal both run on the EUP slot (off the VALU).
    return pl.reciprocal(1.0 + jnp.exp(-x), approx=True)


def _decoder_kernel(x_ref, wih0_ref, whh0_ref, b0_ref, w1_ref, b1_ref,
                    wout_ref, bout_ref, out_ref, h1_ref):
    # x_ref   : [T, nb, E] f32  (image encoding at t=0, then embeddings)
    # wih0_ref: [E, 4H] bf16,  whh0_ref: [H, 4H] bf16,  b0_ref: [1, 4H] f32
    # w1_ref  : [2H, 4H] bf16  (vstack of layer-1 w_ih, w_hh),  b1_ref: [1,4H]
    # wout_ref: [H, V] bf16,   bout_ref: [1, V] f32
    # out_ref : [T, nb, V] f32 vocab logits
    # h1_ref  : [T, nb, H] f32 VMEM scratch (per-step top-layer hidden states)
    T, nb, E = x_ref.shape
    H = whh0_ref.shape[0]
    V = wout_ref.shape[1]

    # Time-invariant layer-0 input projection hoisted off the serial path:
    # one [T*nb, E] @ [E, 4H] MXU matmul, bias (b_ih0 + b_hh0) folded in.
    x_flat = x_ref[...].reshape(T * nb, E).astype(jnp.bfloat16)
    xg = (jnp.dot(x_flat, wih0_ref[...], preferred_element_type=jnp.float32)
          + b0_ref[...])                                            # [T*nb, 4H]

    # Small recurrent weights (bf16, ~24 KB total) held across the short loop.
    whh0 = whh0_ref[...]
    w1 = w1_ref[...]
    b1 = b1_ref[...]

    h0 = jnp.zeros((nb, H), jnp.float32)
    c0 = jnp.zeros((nb, H), jnp.float32)
    h1 = jnp.zeros((nb, H), jnp.float32)
    c1 = jnp.zeros((nb, H), jnp.float32)

    def cell_update(gates, c):
        # PyTorch gate order (i, f, g, o); elementwise math stays f32.
        # TODO(synk): with H=32 each gate slice is a sub-128-lane extract; use
        # an H that is a multiple of 128 in production for lane-aligned gates.
        i = _sigmoid(gates[:, 0 * H:1 * H])
        f = _sigmoid(gates[:, 1 * H:2 * H])
        g = jnp.tanh(gates[:, 2 * H:3 * H])
        o = _sigmoid(gates[:, 3 * H:4 * H])
        c_new = f * c + i * g
        return o * jnp.tanh(c_new), c_new

    # Static unroll over the short caption length; only the two recurrent
    # matmuls per step remain on the serial MXU path.
    # TODO(synk): n_layers fixed to 2 (the module default).
    for t in range(T):
        g0 = (xg[t * nb:(t + 1) * nb, :]
              + jnp.dot(h0.astype(jnp.bfloat16), whh0,
                        preferred_element_type=jnp.float32))
        h0, c0 = cell_update(g0, c0)
        # Fused layer-1 gates: one [nb, 2H] @ [2H, 4H] matmul.
        z1 = jnp.concatenate([h0, h1], axis=1).astype(jnp.bfloat16)
        g1 = jnp.dot(z1, w1, preferred_element_type=jnp.float32) + b1
        h1, c1 = cell_update(g1, c1)
        h1_ref[t] = h1

    # Deferred vocab projection: one lane-dense [T*nb, H] @ [H, V] matmul.
    h_all = h1_ref[...].reshape(T * nb, H).astype(jnp.bfloat16)
    logits = (jnp.dot(h_all, wout_ref[...], preferred_element_type=jnp.float32)
              + bout_ref[...])
    out_ref[...] = logits.reshape(T, nb, V)


def decoder_forward(enc, captions, emb_table,
                    wih0, whh0, b0, wih1, whh1, b1, w_out, b_out, *, nb=None):
    """enc: [N, E]; captions: [N, Tcap] int32 -> logits [N, Tcap, V]."""
    N, E = enc.shape
    Tcap = captions.shape[1]
    H = whh0.shape[0]
    V = w_out.shape[1]
    if nb is None:
        # Batch tile: split larger batches across TensorCores (v7x has 2) while
        # keeping the tile a multiple of 8 for the (8, 128) block constraint.
        nb = N // 2 if N % 16 == 0 else N

    # TODO(synk): nn.Embedding gather done here in plain JAX (not in kernel).
    emb = jnp.take(emb_table, captions[:, :-1], axis=0)              # [N,T-1,E]
    inputs = jnp.concatenate([enc[:, None, :], emb], axis=1)         # [N, T, E]
    inputs_t = jnp.transpose(inputs, (1, 0, 2)).astype(jnp.float32)  # [T, N, E]

    # bf16 weights at the kernel boundary; biases are b_ih + b_hh combined, f32.
    wih0_b = wih0.astype(jnp.bfloat16)
    whh0_b = whh0.astype(jnp.bfloat16)
    w1_b = jnp.concatenate([wih1, whh1], axis=0).astype(jnp.bfloat16)  # [2H,4H]
    wout_b = w_out.astype(jnp.bfloat16)

    def full2d(a):
        return pl.BlockSpec(a.shape, lambda b: (0, 0))

    out_t = pl.pallas_call(
        _decoder_kernel,
        out_shape=jax.ShapeDtypeStruct((Tcap, N, V), jnp.float32),
        grid_spec=pltpu.PrefetchScalarGridSpec(
            num_scalar_prefetch=0,
            grid=(N // nb,),
            in_specs=[
                pl.BlockSpec((Tcap, nb, E), lambda b: (0, b, 0)),
                full2d(wih0_b),
                full2d(whh0_b),
                pl.BlockSpec((1, 4 * H), lambda b: (0, 0)),
                full2d(w1_b),
                pl.BlockSpec((1, 4 * H), lambda b: (0, 0)),
                full2d(wout_b),
                pl.BlockSpec((1, V), lambda b: (0, 0)),
            ],
            out_specs=pl.BlockSpec((Tcap, nb, V), lambda b: (0, b, 0)),
            scratch_shapes=[pltpu.VMEM((Tcap, nb, H), jnp.float32)],
        ),
        compiler_params=pltpu.CompilerParams(
            dimension_semantics=("parallel",),
            vmem_limit_bytes=64 * 1024 * 1024,
        ),
    )(inputs_t, wih0_b, whh0_b, b0.reshape(1, -1).astype(jnp.float32),
      w1_b, b1.reshape(1, -1).astype(jnp.float32),
      wout_b, b_out.reshape(1, -1).astype(jnp.float32))
    return jnp.transpose(out_t, (1, 0, 2))                           # [N, T, V]


# ---------------------------------------------------------------------------
# Plain-JAX references (module semantics, f32 end to end).
# ---------------------------------------------------------------------------
def encoder_reference(conv_feats, w, b, gamma, beta):
    N, C, Hs, Ws = conv_feats.shape
    pooled = jnp.mean(conv_feats.reshape(N, C, Hs * Ws), axis=-1)
    lin = pooled @ w + b[None, :]
    mu = jnp.mean(lin, axis=0, keepdims=True)
    var = jnp.mean((lin - mu) ** 2, axis=0, keepdims=True)
    return (lin - mu) / jnp.sqrt(var + BN_EPS) * gamma[None, :] + beta[None, :]


def _lstm_cell_ref(x_t, h, c, w_ih, w_hh, b):
    H = h.shape[-1]
    gates = x_t @ w_ih + h @ w_hh + b[None, :]
    i = jax.nn.sigmoid(gates[:, 0 * H:1 * H])
    f = jax.nn.sigmoid(gates[:, 1 * H:2 * H])
    g = jnp.tanh(gates[:, 2 * H:3 * H])
    o = jax.nn.sigmoid(gates[:, 3 * H:4 * H])
    c_new = f * c + i * g
    return o * jnp.tanh(c_new), c_new


def decoder_reference(enc, captions, emb_table,
                      wih0, whh0, b0, wih1, whh1, b1, w_out, b_out):
    N, _ = enc.shape
    H = whh0.shape[0]
    emb = jnp.take(emb_table, captions[:, :-1], axis=0)
    inputs = jnp.concatenate([enc[:, None, :], emb], axis=1)
    T = inputs.shape[1]
    h0 = c0 = h1 = c1 = jnp.zeros((N, H), jnp.float32)
    outs = []
    for t in range(T):
        h0, c0 = _lstm_cell_ref(inputs[:, t, :], h0, c0, wih0, whh0, b0)
        h1, c1 = _lstm_cell_ref(h0, h1, c1, wih1, whh1, b1)
        outs.append(h1 @ w_out + b_out[None, :])
    return jnp.stack(outs, axis=1)


if __name__ == "__main__":
    # Shapes consistent with the module: resnet152 feature maps (2048 ch, 7x7),
    # embedding_size=128, hidden_size=32, vocab=256, caption length 8, 2 layers.
    N, C, Hs, Ws = 8, 2048, 7, 7
    EMB, HID, VOCAB, TCAP = 128, 32, 256, 8

    key = jax.random.PRNGKey(0)
    keys = jax.random.split(key, 12)

    # Frozen-trunk feature maps, already in the lane-dense [N, HW, C] bf16
    # layout the encoder kernel consumes (no separate HBM relayout pass).
    conv_lane = jax.random.normal(keys[0], (N, Hs * Ws, C),
                                  dtype=jnp.float32).astype(jnp.bfloat16)

    # Encoder params: Linear weight ~ N(0, 0.02) (Encoder.__init__), stored
    # transposed [C, E]; bias = 0; BatchNorm1d default gamma=1, beta=0.
    w_lin = 0.02 * jax.random.normal(keys[1], (C, EMB), dtype=jnp.float32)
    b_lin = jnp.zeros((EMB,), jnp.float32)
    gamma = jnp.ones((EMB,), jnp.float32)
    beta = jnp.zeros((EMB,), jnp.float32)

    # Decoder params (PyTorch-style U(-1/sqrt(H), 1/sqrt(H)) init), stored
    # transposed for right multiplication; biases are b_ih + b_hh combined.
    s = 1.0 / (HID ** 0.5)

    def uni(k, shape):
        return jax.random.uniform(k, shape, jnp.float32, -s, s)

    emb_table = jax.random.normal(keys[2], (VOCAB, EMB), dtype=jnp.float32)
    wih0 = uni(keys[3], (EMB, 4 * HID)); whh0 = uni(keys[4], (HID, 4 * HID))
    b0 = uni(keys[5], (4 * HID,))
    wih1 = uni(keys[6], (HID, 4 * HID)); whh1 = uni(keys[7], (HID, 4 * HID))
    b1 = uni(keys[8], (4 * HID,))
    w_out = uni(keys[9], (HID, VOCAB)); b_out = uni(keys[10], (VOCAB,))
    captions = jax.random.randint(keys[11], (N, TCAP), 0, VOCAB, dtype=jnp.int32)

    # --- Pallas forward: encoder -> decoder (teacher forcing) ---
    enc = encoder_forward(conv_lane, w_lin, gamma, beta)
    logits = decoder_forward(enc, captions, emb_table,
                             wih0, whh0, b0, wih1, whh1, b1, w_out, b_out)
    logits = jax.block_until_ready(logits)

    # --- References (f32, NCHW conv layout as in the PyTorch module) ---
    conv_nchw = jnp.transpose(
        conv_lane.astype(jnp.float32).reshape(N, Hs, Ws, C), (0, 3, 1, 2))
    enc_ref = encoder_reference(conv_nchw, w_lin, b_lin, gamma, beta)
    logits_ref = decoder_reference(enc_ref, captions, emb_table,
                                   wih0, whh0, b0, wih1, whh1, b1, w_out, b_out)

    assert enc.shape == (N, EMB), enc.shape
    assert logits.shape == (N, TCAP, VOCAB), logits.shape
    # Tolerance covers the bf16 MXU inputs and the approximate sigmoid recip.
    enc_err = float(jnp.max(jnp.abs(enc - enc_ref)))
    dec_err = float(jnp.max(jnp.abs(logits - logits_ref)))
    assert enc_err < 1e-1, enc_err
    assert dec_err < 1e-1, dec_err
    print("KERNEL_OK")
</pallas_src>

<mosaic_0001>
module attributes {stable_mosaic.version = 11 : i64} {
  func.func @_encoder_kernel(%arg0: memref<8x49x2048xbf16, #tpu.memory_space<vmem>>, %arg1: memref<2048x128xbf16, #tpu.memory_space<vmem>>, %arg2: memref<1x128xf32, #tpu.memory_space<vmem>>, %arg3: memref<1x128xf32, #tpu.memory_space<vmem>>, %arg4: memref<8x128xf32, #tpu.memory_space<vmem>>) attributes {dimension_semantics = [], scalar_prefetch = 0 : i64, scratch_operands = 0 : i64, tpu.core_type = #tpu.core_type<tc>} {
    %c0 = arith.constant 0 : index
    %c0_0 = arith.constant 0 : index
    %c0_1 = arith.constant 0 : index
    %0 = vector.load %arg0[%c0, %c0_0, %c0_1] : memref<8x49x2048xbf16, #tpu.memory_space<vmem>>, vector<8x49x2048xbf16>
    %1 = arith.extf %0 : vector<8x49x2048xbf16> to vector<8x49x2048xf32>
    %cst = arith.constant dense<0.000000e+00> : vector<8x2048xf32>
    %2 = vector.multi_reduction <add>, %1, %cst [1] : vector<8x49x2048xf32> to vector<8x2048xf32>
    %3 = arith.truncf %2 : vector<8x2048xf32> to vector<8x2048xbf16>
    %c0_2 = arith.constant 0 : index
    %c0_3 = arith.constant 0 : index
    %4 = vector.load %arg1[%c0_2, %c0_3] : memref<2048x128xbf16, #tpu.memory_space<vmem>>, vector<2048x128xbf16>
    %cst_4 = arith.constant dense<0.000000e+00> : vector<8x128xf32>
    %5 = tpu.matmul %3, %4, %cst_4 {dimension_numbers = #tpu.dot_dimension_numbers<[1], [0], [0], [1], [0, 0, 1, 1], [], []>} : vector<8x2048xbf16>, vector<2048x128xbf16>, vector<8x128xf32> -> vector<8x128xf32>
    %cst_5 = arith.constant 0.0204081628 : f32
    %6 = vector.broadcast %cst_5 : f32 to vector<8x128xf32>
    %7 = arith.mulf %5, %6 : vector<8x128xf32>
    %cst_6 = arith.constant dense<0.000000e+00> : vector<128xf32>
    %8 = vector.multi_reduction <add>, %7, %cst_6 [0] : vector<8x128xf32> to vector<128xf32>
    %9 = vector.shape_cast %8 : vector<128xf32> to vector<1x128xf32>
    %cst_7 = arith.constant 8.000000e+00 : f32
    %10 = vector.broadcast %cst_7 : f32 to vector<1x128xf32>
    %11 = arith.divf %9, %10 : vector<1x128xf32>
    %12 = vector.broadcast %11 : vector<1x128xf32> to vector<8x128xf32>
    %13 = arith.subf %7, %12 : vector<8x128xf32>
    %14 = vector.broadcast %11 : vector<1x128xf32> to vector<8x128xf32>
    %15 = arith.subf %7, %14 : vector<8x128xf32>
    %16 = arith.mulf %13, %15 : vector<8x128xf32>
    %cst_8 = arith.constant dense<0.000000e+00> : vector<128xf32>
    %17 = vector.multi_reduction <add>, %16, %cst_8 [0] : vector<8x128xf32> to vector<128xf32>
    %18 = vector.shape_cast %17 : vector<128xf32> to vector<1x128xf32>
    %cst_9 = arith.constant 8.000000e+00 : f32
    %19 = vector.broadcast %cst_9 : f32 to vector<1x128xf32>
    %20 = arith.divf %18, %19 : vector<1x128xf32>
    %21 = vector.broadcast %11 : vector<1x128xf32> to vector<8x128xf32>
    %22 = arith.subf %7, %21 : vector<8x128xf32>
    %cst_10 = arith.constant 9.99999974E-6 : f32
    %23 = vector.broadcast %cst_10 : f32 to vector<1x128xf32>
    %24 = arith.addf %20, %23 : vector<1x128xf32>
    %25 = math.rsqrt %24 : vector<1x128xf32>
    %26 = vector.broadcast %25 : vector<1x128xf32> to vector<8x128xf32>
    %27 = arith.mulf %22, %26 : vector<8x128xf32>
    %c0_11 = arith.constant 0 : index
    %c0_12 = arith.constant 0 : index
    %28 = vector.load %arg2[%c0_11, %c0_12] : memref<1x128xf32, #tpu.memory_space<vmem>>, vector<1x128xf32>
    %29 = vector.broadcast %28 : vector<1x128xf32> to vector<8x128xf32>
    %30 = arith.mulf %27, %29 : vector<8x128xf32>
    %c0_13 = arith.constant 0 : index
    %c0_14 = arith.constant 0 : index
    %31 = vector.load %arg3[%c0_13, %c0_14] : memref<1x128xf32, #tpu.memory_space<vmem>>, vector<1x128xf32>
    %32 = vector.broadcast %31 : vector<1x128xf32> to vector<8x128xf32>
    %33 = arith.addf %30, %32 : vector<8x128xf32>
    %c0_15 = arith.constant 0 : index
    %c0_16 = arith.constant 0 : index
    %34 = vector.load %arg4[%c0_15, %c0_16] : memref<8x128xf32, #tpu.memory_space<vmem>>, vector<8x128xf32>
    tpu.vector_store %arg4[%c0_15, %c0_16], %33 {strides = array<i32>} : memref<8x128xf32, #tpu.memory_space<vmem>>, vector<8x128xf32>,
    return
  }
}

</mosaic_0001>

<llo_original>
// kernel: tpu_custom_call.1
$region0: #{tpu_custom_call.1}
  #allocation0 [shape = 'u32[]', space=smem, size = 0x4, offset = 0x4, fixed_abs, tag = 'smem constant byte address 0x4 - core index']
  #allocation1 [shape = 'u32[144,128]{1,0:T(1,128)}', space=vmem, size = 0x12000, scoped, tag = 'internal scratch']
  %s0 = inlined_call_operand.vmem [shape: bf16[8,49,2048], index: 0, kind: input, shape index: {}]
  %s1 = inlined_call_operand.vmem [shape: bf16[2048,128], index: 1, kind: input, shape index: {}]
  %s2 = inlined_call_operand.vmem [shape: f32[1,128], index: 2, kind: input, shape index: {}]
  %s3 = inlined_call_operand.vmem [shape: f32[1,128], index: 3, kind: input, shape index: {}]
  %s4 = inlined_call_operand.hbm [shape: f32[8,128], index: 4, kind: output, shape index: {}]
  %s5 = sld [smem:[#allocation0]]
  $region26: #{tpu_custom_call.1} parent=0
    _
  %s7 = ssub.s32 1, %s5
  %s8 = scalar_select 0, %s7, %s5
  $region1: #{tpu_custom_call.1} parent=0
    #allocation2 [shape = 'u8[4096]{0}', space=vmem, size = 0x1000, scoped, tag = 'output window, operand 0, single buffered']
    #allocation3 [shape = 's32[1]{0}', space=sflag, size = 0x4, scoped, tag = 'scoped memory for tpu_custom_call.1']
    %9 = vsyncpa [#allocation3], 0
    // Predicated region
    $region2: #{tpu_custom_call.1} parent=1 // pred_check
      _
    $region3: #{tpu_custom_call.1} parent=1 // pred_check_branch
      %11 = sbr.rel (0) target = $region5
    $region4: #{tpu_custom_call.1} parent=1 // pred_region
      _
    $region5: #{tpu_custom_call.1} parent=1 // pred_fallthru
      _
    // Predicated region
    $region6: #{tpu_custom_call.1} parent=1 // pred_check
      _
    $region7: #{tpu_custom_call.1} parent=1 // pred_check_branch
      %13 = sbr.rel (0) target = $region9
    $region8: #{tpu_custom_call.1} parent=1 // pred_region
      _
    $region9: #{tpu_custom_call.1} parent=1 // pred_fallthru
      _
    // Predicated region
    $region10: #{tpu_custom_call.1} parent=1 // pred_check
      _
    $region11: #{tpu_custom_call.1} parent=1 // pred_check_branch
      %15 = sbr.rel (0) target = $region13
    $region12: #{tpu_custom_call.1} parent=1 // pred_region
      _
    $region13: #{tpu_custom_call.1} parent=1 // pred_fallthru
      _
    // Predicated region
    $region14: #{tpu_custom_call.1} parent=1 // pred_check
      _
    $region15: #{tpu_custom_call.1} parent=1 // pred_check_branch
      %17 = sbr.rel (0) target = $region17
    $region16: #{tpu_custom_call.1} parent=1 // pred_region
      _
    $region17: #{tpu_custom_call.1} parent=1 // pred_fallthru
      _
    %v19 = vld [vmem:[%s0] sm:$0xff]
    %v20 = vld [vmem:[%s0 + $0x8] sm:$0xff]
    %v21 = vld [vmem:[%s0 + $0x10] sm:$0xff]
    %v22 = vld [vmem:[%s0 + $0x18] sm:$0xff]
    %v23 = vld [vmem:[%s0 + $0x20] sm:$0xff]
    %v24 = vld [vmem:[%s0 + $0x28] sm:$0xff]
    %v25 = vld [vmem:[%s0 + $0x30] sm:$0xff]
    %v26 = vld [vmem:[%s0 + $0x38] sm:$0xff]
    %v27 = vld [vmem:[%s0 + $0x40] sm:$0xff]
    %v28 = vld [vmem:[%s0 + $0x48] sm:$0xff]
    %v29 = vld [vmem:[%s0 + $0x50] sm:$0xff]
    %v30 = vld [vmem:[%s0 + $0x58] sm:$0xff]
    %v31 = vld [vmem:[%s0 + $0x60] sm:$0xff]
    %v32 = vld [vmem:[%s0 + $0x68] sm:$0xff]
    %v33 = vld [vmem:[%s0 + $0x70] sm:$0xff]
    %v34 = vld [vmem:[%s0 + $0x78] sm:$0xff]
    %v35 = vld [vmem:[%s0 + $0x80] sm:$0xff]
    %v36 = vld [vmem:[%s0 + $0x88] sm:$0xff]
    %v37 = vld [vmem:[%s0 + $0x90] sm:$0xff]
    %v38 = vld [vmem:[%s0 + $0x98] sm:$0xff]
    %v39 = vld [vmem:[%s0 + $0xa0] sm:$0xff]
    %v40 = vld [vmem:[%s0 + $0xa8] sm:$0xff]
    %v41 = vld [vmem:[%s0 + $0xb0] sm:$0xff]
    %v42 = vld [vmem:[%s0 + $0xb8] sm:$0xff]
    %v43 = vld [vmem:[%s0 + $0xc0] sm:$0xff]
    %v44 = vld [vmem:[%s0 + $0xc8] sm:$0xff]
    %v45 = vld [vmem:[%s0 + $0xd0] sm:$0xff]
    %v46 = vld [vmem:[%s0 + $0xd8] sm:$0xff]
    %v47 = vld [vmem:[%s0 + $0xe0] sm:$0xff]
    %v48 = vld [vmem:[%s0 + $0xe8] sm:$0xff]
    %v49 = vld [vmem:[%s0 + $0xf0] sm:$0xff]
    %v50 = vld [vmem:[%s0 + $0xf8] sm:$0xff]
    %v51 = vld [vmem:[%s0 + $0x100] sm:$0xff]
    %v52 = vld [vmem:[%s0 + $0x108] sm:$0xff]
    %v53 = vld [vmem:[%s0 + $0x110] sm:$0xff]
    %v54 = vld [vmem:[%s0 + $0x118] sm:$0xff]
    %v55 = vld [vmem:[%s0 + $0x120] sm:$0xff]
    %v56 = vld [vmem:[%s0 + $0x128] sm:$0xff]
    %v57 = vld [vmem:[%s0 + $0x130] sm:$0xff]
    %v58 = vld [vmem:[%s0 + $0x138] sm:$0xff]
    %v59 = vld [vmem:[%s0 + $0x140] sm:$0xff]
    %v60 = vld [vmem:[%s0 + $0x148] sm:$0xff]
    %v61 = vld [vmem:[%s0 + $0x150] sm:$0xff]
    %v62 = vld [vmem:[%s0 + $0x158] sm:$0xff]
    %v63 = vld [vmem:[%s0 + $0x160] sm:$0xff]
    %v64 = vld [vmem:[%s0 + $0x168] sm:$0xff]
    %v65 = vld [vmem:[%s0 + $0x170] sm:$0xff]
    %v66 = vld [vmem:[%s0 + $0x178] sm:$0xff]
    %v67 = vld [vmem:[%s0 + $0x180] sm:$0x11]
    %v68 = vld [vmem:[%s0 + $0x188] sm:$0x11]
    %v69 = vld [vmem:[%s0 + $0x190] sm:$0x11]
    %v70 = vld [vmem:[%s0 + $0x198] sm:$0x11]
    %v71 = vld [vmem:[%s0 + $0x1a0] sm:$0x11]
    %v72 = vld [vmem:[%s0 + $0x1a8] sm:$0x11]
    %v73 = vld [vmem:[%s0 + $0x1b0] sm:$0x11]
    %v74 = vld [vmem:[%s0 + $0x1b8] sm:$0x11]
    %v75 = vld [vmem:[%s0 + $0x1c0] sm:$0xff]
    %v76 = vld [vmem:[%s0 + $0x1c8] sm:$0xff]
    %v77 = vld [vmem:[%s0 + $0x1d0] sm:$0xff]
    %v78 = vld [vmem:[%s0 + $0x1d8] sm:$0xff]
    %v79 = vld [vmem:[%s0 + $0x1e0] sm:$0xff]
    %v80 = vld [vmem:[%s0 + $0x1e8] sm:$0xff]
    %v81 = vld [vmem:[%s0 + $0x1f0] sm:$0xff]
    %v82 = vld [vmem:[%s0 + $0x1f8] sm:$0xff]
    %v83 = vld [vmem:[%s0 + $0x200] sm:$0xff]
    %v84 = vld [vmem:[%s0 + $0x208] sm:$0xff]
    %v85 = vld [vmem:[%s0 + $0x210] sm:$0xff]
    %v86 = vld [vmem:[%s0 + $0x218] sm:$0xff]
    %v87 = vld [vmem:[%s0 + $0x220] sm:$0xff]
    %v88 = vld [vmem:[%s0 + $0x228] sm:$0xff]
    %v89 = vld [vmem:[%s0 + $0x230] sm:$0xff]
    %v90 = vld [vmem:[%s0 + $0x238] sm:$0xff]
    %v91 = vld [vmem:[%s0 + $0x240] sm:$0xff]
    %v92 = vld [vmem:[%s0 + $0x248] sm:$0xff]
    %v93 = vld [vmem:[%s0 + $0x250] sm:$0xff]
    %v94 = vld [vmem:[%s0 + $0x258] sm:$0xff]
    %v95 = vld [vmem:[%s0 + $0x260] sm:$0xff]
    %v96 = vld [vmem:[%s0 + $0x268] sm:$0xff]
    %v97 = vld [vmem:[%s0 + $0x270] sm:$0xff]
    %v98 = vld [vmem:[%s0 + $0x278] sm:$0xff]
    %v99 = vld [vmem:[%s0 + $0x280] sm:$0xff]
    %v100 = vld [vmem:[%s0 + $0x288] sm:$0xff]
    %v101 = vld [vmem:[%s0 + $0x290] sm:$0xff]
    %v102 = vld [vmem:[%s0 + $0x298] sm:$0xff]
    %v103 = vld [vmem:[%s0 + $0x2a0] sm:$0xff]
    %v104 = vld [vmem:[%s0 + $0x2a8] sm:$0xff]
    %v105 = vld [vmem:[%s0 + $0x2b0] sm:$0xff]
    %v106 = vld [vmem:[%s0 + $0x2b8] sm:$0xff]
    %v107 = vld [vmem:[%s0 + $0x2c0] sm:$0xff]
    %v108 = vld [vmem:[%s0 + $0x2c8] sm:$0xff]
    %v109 = vld [vmem:[%s0 + $0x2d0] sm:$0xff]
    %v110 = vld [vmem:[%s0 + $0x2d8] sm:$0xff]
    %v111 = vld [vmem:[%s0 + $0x2e0] sm:$0xff]
    %v112 = vld [vmem:[%s0 + $0x2e8] sm:$0xff]
    %v113 = vld [vmem:[%s0 + $0x2f0] sm:$0xff]
    %v114 = vld [vmem:[%s0 + $0x2f8] sm:$0xff]
    %v115 = vld [vmem:[%s0 + $0x300] sm:$0xff]
    %v116 = vld [vmem:[%s0 + $0x308] sm:$0xff]
    %v117 = vld [vmem:[%s0 + $0x310] sm:$0xff]
    %v118 = vld [vmem:[%s0 + $0x318] sm:$0xff]
    %v119 = vld [vmem:[%s0 + $0x320] sm:$0xff]
    %v120 = vld [vmem:[%s0 + $0x328] sm:$0xff]
    %v121 = vld [vmem:[%s0 + $0x330] sm:$0xff]
    %v122 = vld [vmem:[%s0 + $0x338] sm:$0xff]
    %v123 = vld [vmem:[%s0 + $0x340] sm:$0x11]
    %v124 = vld [vmem:[%s0 + $0x348] sm:$0x11]
    %v125 = vld [vmem:[%s0 + $0x350] sm:$0x11]
    %v126 = vld [vmem:[%s0 + $0x358] sm:$0x11]
    %v127 = vld [vmem:[%s0 + $0x360] sm:$0x11]
    %v128 = vld [vmem:[%s0 + $0x368] sm:$0x11]
    %v129 = vld [vmem:[%s0 + $0x370] sm:$0x11]
    %v130 = vld [vmem:[%s0 + $0x378] sm:$0x11]
    %v131 = vld [vmem:[%s0 + $0x380] sm:$0xff]
    %v132 = vld [vmem:[%s0 + $0x388] sm:$0xff]
    %v133 = vld [vmem:[%s0 + $0x390] sm:$0xff]
    %v134 = vld [vmem:[%s0 + $0x398] sm:$0xff]
    %v135 = vld [vmem:[%s0 + $0x3a0] sm:$0xff]
    %v136 = vld [vmem:[%s0 + $0x3a8] sm:$0xff]
    %v137 = vld [vmem:[%s0 + $0x3b0] sm:$0xff]
    %v138 = vld [vmem:[%s0 + $0x3b8] sm:$0xff]
    %v139 = vld [vmem:[%s0 + $0x3c0] sm:$0xff]
    %v140 = vld [vmem:[%s0 + $0x3c8] sm:$0xff]
    %v141 = vld [vmem:[%s0 + $0x3d0] sm:$0xff]
    %v142 = vld [vmem:[%s0 + $0x3d8] sm:$0xff]
    %v143 = vld [vmem:[%s0 + $0x3e0] sm:$0xff]
    %v144 = vld [vmem:[%s0 + $0x3e8] sm:$0xff]
    %v145 = vld [vmem:[%s0 + $0x3f0] sm:$0xff]
    %v146 = vld [vmem:[%s0 + $0x3f8] sm:$0xff]
    %v147 = vld [vmem:[%s0 + $0x400] sm:$0xff]
    %v148 = vld [vmem:[%s0 + $0x408] sm:$0xff]
    %v149 = vld [vmem:[%s0 + $0x410] sm:$0xff]
    %v150 = vld [vmem:[%s0 + $0x418] sm:$0xff]
    %v151 = vld [vmem:[%s0 + $0x420] sm:$0xff]
    %v152 = vld [vmem:[%s0 + $0x428] sm:$0xff]
    %v153 = vld [vmem:[%s0 + $0x430] sm:$0xff]
    %v154 = vld [vmem:[%s0 + $0x438] sm:$0xff]
    %v155 = vld [vmem:[%s0 + $0x440] sm:$0xff]
    %v156 = vld [vmem:[%s0 + $0x448] sm:$0xff]
    %v157 = vld [vmem:[%s0 + $0x450] sm:$0xff]
    %v158 = vld [vmem:[%s0 + $0x458] sm:$0xff]
    %v159 = vld [vmem:[%s0 + $0x460] sm:$0xff]
    %v160 = vld [vmem:[%s0 + $0x468] sm:$0xff]
    %v161 = vld [vmem:[%s0 + $0x470] sm:$0xff]
    %v162 = vld [vmem:[%s0 + $0x478] sm:$0xff]
    %v163 = vld [vmem:[%s0 + $0x480] sm:$0xff]
    %v164 = vld [vmem:[%s0 + $0x488] sm:$0xff]
    %v165 = vld [vmem:[%s0 + $0x490] sm:$0xff]
    %v166 = vld [vmem:[%s0 + $0x498] sm:$0xff]
    %v167 = vld [vmem:[%s0 + $0x4a0] sm:$0xff]
    %v168 = vld [vmem:[%s0 + $0x4a8] sm:$0xff]
    %v169 = vld [vmem:[%s0 + $0x4b0] sm:$0xff]
    %v170 = vld [vmem:[%s0 + $0x4b8] sm:$0xff]
    %v171 = vld [vmem:[%s0 + $0x4c0] sm:$0xff]
    %v172 = vld [vmem:[%s0 + $0x4c8] sm:$0xff]
    %v173 = vld [vmem:[%s0 + $0x4d0] sm:$0xff]
    %v174 = vld [vmem:[%s0 + $0x4d8] sm:$0xff]
    %v175 = vld [vmem:[%s0 + $0x4e0] sm:$0xff]
    %v176 = vld [vmem:[%s0 + $0x4e8] sm:$0xff]
    %v177 = vld [vmem:[%s0 + $0x4f0] sm:$0xff]
    %v178 = vld [vmem:[%s0 + $0x4f8] sm:$0xff]
    %v179 = vld [vmem:[%s0 + $0x500] sm:$0x11]
    %v180 = vld [vmem:[%s0 + $0x508] sm:$0x11]
    %v181 = vld [vmem:[%s0 + $0x510] sm:$0x11]
    %v182 = vld [vmem:[%s0 + $0x518] sm:$0x11]
    %v183 = vld [vmem:[%s0 + $0x520] sm:$0x11]
    %v184 = vld [vmem:[%s0 + $0x528] sm:$0x11]
    %v185 = vld [vmem:[%s0 + $0x530] sm:$0x11]
    %v186 = vld [vmem:[%s0 + $0x538] sm:$0x11]
    %v187 = vld [vmem:[%s0 + $0x540] sm:$0xff]
    %v188 = vld [vmem:[%s0 + $0x548] sm:$0xff]
    %v189 = vld [vmem:[%s0 + $0x550] sm:$0xff]
    %v190 = vld [vmem:[%s0 + $0x558] sm:$0xff]
    %v191 = vld [vmem:[%s0 + $0x560] sm:$0xff]
    %v192 = vld [vmem:[%s0 + $0x568] sm:$0xff]
    %v193 = vld [vmem:[%s0 + $0x570] sm:$0xff]
    %v194 = vld [vmem:[%s0 + $0x578] sm:$0xff]
    %v195 = vld [vmem:[%s0 + $0x580] sm:$0xff]
    %v196 = vld [vmem:[%s0 + $0x588] sm:$0xff]
    %v197 = vld [vmem:[%s0 + $0x590] sm:$0xff]
    %v198 = vld [vmem:[%s0 + $0x598] sm:$0xff]
    %v199 = vld [vmem:[%s0 + $0x5a0] sm:$0xff]
    %v200 = vld [vmem:[%s0 + $0x5a8] sm:$0xff]
    %v201 = vld [vmem:[%s0 + $0x5b0] sm:$0xff]
    %v202 = vld [vmem:[%s0 + $0x5b8] sm:$0xff]
    %v203 = vld [vmem:[%s0 + $0x5c0] sm:$0xff]
    %v204 = vld [vmem:[%s0 + $0x5c8] sm:$0xff]
    %v205 = vld [vmem:[%s0 + $0x5d0] sm:$0xff]
    %v206 = vld [vmem:[%s0 + $0x5d8] sm:$0xff]
    %v207 = vld [vmem:[%s0 + $0x5e0] sm:$0xff]
    %v208 = vld [vmem:[%s0 + $0x5e8] sm:$0xff]
    %v209 = vld [vmem:[%s0 + $0x5f0] sm:$0xff]
    %v210 = vld [vmem:[%s0 + $0x5f8] sm:$0xff]
    %v211 = vld [vmem:[%s0 + $0x600] sm:$0xff]
    %v212 = vld [vmem:[%s0 + $0x608] sm:$0xff]
    %v213 = vld [vmem:[%s0 + $0x610] sm:$0xff]
    %v214 = vld [vmem:[%s0 + $0x618] sm:$0xff]
    %v215 = vld [vmem:[%s0 + $0x620] sm:$0xff]
    %v216 = vld [vmem:[%s0 + $0x628] sm:$0xff]
    %v217 = vld [vmem:[%s0 + $0x630] sm:$0xff]
    %v218 = vld [vmem:[%s0 + $0x638] sm:$0xff]
    %v219 = vld [vmem:[%s0 + $0x640] sm:$0xff]
    %v220 = vld [vmem:[%s0 + $0x648] sm:$0xff]
    %v221 = vld [vmem:[%s0 + $0x650] sm:$0xff]
    %v222 = vld [vmem:[%s0 + $0x658] sm:$0xff]
    %v223 = vld [vmem:[%s0 + $0x660] sm:$0xff]
    %v224 = vld [vmem:[%s0 + $0x668] sm:$0xff]
    %v225 = vld [vmem:[%s0 + $0x670] sm:$0xff]
    %v226 = vld [vmem:[%s0 + $0x678] sm:$0xff]
    %v227 = vld [vmem:[%s0 + $0x680] sm:$0xff]
    %v228 = vld [vmem:[%s0 + $0x688] sm:$0xff]
    %v229 = vld [vmem:[%s0 + $0x690] sm:$0xff]
    %v230 = vld [vmem:[%s0 + $0x698] sm:$0xff]
    %v231 = vld [vmem:[%s0 + $0x6a0] sm:$0xff]
    %v232 = vld [vmem:[%s0 + $0x6a8] sm:$0xff]
    %v233 = vld [vmem:[%s0 + $0x6b0] sm:$0xff]
    %v234 = vld [vmem:[%s0 + $0x6b8] sm:$0xff]
    %v235 = vld [vmem:[%s0 + $0x6c0] sm:$0x11]
    %v236 = vld [vmem:[%s0 + $0x6c8] sm:$0x11]
    %v237 = vld [vmem:[%s0 + $0x6d0] sm:$0x11]
    %v238 = vld [vmem:[%s0 + $0x6d8] sm:$0x11]
    %v239 = vld [vmem:[%s0 + $0x6e0] sm:$0x11]
    %v240 = vld [vmem:[%s0 + $0x6e8] sm:$0x11]
    %v241 = vld [vmem:[%s0 + $0x6f0] sm:$0x11]
    %v242 = vld [vmem:[%s0 + $0x6f8] sm:$0x11]
    %v243 = vld [vmem:[%s0 + $0x700] sm:$0xff]
    %v244 = vld [vmem:[%s0 + $0x708] sm:$0xff]
    %v245 = vld [vmem:[%s0 + $0x710] sm:$0xff]
    %v246 = vld [vmem:[%s0 + $0x718] sm:$0xff]
    %v247 = vld [vmem:[%s0 + $0x720] sm:$0xff]
    %v248 = vld [vmem:[%s0 + $0x728] sm:$0xff]
    %v249 = vld [vmem:[%s0 + $0x730] sm:$0xff]
    %v250 = vld [vmem:[%s0 + $0x738] sm:$0xff]
    %v251 = vld [vmem:[%s0 + $0x740] sm:$0xff]
    %v252 = vld [vmem:[%s0 + $0x748] sm:$0xff]
    %v253 = vld [vmem:[%s0 + $0x750] sm:$0xff]
    %v254 = vld [vmem:[%s0 + $0x758] sm:$0xff]
    %v255 = vld [vmem:[%s0 + $0x760] sm:$0xff]
    %v256 = vld [vmem:[%s0 + $0x768] sm:$0xff]
    %v257 = vld [vmem:[%s0 + $0x770] sm:$0xff]
    %v258 = vld [vmem:[%s0 + $0x778] sm:$0xff]
    %v259 = vld [vmem:[%s0 + $0x780] sm:$0xff]
    %v260 = vld [vmem:[%s0 + $0x788] sm:$0xff]
    %v261 = vld [vmem:[%s0 + $0x790] sm:$0xff]
    %v262 = vld [vmem:[%s0 + $0x798] sm:$0xff]
    %v263 = vld [vmem:[%s0 + $0x7a0] sm:$0xff]
    %v264 = vld [vmem:[%s0 + $0x7a8] sm:$0xff]
    %v265 = vld [vmem:[%s0 + $0x7b0] sm:$0xff]
    %v266 = vld [vmem:[%s0 + $0x7b8] sm:$0xff]
    %v267 = vld [vmem:[%s0 + $0x7c0] sm:$0xff]
    %v268 = vld [vmem:[%s0 + $0x7c8] sm:$0xff]
    %v269 = vld [vmem:[%s0 + $0x7d0] sm:$0xff]
    %v270 = vld [vmem:[%s0 + $0x7d8] sm:$0xff]
    %v271 = vld [vmem:[%s0 + $0x7e0] sm:$0xff]
    %v272 = vld [vmem:[%s0 + $0x7e8] sm:$0xff]
    %v273 = vld [vmem:[%s0 + $0x7f0] sm:$0xff]
    %v274 = vld [vmem:[%s0 + $0x7f8] sm:$0xff]
    %v275 = vld [vmem:[%s0 + $0x800] sm:$0xff]
    %v276 = vld [vmem:[%s0 + $0x808] sm:$0xff]
    %v277 = vld [vmem:[%s0 + $0x810] sm:$0xff]
    %v278 = vld [vmem:[%s0 + $0x818] sm:$0xff]
    %v279 = vld [vmem:[%s0 + $0x820] sm:$0xff]
    %v280 = vld [vmem:[%s0 + $0x828] sm:$0xff]
    %v281 = vld [vmem:[%s0 + $0x830] sm:$0xff]
    %v282 = vld [vmem:[%s0 + $0x838] sm:$0xff]
    %v283 = vld [vmem:[%s0 + $0x840] sm:$0xff]
    %v284 = vld [vmem:[%s0 + $0x848] sm:$0xff]
    %v285 = vld [vmem:[%s0 + $0x850] sm:$0xff]
    %v286 = vld [vmem:[%s0 + $0x858] sm:$0xff]
    %v287 = vld [vmem:[%s0 + $0x860] sm:$0xff]
    %v288 = vld [vmem:[%s0 + $0x868] sm:$0xff]
    %v289 = vld [vmem:[%s0 + $0x870] sm:$0xff]
    %v290 = vld [vmem:[%s0 + $0x878] sm:$0xff]
    %v291 = vld [vmem:[%s0 + $0x880] sm:$0x11]
    %v292 = vld [vmem:[%s0 + $0x888] sm:$0x11]
    %v293 = vld [vmem:[%s0 + $0x890] sm:$0x11]
    %v294 = vld [vmem:[%s0 + $0x898] sm:$0x11]
    %v295 = vld [vmem:[%s0 + $0x8a0] sm:$0x11]
    %v296 = vld [vmem:[%s0 + $0x8a8] sm:$0x11]
    %v297 = vld [vmem:[%s0 + $0x8b0] sm:$0x11]
    %v298 = vld [vmem:[%s0 + $0x8b8] sm:$0x11]
    %v299 = vld [vmem:[%s0 + $0x8c0] sm:$0xff]
    %v300 = vld [vmem:[%s0 + $0x8c8] sm:$0xff]
    %v301 = vld [vmem:[%s0 + $0x8d0] sm:$0xff]
    %v302 = vld [vmem:[%s0 + $0x8d8] sm:$0xff]
    %v303 = vld [vmem:[%s0 + $0x8e0] sm:$0xff]
    %v304 = vld [vmem:[%s0 + $0x8e8] sm:$0xff]
    %v305 = vld [vmem:[%s0 + $0x8f0] sm:$0xff]
    %v306 = vld [vmem:[%s0 + $0x8f8] sm:$0xff]
    %v307 = vld [vmem:[%s0 + $0x900] sm:$0xff]
    %v308 = vld [vmem:[%s0 + $0x908] sm:$0xff]
    %v309 = vld [vmem:[%s0 + $0x910] sm:$0xff]
    %v310 = vld [vmem:[%s0 + $0x918] sm:$0xff]
    %v311 = vld [vmem:[%s0 + $0x920] sm:$0xff]
    %v312 = vld [vmem:[%s0 + $0x928] sm:$0xff]
    %v313 = vld [vmem:[%s0 + $0x930] sm:$0xff]
    %v314 = vld [vmem:[%s0 + $0x938] sm:$0xff]
    %v315 = vld [vmem:[%s0 + $0x940] sm:$0xff]
    %v316 = vld [vmem:[%s0 + $0x948] sm:$0xff]
    %v317 = vld [vmem:[%s0 + $0x950] sm:$0xff]
    %v318 = vld [vmem:[%s0 + $0x958] sm:$0xff]
    %v319 = vld [vmem:[%s0 + $0x960] sm:$0xff]
    %v320 = vld [vmem:[%s0 + $0x968] sm:$0xff]
    %v321 = vld [vmem:[%s0 + $0x970] sm:$0xff]
    %v322 = vld [vmem:[%s0 + $0x978] sm:$0xff]
    %v323 = vld [vmem:[%s0 + $0x980] sm:$0xff]
    %v324 = vld [vmem:[%s0 + $0x988] sm:$0xff]
    %v325 = vld [vmem:[%s0 + $0x990] sm:$0xff]
    %v326 = vld [vmem:[%s0 + $0x998] sm:$0xff]
    %v327 = vld [vmem:[%s0 + $0x9a0] sm:$0xff]
    %v328 = vld [vmem:[%s0 + $0x9a8] sm:$0xff]
    %v329 = vld [vmem:[%s0 + $0x9b0] sm:$0xff]
    %v330 = vld [vmem:[%s0 + $0x9b8] sm:$0xff]
    %v331 = vld [vmem:[%s0 + $0x9c0] sm:$0xff]
    %v332 = vld [vmem:[%s0 + $0x9c8] sm:$0xff]
    %v333 = vld [vmem:[%s0 + $0x9d0] sm:$0xff]
    %v334 = vld [vmem:[%s0 + $0x9d8] sm:$0xff]
    %v335 = vld [vmem:[%s0 + $0x9e0] sm:$0xff]
    %v336 = vld [vmem:[%s0 + $0x9e8] sm:$0xff]
    %v337 = vld [vmem:[%s0 + $0x9f0] sm:$0xff]
    %v338 = vld [vmem:[%s0 + $0x9f8] sm:$0xff]
    %v339 = vld [vmem:[%s0 + $0xa00] sm:$0xff]
    %v340 = vld [vmem:[%s0 + $0xa08] sm:$0xff]
    %v341 = vld [vmem:[%s0 + $0xa10] sm:$0xff]
    %v342 = vld [vmem:[%s0 + $0xa18] sm:$0xff]
    %v343 = vld [vmem:[%s0 + $0xa20] sm:$0xff]
    %v344 = vld [vmem:[%s0 + $0xa28] sm:$0xff]
    %v345 = vld [vmem:[%s0 + $0xa30] sm:$0xff]
    %v346 = vld [vmem:[%s0 + $0xa38] sm:$0xff]
    %v347 = vld [vmem:[%s0 + $0xa40] sm:$0x11]
    %v348 = vld [vmem:[%s0 + $0xa48] sm:$0x11]
    %v349 = vld [vmem:[%s0 + $0xa50] sm:$0x11]
    %v350 = vld [vmem:[%s0 + $0xa58] sm:$0x11]
    %v351 = vld [vmem:[%s0 + $0xa60] sm:$0x11]
    %v352 = vld [vmem:[%s0 + $0xa68] sm:$0x11]
    %v353 = vld [vmem:[%s0 + $0xa70] sm:$0x11]
    %v354 = vld [vmem:[%s0 + $0xa78] sm:$0x11]
    %v355 = vld [vmem:[%s0 + $0xa80] sm:$0xff]
    %v356 = vld [vmem:[%s0 + $0xa88] sm:$0xff]
    %v357 = vld [vmem:[%s0 + $0xa90] sm:$0xff]
    %v358 = vld [vmem:[%s0 + $0xa98] sm:$0xff]
    %v359 = vld [vmem:[%s0 + $0xaa0] sm:$0xff]
    %v360 = vld [vmem:[%s0 + $0xaa8] sm:$0xff]
    %v361 = vld [vmem:[%s0 + $0xab0] sm:$0xff]
    %v362 = vld [vmem:[%s0 + $0xab8] sm:$0xff]
    %v363 = vld [vmem:[%s0 + $0xac0] sm:$0xff]
    %v364 = vld [vmem:[%s0 + $0xac8] sm:$0xff]
    %v365 = vld [vmem:[%s0 + $0xad0] sm:$0xff]
    %v366 = vld [vmem:[%s0 + $0xad8] sm:$0xff]
    %v367 = vld [vmem:[%s0 + $0xae0] sm:$0xff]
    %v368 = vld [vmem:[%s0 + $0xae8] sm:$0xff]
    %v369 = vld [vmem:[%s0 + $0xaf0] sm:$0xff]
    %v370 = vld [vmem:[%s0 + $0xaf8] sm:$0xff]
    %v371 = vld [vmem:[%s0 + $0xb00] sm:$0xff]
    %v372 = vld [vmem:[%s0 + $0xb08] sm:$0xff]
    %v373 = vld [vmem:[%s0 + $0xb10] sm:$0xff]
    %v374 = vld [vmem:[%s0 + $0xb18] sm:$0xff]
    %v375 = vld [vmem:[%s0 + $0xb20] sm:$0xff]
    %v376 = vld [vmem:[%s0 + $0xb28] sm:$0xff]
    %v377 = vld [vmem:[%s0 + $0xb30] sm:$0xff]
    %v378 = vld [vmem:[%s0 + $0xb38] sm:$0xff]
    %v379 = vld [vmem:[%s0 + $0xb40] sm:$0xff]
    %v380 = vld [vmem:[%s0 + $0xb48] sm:$0xff]
    %v381 = vld [vmem:[%s0 + $0xb50] sm:$0xff]
    %v382 = vld [vmem:[%s0 + $0xb58] sm:$0xff]
    %v383 = vld [vmem:[%s0 + $0xb60] sm:$0xff]
    %v384 = vld [vmem:[%s0 + $0xb68] sm:$0xff]
    %v385 = vld [vmem:[%s0 + $0xb70] sm:$0xff]
    %v386 = vld [vmem:[%s0 + $0xb78] sm:$0xff]
    %v387 = vld [vmem:[%s0 + $0xb80] sm:$0xff]
    %v388 = vld [vmem:[%s0 + $0xb88] sm:$0xff]
    %v389 = vld [vmem:[%s0 + $0xb90] sm:$0xff]
    %v390 = vld [vmem:[%s0 + $0xb98] sm:$0xff]
    %v391 = vld [vmem:[%s0 + $0xba0] sm:$0xff]
    %v392 = vld [vmem:[%s0 + $0xba8] sm:$0xff]
    %v393 = vld [vmem:[%s0 + $0xbb0] sm:$0xff]
    %v394 = vld [vmem:[%s0 + $0xbb8] sm:$0xff]
    %v395 = vld [vmem:[%s0 + $0xbc0] sm:$0xff]
    %v396 = vld [vmem:[%s0 + $0xbc8] sm:$0xff]
    %v397 = vld [vmem:[%s0 + $0xbd0] sm:$0xff]
    %v398 = vld [vmem:[%s0 + $0xbd8] sm:$0xff]
    %v399 = vld [vmem:[%s0 + $0xbe0] sm:$0xff]
    %v400 = vld [vmem:[%s0 + $0xbe8] sm:$0xff]
    %v401 = vld [vmem:[%s0 + $0xbf0] sm:$0xff]
    %v402 = vld [vmem:[%s0 + $0xbf8] sm:$0xff]
    %v403 = vld [vmem:[%s0 + $0xc00] sm:$0x11]
    %v404 = vld [vmem:[%s0 + $0xc08] sm:$0x11]
    %v405 = vld [vmem:[%s0 + $0xc10] sm:$0x11]
    %v406 = vld [vmem:[%s0 + $0xc18] sm:$0x11]
    %v407 = vld [vmem:[%s0 + $0xc20] sm:$0x11]
    %v408 = vld [vmem:[%s0 + $0xc28] sm:$0x11]
    %v409 = vld [vmem:[%s0 + $0xc30] sm:$0x11]
    %v410 = vld [vmem:[%s0 + $0xc38] sm:$0x11]
    %v411 = vld [vmem:[%s0 + $0xc40] sm:$0xff]
    %v412 = vld [vmem:[%s0 + $0xc48] sm:$0xff]
    %v413 = vld [vmem:[%s0 + $0xc50] sm:$0xff]
    %v414 = vld [vmem:[%s0 + $0xc58] sm:$0xff]
    %v415 = vld [vmem:[%s0 + $0xc60] sm:$0xff]
    %v416 = vld [vmem:[%s0 + $0xc68] sm:$0xff]
    %v417 = vld [vmem:[%s0 + $0xc70] sm:$0xff]
    %v418 = vld [vmem:[%s0 + $0xc78] sm:$0xff]
    %v419 = vld [vmem:[%s0 + $0xc80] sm:$0xff]
    %v420 = vld [vmem:[%s0 + $0xc88] sm:$0xff]
    %v421 = vld [vmem:[%s0 + $0xc90] sm:$0xff]
    %v422 = vld [vmem:[%s0 + $0xc98] sm:$0xff]
    %v423 = vld [vmem:[%s0 + $0xca0] sm:$0xff]
    %v424 = vld [vmem:[%s0 + $0xca8] sm:$0xff]
    %v425 = vld [vmem:[%s0 + $0xcb0] sm:$0xff]
    %v426 = vld [vmem:[%s0 + $0xcb8] sm:$0xff]
    %v427 = vld [vmem:[%s0 + $0xcc0] sm:$0xff]
    %v428 = vld [vmem:[%s0 + $0xcc8] sm:$0xff]
    %v429 = vld [vmem:[%s0 + $0xcd0] sm:$0xff]
    %v430 = vld [vmem:[%s0 + $0xcd8] sm:$0xff]
    %v431 = vld [vmem:[%s0 + $0xce0] sm:$0xff]
    %v432 = vld [vmem:[%s0 + $0xce8] sm:$0xff]
    %v433 = vld [vmem:[%s0 + $0xcf0] sm:$0xff]
    %v434 = vld [vmem:[%s0 + $0xcf8] sm:$0xff]
    %v435 = vld [vmem:[%s0 + $0xd00] sm:$0xff]
    %v436 = vld [vmem:[%s0 + $0xd08] sm:$0xff]
    %v437 = vld [vmem:[%s0 + $0xd10] sm:$0xff]
    %v438 = vld [vmem:[%s0 + $0xd18] sm:$0xff]
    %v439 = vld [vmem:[%s0 + $0xd20] sm:$0xff]
    %v440 = vld [vmem:[%s0 + $0xd28] sm:$0xff]
    %v441 = vld [vmem:[%s0 + $0xd30] sm:$0xff]
    %v442 = vld [vmem:[%s0 + $0xd38] sm:$0xff]
    %v443 = vld [vmem:[%s0 + $0xd40] sm:$0xff]
    %v444 = vld [vmem:[%s0 + $0xd48] sm:$0xff]
    %v445 = vld [vmem:[%s0 + $0xd50] sm:$0xff]
    %v446 = vld [vmem:[%s0 + $0xd58] sm:$0xff]
    %v447 = vld [vmem:[%s0 + $0xd60] sm:$0xff]
    %v448 = vld [vmem:[%s0 + $0xd68] sm:$0xff]
    %v449 = vld [vmem:[%s0 + $0xd70] sm:$0xff]
    %v450 = vld [vmem:[%s0 + $0xd78] sm:$0xff]
    %v451 = vld [vmem:[%s0 + $0xd80] sm:$0xff]
    %v452 = vld [vmem:[%s0 + $0xd88] sm:$0xff]
    %v453 = vld [vmem:[%s0 + $0xd90] sm:$0xff]
    %v454 = vld [vmem:[%s0 + $0xd98] sm:$0xff]
    %v455 = vld [vmem:[%s0 + $0xda0] sm:$0xff]
    %v456 = vld [vmem:[%s0 + $0xda8] sm:$0xff]
    %v457 = vld [vmem:[%s0 + $0xdb0] sm:$0xff]
    %v458 = vld [vmem:[%s0 + $0xdb8] sm:$0xff]
    %v459 = vld [vmem:[%s0 + $0xdc0] sm:$0x11]
    %v460 = vld [vmem:[%s0 + $0xdc8] sm:$0x11]
    %v461 = vld [vmem:[%s0 + $0xdd0] sm:$0x11]
    %v462 = vld [vmem:[%s0 + $0xdd8] sm:$0x11]
    %v463 = vld [vmem:[%s0 + $0xde0] sm:$0x11]
    %v464 = vld [vmem:[%s0 + $0xde8] sm:$0x11]
    %v465 = vld [vmem:[%s0 + $0xdf0] sm:$0x11]
    %v466 = vld [vmem:[%s0 + $0xdf8] sm:$0x11]
    %v467 = vunpack.c.l.bf16 %v19
    %v468 = vunpack.c.h.bf16 %v19
    %v469 = vunpack.c.l.bf16 %v20
    %v470 = vunpack.c.h.bf16 %v20
    %v471 = vunpack.c.l.bf16 %v21
    %v472 = vunpack.c.h.bf16 %v21
    %v473 = vunpack.c.l.bf16 %v22
    %v474 = vunpack.c.h.bf16 %v22
    %v475 = vunpack.c.l.bf16 %v23
    %v476 = vunpack.c.h.bf16 %v23
    %v477 = vunpack.c.l.bf16 %v24
    %v478 = vunpack.c.h.bf16 %v24
    %v479 = vunpack.c.l.bf16 %v25
    %v480 = vunpack.c.h.bf16 %v25
    %v481 = vunpack.c.l.bf16 %v26
    %v482 = vunpack.c.h.bf16 %v26
    %v483 = vunpack.c.l.bf16 %v27
    %v484 = vunpack.c.h.bf16 %v27
    %v485 = vunpack.c.l.bf16 %v28
    %v486 = vunpack.c.h.bf16 %v28
    %v487 = vunpack.c.l.bf16 %v29
    %v488 = vunpack.c.h.bf16 %v29
    %v489 = vunpack.c.l.bf16 %v30
    %v490 = vunpack.c.h.bf16 %v30
    %v491 = vunpack.c.l.bf16 %v31
    %v492 = vunpack.c.h.bf16 %v31
    %v493 = vunpack.c.l.bf16 %v32
    %v494 = vunpack.c.h.bf16 %v32
    %v495 = vunpack.c.l.bf16 %v33
    %v496 = vunpack.c.h.bf16 %v33
    %v497 = vunpack.c.l.bf16 %v34
    %v498 = vunpack.c.h.bf16 %v34
    %v499 = vunpack.c.l.bf16 %v35
    %v500 = vunpack.c.h.bf16 %v35
    %v501 = vunpack.c.l.bf16 %v36
    %v502 = vunpack.c.h.bf16 %v36
    %v503 = vunpack.c.l.bf16 %v37
    %v504 = vunpack.c.h.bf16 %v37
    %v505 = vunpack.c.l.bf16 %v38
    %v506 = vunpack.c.h.bf16 %v38
    %v507 = vunpack.c.l.bf16 %v39
    %v508 = vunpack.c.h.bf16 %v39
    %v509 = vunpack.c.l.bf16 %v40
    %v510 = vunpack.c.h.bf16 %v40
    %v511 = vunpack.c.l.bf16 %v41
    %v512 = vunpack.c.h.bf16 %v41
    %v513 = vunpack.c.l.bf16 %v42
    %v514 = vunpack.c.h.bf16 %v42
    %v515 = vunpack.c.l.bf16 %v43
    %v516 = vunpack.c.h.bf16 %v43
    %v517 = vunpack.c.l.bf16 %v44
    %v518 = vunpack.c.h.bf16 %v44
    %v519 = vunpack.c.l.bf16 %v45
    %v520 = vunpack.c.h.bf16 %v45
    %v521 = vunpack.c.l.bf16 %v46
    %v522 = vunpack.c.h.bf16 %v46
    %v523 = vunpack.c.l.bf16 %v47
    %v524 = vunpack.c.h.bf16 %v47
    %v525 = vunpack.c.l.bf16 %v48
    %v526 = vunpack.c.h.bf16 %v48
    %v527 = vunpack.c.l.bf16 %v49
    %v528 = vunpack.c.h.bf16 %v49
    %v529 = vunpack.c.l.bf16 %v50
    %v530 = vunpack.c.h.bf16 %v50
    %v531 = vunpack.c.l.bf16 %v51
    %v532 = vunpack.c.h.bf16 %v51
    %v533 = vunpack.c.l.bf16 %v52
    %v534 = vunpack.c.h.bf16 %v52
    %v535 = vunpack.c.l.bf16 %v53
    %v536 = vunpack.c.h.bf16 %v53
    %v537 = vunpack.c.l.bf16 %v54
    %v538 = vunpack.c.h.bf16 %v54
    %v539 = vunpack.c.l.bf16 %v55
    %v540 = vunpack.c.h.bf16 %v55
    %v541 = vunpack.c.l.bf16 %v56
    %v542 = vunpack.c.h.bf16 %v56
    %v543 = vunpack.c.l.bf16 %v57
    %v544 = vunpack.c.h.bf16 %v57
    %v545 = vunpack.c.l.bf16 %v58
    %v546 = vunpack.c.h.bf16 %v58
    %v547 = vunpack.c.l.bf16 %v59
    %v548 = vunpack.c.h.bf16 %v59
    %v549 = vunpack.c.l.bf16 %v60
    %v550 = vunpack.c.h.bf16 %v60
    %v551 = vunpack.c.l.bf16 %v61
    %v552 = vunpack.c.h.bf16 %v61
    %v553 = vunpack.c.l.bf16 %v62
    %v554 = vunpack.c.h.bf16 %v62
    %v555 = vunpack.c.l.bf16 %v63
    %v556 = vunpack.c.h.bf16 %v63
    %v557 = vunpack.c.l.bf16 %v64
    %v558 = vunpack.c.h.bf16 %v64
    %v559 = vunpack.c.l.bf16 %v65
    %v560 = vunpack.c.h.bf16 %v65
    %v561 = vunpack.c.l.bf16 %v66
    %v562 = vunpack.c.h.bf16 %v66
    %v563 = vunpack.c.l.bf16 %v67
    %v564 = vunpack.c.h.bf16 %v67
    %v565 = vunpack.c.l.bf16 %v68
    %v566 = vunpack.c.h.bf16 %v68
    %v567 = vunpack.c.l.bf16 %v69
    %v568 = vunpack.c.h.bf16 %v69
    %v569 = vunpack.c.l.bf16 %v70
    %v570 = vunpack.c.h.bf16 %v70
    %v571 = vunpack.c.l.bf16 %v71
    %v572 = vunpack.c.h.bf16 %v71
    %v573 = vunpack.c.l.bf16 %v72
    %v574 = vunpack.c.h.bf16 %v72
    %v575 = vunpack.c.l.bf16 %v73
    %v576 = vunpack.c.h.bf16 %v73
    %v577 = vunpack.c.l.bf16 %v74
    %v578 = vunpack.c.h.bf16 %v74
    %v579 = vunpack.c.l.bf16 %v75
    %v580 = vunpack.c.h.bf16 %v75
    %v581 = vunpack.c.l.bf16 %v76
    %v582 = vunpack.c.h.bf16 %v76
    %v583 = vunpack.c.l.bf16 %v77
    %v584 = vunpack.c.h.bf16 %v77
    %v585 = vunpack.c.l.bf16 %v78
    %v586 = vunpack.c.h.bf16 %v78
    %v587 = vunpack.c.l.bf16 %v79
    %v588 = vunpack.c.h.bf16 %v79
    %v589 = vunpack.c.l.bf16 %v80
    %v590 = vunpack.c.h.bf16 %v80
    %v591 = vunpack.c.l.bf16 %v81
    %v592 = vunpack.c.h.bf16 %v81
    %v593 = vunpack.c.l.bf16 %v82
    %v594 = vunpack.c.h.bf16 %v82
    %v595 = vunpack.c.l.bf16 %v83
    %v596 = vunpack.c.h.bf16 %v83
    %v597 = vunpack.c.l.bf16 %v84
    %v598 = vunpack.c.h.bf16 %v84
    %v599 = vunpack.c.l.bf16 %v85
    %v600 = vunpack.c.h.bf16 %v85
    %v601 = vunpack.c.l.bf16 %v86
    %v602 = vunpack.c.h.bf16 %v86
    %v603 = vunpack.c.l.bf16 %v87
    %v604 = vunpack.c.h.bf16 %v87
    %v605 = vunpack.c.l.bf16 %v88
    %v606 = vunpack.c.h.bf16 %v88
    %v607 = vunpack.c.l.bf16 %v89
    %v608 = vunpack.c.h.bf16 %v89
    %v609 = vunpack.c.l.bf16 %v90
    %v610 = vunpack.c.h.bf16 %v90
    %v611 = vunpack.c.l.bf16 %v91
    %v612 = vunpack.c.h.bf16 %v91
    %v613 = vunpack.c.l.bf16 %v92
    %v614 = vunpack.c.h.bf16 %v92
    %v615 = vunpack.c.l.bf16 %v93
    %v616 = vunpack.c.h.bf16 %v93
    %v617 = vunpack.c.l.bf16 %v94
    %v618 = vunpack.c.h.bf16 %v94
    %v619 = vunpack.c.l.bf16 %v95
    %v620 = vunpack.c.h.bf16 %v95
    %v621 = vunpack.c.l.bf16 %v96
    %v622 = vunpack.c.h.bf16 %v96
    %v623 = vunpack.c.l.bf16 %v97
    %v624 = vunpack.c.h.bf16 %v97
    %v625 = vunpack.c.l.bf16 %v98
    %v626 = vunpack.c.h.bf16 %v98
    %v627 = vunpack.c.l.bf16 %v99
    %v628 = vunpack.c.h.bf16 %v99
    %v629 = vunpack.c.l.bf16 %v100
    %v630 = vunpack.c.h.bf16 %v100
    %v631 = vunpack.c.l.bf16 %v101
    %v632 = vunpack.c.h.bf16 %v101
    %v633 = vunpack.c.l.bf16 %v102
    %v634 = vunpack.c.h.bf16 %v102
    %v635 = vunpack.c.l.bf16 %v103
    %v636 = vunpack.c.h.bf16 %v103
    %v637 = vunpack.c.l.bf16 %v104
    %v638 = vunpack.c.h.bf16 %v104
    %v639 = vunpack.c.l.bf16 %v105
    %v640 = vunpack.c.h.bf16 %v105
    %v641 = vunpack.c.l.bf16 %v106
    %v642 = vunpack.c.h.bf16 %v106
    %v643 = vunpack.c.l.bf16 %v107
    %v644 = vunpack.c.h.bf16 %v107
    %v645 = vunpack.c.l.bf16 %v108
    %v646 = vunpack.c.h.bf16 %v108
    %v647 = vunpack.c.l.bf16 %v109
    %v648 = vunpack.c.h.bf16 %v109
    %v649 = vunpack.c.l.bf16 %v110
    %v650 = vunpack.c.h.bf16 %v110
    %v651 = vunpack.c.l.bf16 %v111
    %v652 = vunpack.c.h.bf16 %v111
    %v653 = vunpack.c.l.bf16 %v112
    %v654 = vunpack.c.h.bf16 %v112
    %v655 = vunpack.c.l.bf16 %v113
    %v656 = vunpack.c.h.bf16 %v113
    %v657 = vunpack.c.l.bf16 %v114
    %v658 = vunpack.c.h.bf16 %v114
    %v659 = vunpack.c.l.bf16 %v115
    %v660 = vunpack.c.h.bf16 %v115
    %v661 = vunpack.c.l.bf16 %v116
    %v662 = vunpack.c.h.bf16 %v116
    %v663 = vunpack.c.l.bf16 %v117
    %v664 = vunpack.c.h.bf16 %v117
    %v665 = vunpack.c.l.bf16 %v118
    %v666 = vunpack.c.h.bf16 %v118
    %v667 = vunpack.c.l.bf16 %v119
    %v668 = vunpack.c.h.bf16 %v119
    %v669 = vunpack.c.l.bf16 %v120
    %v670 = vunpack.c.h.bf16 %v120
    %v671 = vunpack.c.l.bf16 %v121
    %v672 = vunpack.c.h.bf16 %v121
    %v673 = vunpack.c.l.bf16 %v122
    %v674 = vunpack.c.h.bf16 %v122
    %v675 = vunpack.c.l.bf16 %v123
    %v676 = vunpack.c.h.bf16 %v123
    %v677 = vunpack.c.l.bf16 %v124
    %v678 = vunpack.c.h.bf16 %v124
    %v679 = vunpack.c.l.bf16 %v125
    %v680 = vunpack.c.h.bf16 %v125
    %v681 = vunpack.c.l.bf16 %v126
    %v682 = vunpack.c.h.bf16 %v126
    %v683 = vunpack.c.l.bf16 %v127
    %v684 = vunpack.c.h.bf16 %v127
    %v685 = vunpack.c.l.bf16 %v128
    %v686 = vunpack.c.h.bf16 %v128
    %v687 = vunpack.c.l.bf16 %v129
    %v688 = vunpack.c.h.bf16 %v129
    %v689 = vunpack.c.l.bf16 %v130
    %v690 = vunpack.c.h.bf16 %v130
    %v691 = vunpack.c.l.bf16 %v131
    %v692 = vunpack.c.h.bf16 %v131
    %v693 = vunpack.c.l.bf16 %v132
    %v694 = vunpack.c.h.bf16 %v132
    %v695 = vunpack.c.l.bf16 %v133
    %v696 = vunpack.c.h.bf16 %v133
    %v697 = vunpack.c.l.bf16 %v134
    %v698 = vunpack.c.h.bf16 %v134
    %v699 = vunpack.c.l.bf16 %v135
    %v700 = vunpack.c.h.bf16 %v135
    %v701 = vunpack.c.l.bf16 %v136
    %v702 = vunpack.c.h.bf16 %v136
    %v703 = vunpack.c.l.bf16 %v137
    %v704 = vunpack.c.h.bf16 %v137
    %v705 = vunpack.c.l.bf16 %v138
    %v706 = vunpack.c.h.bf16 %v138
    %v707 = vunpack.c.l.bf16 %v139
    %v708 = vunpack.c.h.bf16 %v139
    %v709 = vunpack.c.l.bf16 %v140
    %v710 = vunpack.c.h.bf16 %v140
    %v711 = vunpack.c.l.bf16 %v141
    %v712 = vunpack.c.h.bf16 %v141
    %v713 = vunpack.c.l.bf16 %v142
    %v714 = vunpack.c.h.bf16 %v142
    %v715 = vunpack.c.l.bf16 %v143
    %v716 = vunpack.c.h.bf16 %v143
    %v717 = vunpack.c.l.bf16 %v144
    %v718 = vunpack.c.h.bf16 %v144
    %v719 = vunpack.c.l.bf16 %v145
    %v720 = vunpack.c.h.bf16 %v145
    %v721 = vunpack.c.l.bf16 %v146
    %v722 = vunpack.c.h.bf16 %v146
    %v723 = vunpack.c.l.bf16 %v147
    %v724 = vunpack.c.h.bf16 %v147
    %v725 = vunpack.c.l.bf16 %v148
    %v726 = vunpack.c.h.bf16 %v148
    %v727 = vunpack.c.l.bf16 %v149
    %v728 = vunpack.c.h.bf16 %v149
    %v729 = vunpack.c.l.bf16 %v150
    %v730 = vunpack.c.h.bf16 %v150
    %v731 = vunpack.c.l.bf16 %v151
    %v732 = vunpack.c.h.bf16 %v151
    %v733 = vunpack.c.l.bf16 %v152
    %v734 = vunpack.c.h.bf16 %v152
    %v735 = vunpack.c.l.bf16 %v153
    %v736 = vunpack.c.h.bf16 %v153
    %v737 = vunpack.c.l.bf16 %v154
    %v738 = vunpack.c.h.bf16 %v154
    %v739 = vunpack.c.l.bf16 %v155
    %v740 = vunpack.c.h.bf16 %v155
    %v741 = vunpack.c.l.bf16 %v156
    %v742 = vunpack.c.h.bf16 %v156
    %v743 = vunpack.c.l.bf16 %v157
    %v744 = vunpack.c.h.bf16 %v157
    %v745 = vunpack.c.l.bf16 %v158
    %v746 = vunpack.c.h.bf16 %v158
    %v747 = vunpack.c.l.bf16 %v159
    %v748 = vunpack.c.h.bf16 %v159
    %v749 = vunpack.c.l.bf16 %v160
    %v750 = vunpack.c.h.bf16 %v160
    %v751 = vunpack.c.l.bf16 %v161
    %v752 = vunpack.c.h.bf16 %v161
    %v753 = vunpack.c.l.bf16 %v162
    %v754 = vunpack.c.h.bf16 %v162
    %v755 = vunpack.c.l.bf16 %v163
    %v756 = vunpack.c.h.bf16 %v163
    %v757 = vunpack.c.l.bf16 %v164
    %v758 = vunpack.c.h.bf16 %v164
    %v759 = vunpack.c.l.bf16 %v165
    %v760 = vunpack.c.h.bf16 %v165
    %v761 = vunpack.c.l.bf16 %v166
    %v762 = vunpack.c.h.bf16 %v166
    %v763 = vunpack.c.l.bf16 %v167
    %v764 = vunpack.c.h.bf16 %v167
    %v765 = vunpack.c.l.bf16 %v168
    %v766 = vunpack.c.h.bf16 %v168
    %v767 = vunpack.c.l.bf16 %v169
    %v768 = vunpack.c.h.bf16 %v169
    %v769 = vunpack.c.l.bf16 %v170
    %v770 = vunpack.c.h.bf16 %v170
    %v771 = vunpack.c.l.bf16 %v171
    %v772 = vunpack.c.h.bf16 %v171
    %v773 = vunpack.c.l.bf16 %v172
    %v774 = vunpack.c.h.bf16 %v172
    %v775 = vunpack.c.l.bf16 %v173
    %v776 = vunpack.c.h.bf16 %v173
    %v777 = vunpack.c.l.bf16 %v174
    %v778 = vunpack.c.h.bf16 %v174
    %v779 = vunpack.c.l.bf16 %v175
    %v780 = vunpack.c.h.bf16 %v175
    %v781 = vunpack.c.l.bf16 %v176
    %v782 = vunpack.c.h.bf16 %v176
    %v783 = vunpack.c.l.bf16 %v177
    %v784 = vunpack.c.h.bf16 %v177
    %v785 = vunpack.c.l.bf16 %v178
    %v786 = vunpack.c.h.bf16 %v178
    %v787 = vunpack.c.l.bf16 %v179
    %v788 = vunpack.c.h.bf16 %v179
    %v789 = vunpack.c.l.bf16 %v180
    %v790 = vunpack.c.h.bf16 %v180
    %v791 = vunpack.c.l.bf16 %v181
    %v792 = vunpack.c.h.bf16 %v181
    %v793 = vunpack.c.l.bf16 %v182
    %v794 = vunpack.c.h.bf16 %v182
    %v795 = vunpack.c.l.bf16 %v183
    %v796 = vunpack.c.h.bf16 %v183
    %v797 = vunpack.c.l.bf16 %v184
    %v798 = vunpack.c.h.bf16 %v184
    %v799 = vunpack.c.l.bf16 %v185
    %v800 = vunpack.c.h.bf16 %v185
    %v801 = vunpack.c.l.bf16 %v186
    %v802 = vunpack.c.h.bf16 %v186
    %v803 = vunpack.c.l.bf16 %v187
    %v804 = vunpack.c.h.bf16 %v187
    %v805 = vunpack.c.l.bf16 %v188
    %v806 = vunpack.c.h.bf16 %v188
    %v807 = vunpack.c.l.bf16 %v189
    %v808 = vunpack.c.h.bf16 %v189
    %v809 = vunpack.c.l.bf16 %v190
    %v810 = vunpack.c.h.bf16 %v190
    %v811 = vunpack.c.l.bf16 %v191
    %v812 = vunpack.c.h.bf16 %v191
    %v813 = vunpack.c.l.bf16 %v192
    %v814 = vunpack.c.h.bf16 %v192
    %v815 = vunpack.c.l.bf16 %v193
    %v816 = vunpack.c.h.bf16 %v193
    %v817 = vunpack.c.l.bf16 %v194
    %v818 = vunpack.c.h.bf16 %v194
    %v819 = vunpack.c.l.bf16 %v195
    %v820 = vunpack.c.h.bf16 %v195
    %v821 = vunpack.c.l.bf16 %v196
    %v822 = vunpack.c.h.bf16 %v196
    %v823 = vunpack.c.l.bf16 %v197
    %v824 = vunpack.c.h.bf16 %v197
    %v825 = vunpack.c.l.bf16 %v198
    %v826 = vunpack.c.h.bf16 %v198
    %v827 = vunpack.c.l.bf16 %v199
    %v828 = vunpack.c.h.bf16 %v199
    %v829 = vunpack.c.l.bf16 %v200
    %v830 = vunpack.c.h.bf16 %v200
    %v831 = vunpack.c.l.bf16 %v201
    %v832 = vunpack.c.h.bf16 %v201
    %v833 = vunpack.c.l.bf16 %v202
    %v834 = vunpack.c.h.bf16 %v202
    %v835 = vunpack.c.l.bf16 %v203
    %v836 = vunpack.c.h.bf16 %v203
    %v837 = vunpack.c.l.bf16 %v204
    %v838 = vunpack.c.h.bf16 %v204
    %v839 = vunpack.c.l.bf16 %v205
    %v840 = vunpack.c.h.bf16 %v205
    %v841 = vunpack.c.l.bf16 %v206
    %v842 = vunpack.c.h.bf16 %v206
    %v843 = vunpack.c.l.bf16 %v207
    %v844 = vunpack.c.h.bf16 %v207
    %v845 = vunpack.c.l.bf16 %v208
    %v846 = vunpack.c.h.bf16 %v208
    %v847 = vunpack.c.l.bf16 %v209
    %v848 = vunpack.c.h.bf16 %v209
    %v849 = vunpack.c.l.bf16 %v210
    %v850 = vunpack.c.h.bf16 %v210
    %v851 = vunpack.c.l.bf16 %v211
    %v852 = vunpack.c.h.bf16 %v211
    %v853 = vunpack.c.l.bf16 %v212
    %v854 = vunpack.c.h.bf16 %v212
    %v855 = vunpack.c.l.bf16 %v213
    %v856 = vunpack.c.h.bf16 %v213
    %v857 = vunpack.c.l.bf16 %v214
    %v858 = vunpack.c.h.bf16 %v214
    %v859 = vunpack.c.l.bf16 %v215
    %v860 = vunpack.c.h.bf16 %v215
    %v861 = vunpack.c.l.bf16 %v216
    %v862 = vunpack.c.h.bf16 %v216
    %v863 = vunpack.c.l.bf16 %v217
    %v864 = vunpack.c.h.bf16 %v217
    %v865 = vunpack.c.l.bf16 %v218
    %v866 = vunpack.c.h.bf16 %v218
    %v867 = vunpack.c.l.bf16 %v219
    %v868 = vunpack.c.h.bf16 %v219
    %v869 = vunpack.c.l.bf16 %v220
    %v870 = vunpack.c.h.bf16 %v220
    %v871 = vunpack.c.l.bf16 %v221
    %v872 = vunpack.c.h.bf16 %v221
    %v873 = vunpack.c.l.bf16 %v222
    %v874 = vunpack.c.h.bf16 %v222
    %v875 = vunpack.c.l.bf16 %v223
    %v876 = vunpack.c.h.bf16 %v223
    %v877 = vunpack.c.l.bf16 %v224
    %v878 = vunpack.c.h.bf16 %v224
    %v879 = vunpack.c.l.bf16 %v225
    %v880 = vunpack.c.h.bf16 %v225
    %v881 = vunpack.c.l.bf16 %v226
    %v882 = vunpack.c.h.bf16 %v226
    %v883 = vunpack.c.l.bf16 %v227
    %v884 = vunpack.c.h.bf16 %v227
    %v885 = vunpack.c.l.bf16 %v228
    %v886 = vunpack.c.h.bf16 %v228
    %v887 = vunpack.c.l.bf16 %v229
    %v888 = vunpack.c.h.bf16 %v229
    %v889 = vunpack.c.l.bf16 %v230
    %v890 = vunpack.c.h.bf16 %v230
    %v891 = vunpack.c.l.bf16 %v231
    %v892 = vunpack.c.h.bf16 %v231
    %v893 = vunpack.c.l.bf16 %v232
    %v894 = vunpack.c.h.bf16 %v232
    %v895 = vunpack.c.l.bf16 %v233
    %v896 = vunpack.c.h.bf16 %v233
    %v897 = vunpack.c.l.bf16 %v234
    %v898 = vunpack.c.h.bf16 %v234
    %v899 = vunpack.c.l.bf16 %v235
    %v900 = vunpack.c.h.bf16 %v235
    %v901 = vunpack.c.l.bf16 %v236
    %v902 = vunpack.c.h.bf16 %v236
    %v903 = vunpack.c.l.bf16 %v237
    %v904 = vunpack.c.h.bf16 %v237
    %v905 = vunpack.c.l.bf16 %v238
    %v906 = vunpack.c.h.bf16 %v238
    %v907 = vunpack.c.l.bf16 %v239
    %v908 = vunpack.c.h.bf16 %v239
    %v909 = vunpack.c.l.bf16 %v240
    %v910 = vunpack.c.h.bf16 %v240
    %v911 = vunpack.c.l.bf16 %v241
    %v912 = vunpack.c.h.bf16 %v241
    %v913 = vunpack.c.l.bf16 %v242
    %v914 = vunpack.c.h.bf16 %v242
    %v915 = vunpack.c.l.bf16 %v243
    %v916 = vunpack.c.h.bf16 %v243
    %v917 = vunpack.c.l.bf16 %v244
    %v918 = vunpack.c.h.bf16 %v244
    %v919 = vunpack.c.l.bf16 %v245
    %v920 = vunpack.c.h.bf16 %v245
    %v921 = vunpack.c.l.bf16 %v246
    %v922 = vunpack.c.h.bf16 %v246
    %v923 = vunpack.c.l.bf16 %v247
    %v924 = vunpack.c.h.bf16 %v247
    %v925 = vunpack.c.l.bf16 %v248
    %v926 = vunpack.c.h.bf16 %v248
    %v927 = vunpack.c.l.bf16 %v249
    %v928 = vunpack.c.h.bf16 %v249
    %v929 = vunpack.c.l.bf16 %v250
    %v930 = vunpack.c.h.bf16 %v250
    %v931 = vunpack.c.l.bf16 %v251
    %v932 = vunpack.c.h.bf16 %v251
    %v933 = vunpack.c.l.bf16 %v252
    %v934 = vunpack.c.h.bf16 %v252
    %v935 = vunpack.c.l.bf16 %v253
    %v936 = vunpack.c.h.bf16 %v253
    %v937 = vunpack.c.l.bf16 %v254
    %v938 = vunpack.c.h.bf16 %v254
    %v939 = vunpack.c.l.bf16 %v255
    %v940 = vunpack.c.h.bf16 %v255
    %v941 = vunpack.c.l.bf16 %v256
    %v942 = vunpack.c.h.bf16 %v256
    %v943 = vunpack.c.l.bf16 %v257
    %v944 = vunpack.c.h.bf16 %v257
    %v945 = vunpack.c.l.bf16 %v258
    %v946 = vunpack.c.h.bf16 %v258
    %v947 = vunpack.c.l.bf16 %v259
    %v948 = vunpack.c.h.bf16 %v259
    %v949 = vunpack.c.l.bf16 %v260
    %v950 = vunpack.c.h.bf16 %v260
    %v951 = vunpack.c.l.bf16 %v261
    %v952 = vunpack.c.h.bf16 %v261
    %v953 = vunpack.c.l.bf16 %v262
    %v954 = vunpack.c.h.bf16 %v262
    %v955 = vunpack.c.l.bf16 %v263
    %v956 = vunpack.c.h.bf16 %v263
    %v957 = vunpack.c.l.bf16 %v264
    %v958 = vunpack.c.h.bf16 %v264
    %v959 = vunpack.c.l.bf16 %v265
    %v960 = vunpack.c.h.bf16 %v265
    %v961 = vunpack.c.l.bf16 %v266
    %v962 = vunpack.c.h.bf16 %v266
    %v963 = vunpack.c.l.bf16 %v267
    %v964 = vunpack.c.h.bf16 %v267
    %v965 = vunpack.c.l.bf16 %v268
    %v966 = vunpack.c.h.bf16 %v268
    %v967 = vunpack.c.l.bf16 %v269
    %v968 = vunpack.c.h.bf16 %v269
    %v969 = vunpack.c.l.bf16 %v270
    %v970 = vunpack.c.h.bf16 %v270
    %v971 = vunpack.c.l.bf16 %v271
    %v972 = vunpack.c.h.bf16 %v271
    %v973 = vunpack.c.l.bf16 %v272
    %v974 = vunpack.c.h.bf16 %v272
    %v975 = vunpack.c.l.bf16 %v273
    %v976 = vunpack.c.h.bf16 %v273
    %v977 = vunpack.c.l.bf16 %v274
    %v978 = vunpack.c.h.bf16 %v274
    %v979 = vunpack.c.l.bf16 %v275
    %v980 = vunpack.c.h.bf16 %v275
    %v981 = vunpack.c.l.bf16 %v276
    %v982 = vunpack.c.h.bf16 %v276
    %v983 = vunpack.c.l.bf16 %v277
    %v984 = vunpack.c.h.bf16 %v277
    %v985 = vunpack.c.l.bf16 %v278
    %v986 = vunpack.c.h.bf16 %v278
    %v987 = vunpack.c.l.bf16 %v279
    %v988 = vunpack.c.h.bf16 %v279
    %v989 = vunpack.c.l.bf16 %v280
    %v990 = vunpack.c.h.bf16 %v280
    %v991 = vunpack.c.l.bf16 %v281
    %v992 = vunpack.c.h.bf16 %v281
    %v993 = vunpack.c.l.bf16 %v282
    %v994 = vunpack.c.h.bf16 %v282
    %v995 = vunpack.c.l.bf16 %v283
    %v996 = vunpack.c.h.bf16 %v283
    %v997 = vunpack.c.l.bf16 %v284
    %v998 = vunpack.c.h.bf16 %v284
    %v999 = vunpack.c.l.bf16 %v285
    %v1000 = vunpack.c.h.bf16 %v285
    %v1001 = vunpack.c.l.bf16 %v286
    %v1002 = vunpack.c.h.bf16 %v286
    %v1003 = vunpack.c.l.bf16 %v287
    %v1004 = vunpack.c.h.bf16 %v287
    %v1005 = vunpack.c.l.bf16 %v288
    %v1006 = vunpack.c.h.bf16 %v288
    %v1007 = vunpack.c.l.bf16 %v289
    %v1008 = vunpack.c.h.bf16 %v289
    %v1009 = vunpack.c.l.bf16 %v290
    %v1010 = vunpack.c.h.bf16 %v290
    %v1011 = vunpack.c.l.bf16 %v291
    %v1012 = vunpack.c.h.bf16 %v291
    %v1013 = vunpack.c.l.bf16 %v292
    %v1014 = vunpack.c.h.bf16 %v292
    %v1015 = vunpack.c.l.bf16 %v293
    %v1016 = vunpack.c.h.bf16 %v293
    %v1017 = vunpack.c.l.bf16 %v294
    %v1018 = vunpack.c.h.bf16 %v294
    %v1019 = vunpack.c.l.bf16 %v295
    %v1020 = vunpack.c.h.bf16 %v295
    %v1021 = vunpack.c.l.bf16 %v296
    %v1022 = vunpack.c.h.bf16 %v296
    %v1023 = vunpack.c.l.bf16 %v297
    %v1024 = vunpack.c.h.bf16 %v297
    %v1025 = vunpack.c.l.bf16 %v298
    %v1026 = vunpack.c.h.bf16 %v298
    %v1027 = vunpack.c.l.bf16 %v299
    %v1028 = vunpack.c.h.bf16 %v299
    %v1029 = vunpack.c.l.bf16 %v300
    %v1030 = vunpack.c.h.bf16 %v300
    %v1031 = vunpack.c.l.bf16 %v301
    %v1032 = vunpack.c.h.bf16 %v301
    %v1033 = vunpack.c.l.bf16 %v302
    %v1034 = vunpack.c.h.bf16 %v302
    %v1035 = vunpack.c.l.bf16 %v303
    %v1036 = vunpack.c.h.bf16 %v303
    %v1037 = vunpack.c.l.bf16 %v304
    %v1038 = vunpack.c.h.bf16 %v304
    %v1039 = vunpack.c.l.bf16 %v305
    %v1040 = vunpack.c.h.bf16 %v305
    %v1041 = vunpack.c.l.bf16 %v306
    %v1042 = vunpack.c.h.bf16 %v306
    %v1043 = vunpack.c.l.bf16 %v307
    %v1044 = vunpack.c.h.bf16 %v307
    %v1045 = vunpack.c.l.bf16 %v308
    %v1046 = vunpack.c.h.bf16 %v308
    %v1047 = vunpack.c.l.bf16 %v309
    %v1048 = vunpack.c.h.bf16 %v309
    %v1049 = vunpack.c.l.bf16 %v310
    %v1050 = vunpack.c.h.bf16 %v310
    %v1051 = vunpack.c.l.bf16 %v311
    %v1052 = vunpack.c.h.bf16 %v311
    %v1053 = vunpack.c.l.bf16 %v312
    %v1054 = vunpack.c.h.bf16 %v312
    %v1055 = vunpack.c.l.bf16 %v313
    %v1056 = vunpack.c.h.bf16 %v313
    %v1057 = vunpack.c.l.bf16 %v314
    %v1058 = vunpack.c.h.bf16 %v314
    %v1059 = vunpack.c.l.bf16 %v315
    %v1060 = vunpack.c.h.bf16 %v315
    %v1061 = vunpack.c.l.bf16 %v316
    %v1062 = vunpack.c.h.bf16 %v316
    %v1063 = vunpack.c.l.bf16 %v317
    %v1064 = vunpack.c.h.bf16 %v317
    %v1065 = vunpack.c.l.bf16 %v318
    %v1066 = vunpack.c.h.bf16 %v318
    %v1067 = vunpack.c.l.bf16 %v319
    %v1068 = vunpack.c.h.bf16 %v319
    %v1069 = vunpack.c.l.bf16 %v320
    %v1070 = vunpack.c.h.bf16 %v320
    %v1071 = vunpack.c.l.bf16 %v321
    %v1072 = vunpack.c.h.bf16 %v321
    %v1073 = vunpack.c.l.bf16 %v322
    %v1074 = vunpack.c.h.bf16 %v322
    %v1075 = vunpack.c.l.bf16 %v323
    %v1076 = vunpack.c.h.bf16 %v323
    %v1077 = vunpack.c.l.bf16 %v324
    %v1078 = vunpack.c.h.bf16 %v324
    %v1079 = vunpack.c.l.bf16 %v325
    %v1080 = vunpack.c.h.bf16 %v325
    %v1081 = vunpack.c.l.bf16 %v326
    %v1082 = vunpack.c.h.bf16 %v326
    %v1083 = vunpack.c.l.bf16 %v327
    %v1084 = vunpack.c.h.bf16 %v327
    %v1085 = vunpack.c.l.bf16 %v328
    %v1086 = vunpack.c.h.bf16 %v328
    %v1087 = vunpack.c.l.bf16 %v329
    %v1088 = vunpack.c.h.bf16 %v329
    %v1089 = vunpack.c.l.bf16 %v330
    %v1090 = vunpack.c.h.bf16 %v330
    %v1091 = vunpack.c.l.bf16 %v331
    %v1092 = vunpack.c.h.bf16 %v331
    %v1093 = vunpack.c.l.bf16 %v332
    %v1094 = vunpack.c.h.bf16 %v332
    %v1095 = vunpack.c.l.bf16 %v333
    %v1096 = vunpack.c.h.bf16 %v333
    %v1097 = vunpack.c.l.bf16 %v334
    %v1098 = vunpack.c.h.bf16 %v334
    %v1099 = vunpack.c.l.bf16 %v335
    %v1100 = vunpack.c.h.bf16 %v335
    %v1101 = vunpack.c.l.bf16 %v336
    %v1102 = vunpack.c.h.bf16 %v336
    %v1103 = vunpack.c.l.bf16 %v337
    %v1104 = vunpack.c.h.bf16 %v337
    %v1105 = vunpack.c.l.bf16 %v338
    %v1106 = vunpack.c.h.bf16 %v338
    %v1107 = vunpack.c.l.bf16 %v339
    %v1108 = vunpack.c.h.bf16 %v339
    %v1109 = vunpack.c.l.bf16 %v340
    %v1110 = vunpack.c.h.bf16 %v340
    %v1111 = vunpack.c.l.bf16 %v341
    %v1112 = vunpack.c.h.bf16 %v341
    %v1113 = vunpack.c.l.bf16 %v342
    %v1114 = vunpack.c.h.bf16 %v342
    %v1115 = vunpack.c.l.bf16 %v343
    %v1116 = vunpack.c.h.bf16 %v343
    %v1117 = vunpack.c.l.bf16 %v344
    %v1118 = vunpack.c.h.bf16 %v344
    %v1119 = vunpack.c.l.bf16 %v345
    %v1120 = vunpack.c.h.bf16 %v345
    %v1121 = vunpack.c.l.bf16 %v346
    %v1122 = vunpack.c.h.bf16 %v346
    %v1123 = vunpack.c.l.bf16 %v347
    %v1124 = vunpack.c.h.bf16 %v347
    %v1125 = vunpack.c.l.bf16 %v348
    %v1126 = vunpack.c.h.bf16 %v348
    %v1127 = vunpack.c.l.bf16 %v349
    %v1128 = vunpack.c.h.bf16 %v349
    %v1129 = vunpack.c.l.bf16 %v350
    %v1130 = vunpack.c.h.bf16 %v350
    %v1131 = vunpack.c.l.bf16 %v351
    %v1132 = vunpack.c.h.bf16 %v351
    %v1133 = vunpack.c.l.bf16 %v352
    %v1134 = vunpack.c.h.bf16 %v352
    %v1135 = vunpack.c.l.bf16 %v353
    %v1136 = vunpack.c.h.bf16 %v353
    %v1137 = vunpack.c.l.bf16 %v354
    %v1138 = vunpack.c.h.bf16 %v354
    %v1139 = vunpack.c.l.bf16 %v355
    %v1140 = vunpack.c.h.bf16 %v355
    %v1141 = vunpack.c.l.bf16 %v356
    %v1142 = vunpack.c.h.bf16 %v356
    %v1143 = vunpack.c.l.bf16 %v357
    %v1144 = vunpack.c.h.bf16 %v357
    %v1145 = vunpack.c.l.bf16 %v358
    %v1146 = vunpack.c.h.bf16 %v358
    %v1147 = vunpack.c.l.bf16 %v359
    %v1148 = vunpack.c.h.bf16 %v359
    %v1149 = vunpack.c.l.bf16 %v360
    %v1150 = vunpack.c.h.bf16 %v360
    %v1151 = vunpack.c.l.bf16 %v361
    %v1152 = vunpack.c.h.bf16 %v361
    %v1153 = vunpack.c.l.bf16 %v362
    %v1154 = vunpack.c.h.bf16 %v362
    %v1155 = vunpack.c.l.bf16 %v363
    %v1156 = vunpack.c.h.bf16 %v363
    %v1157 = vunpack.c.l.bf16 %v364
    %v1158 = vunpack.c.h.bf16 %v364
    %v1159 = vunpack.c.l.bf16 %v365
    %v1160 = vunpack.c.h.bf16 %v365
    %v1161 = vunpack.c.l.bf16 %v366
    %v1162 = vunpack.c.h.bf16 %v366
    %v1163 = vunpack.c.l.bf16 %v367
    %v1164 = vunpack.c.h.bf16 %v367
    %v1165 = vunpack.c.l.bf16 %v368
    %v1166 = vunpack.c.h.bf16 %v368
    %v1167 = vunpack.c.l.bf16 %v369
    %v1168 = vunpack.c.h.bf16 %v369
    %v1169 = vunpack.c.l.bf16 %v370
    %v1170 = vunpack.c.h.bf16 %v370
    %v1171 = vunpack.c.l.bf16 %v371
    %v1172 = vunpack.c.h.bf16 %v371
    %v1173 = vunpack.c.l.bf16 %v372
    %v1174 = vunpack.c.h.bf16 %v372
    %v1175 = vunpack.c.l.bf16 %v373
    %v1176 = vunpack.c.h.bf16 %v373
    %v1177 = vunpack.c.l.bf16 %v374
    %v1178 = vunpack.c.h.bf16 %v374
    %v1179 = vunpack.c.l.bf16 %v375
    %v1180 = vunpack.c.h.bf16 %v375
    %v1181 = vunpack.c.l.bf16 %v376
    %v1182 = vunpack.c.h.bf16 %v376
    %v1183 = vunpack.c.l.bf16 %v377
    %v1184 = vunpack.c.h.bf16 %v377
    %v1185 = vunpack.c.l.bf16 %v378
    %v1186 = vunpack.c.h.bf16 %v378
    %v1187 = vunpack.c.l.bf16 %v379
    %v1188 = vunpack.c.h.bf16 %v379
    %v1189 = vunpack.c.l.bf16 %v380
    %v1190 = vunpack.c.h.bf16 %v380
    %v1191 = vunpack.c.l.bf16 %v381
    %v1192 = vunpack.c.h.bf16 %v381
    %v1193 = vunpack.c.l.bf16 %v382
    %v1194 = vunpack.c.h.bf16 %v382
    %v1195 = vunpack.c.l.bf16 %v383
    %v1196 = vunpack.c.h.bf16 %v383
    %v1197 = vunpack.c.l.bf16 %v384
    %v1198 = vunpack.c.h.bf16 %v384
    %v1199 = vunpack.c.l.bf16 %v385
    %v1200 = vunpack.c.h.bf16 %v385
    %v1201 = vunpack.c.l.bf16 %v386
    %v1202 = vunpack.c.h.bf16 %v386
    %v1203 = vunpack.c.l.bf16 %v387
    %v1204 = vunpack.c.h.bf16 %v387
    %v1205 = vunpack.c.l.bf16 %v388
    %v1206 = vunpack.c.h.bf16 %v388
    %v1207 = vunpack.c.l.bf16 %v389
    %v1208 = vunpack.c.h.bf16 %v389
    %v1209 = vunpack.c.l.bf16 %v390
    %v1210 = vunpack.c.h.bf16 %v390
    %v1211 = vunpack.c.l.bf16 %v391
    %v1212 = vunpack.c.h.bf16 %v391
    %v1213 = vunpack.c.l.bf16 %v392
    %v1214 = vunpack.c.h.bf16 %v392
    %v1215 = vunpack.c.l.bf16 %v393
    %v1216 = vunpack.c.h.bf16 %v393
    %v1217 = vunpack.c.l.bf16 %v394
    %v1218 = vunpack.c.h.bf16 %v394
    %v1219 = vunpack.c.l.bf16 %v395
    %v1220 = vunpack.c.h.bf16 %v395
    %v1221 = vunpack.c.l.bf16 %v396
    %v1222 = vunpack.c.h.bf16 %v396
    %v1223 = vunpack.c.l.bf16 %v397
    %v1224 = vunpack.c.h.bf16 %v397
    %v1225 = vunpack.c.l.bf16 %v398
    %v1226 = vunpack.c.h.bf16 %v398
    %v1227 = vunpack.c.l.bf16 %v399
    %v1228 = vunpack.c.h.bf16 %v399
    %v1229 = vunpack.c.l.bf16 %v400
    %v1230 = vunpack.c.h.bf16 %v400
    %v1231 = vunpack.c.l.bf16 %v401
    %v1232 = vunpack.c.h.bf16 %v401
    %v1233 = vunpack.c.l.bf16 %v402
    %v1234 = vunpack.c.h.bf16 %v402
    %v1235 = vunpack.c.l.bf16 %v403
    %v1236 = vunpack.c.h.bf16 %v403
    %v1237 = vunpack.c.l.bf16 %v404
    %v1238 = vunpack.c.h.bf16 %v404
    %v1239 = vunpack.c.l.bf16 %v405
    %v1240 = vunpack.c.h.bf16 %v405
    %v1241 = vunpack.c.l.bf16 %v406
    %v1242 = vunpack.c.h.bf16 %v406
    %v1243 = vunpack.c.l.bf16 %v407
    %v1244 = vunpack.c.h.bf16 %v407
    %v1245 = vunpack.c.l.bf16 %v408
    %v1246 = vunpack.c.h.bf16 %v408
    %v1247 = vunpack.c.l.bf16 %v409
    %v1248 = vunpack.c.h.bf16 %v409
    %v1249 = vunpack.c.l.bf16 %v410
    %v1250 = vunpack.c.h.bf16 %v410
    %v1251 = vunpack.c.l.bf16 %v411
    %v1252 = vunpack.c.h.bf16 %v411
    %v1253 = vunpack.c.l.bf16 %v412
    %v1254 = vunpack.c.h.bf16 %v412
    %v1255 = vunpack.c.l.bf16 %v413
    %v1256 = vunpack.c.h.bf16 %v413
    %v1257 = vunpack.c.l.bf16 %v414
    %v1258 = vunpack.c.h.bf16 %v414
    %v1259 = vunpack.c.l.bf16 %v415
    %v1260 = vunpack.c.h.bf16 %v415
    %v1261 = vunpack.c.l.bf16 %v416
    %v1262 = vunpack.c.h.bf16 %v416
    %v1263 = vunpack.c.l.bf16 %v417
    %v1264 = vunpack.c.h.bf16 %v417
    %v1265 = vunpack.c.l.bf16 %v418
    %v1266 = vunpack.c.h.bf16 %v418
    %v1267 = vunpack.c.l.bf16 %v419
    %v1268 = vunpack.c.h.bf16 %v419
    %v1269 = vunpack.c.l.bf16 %v420
    %v1270 = vunpack.c.h.bf16 %v420
    %v1271 = vunpack.c.l.bf16 %v421
    %v1272 = vunpack.c.h.bf16 %v421
    %v1273 = vunpack.c.l.bf16 %v422
    %v1274 = vunpack.c.h.bf16 %v422
    %v1275 = vunpack.c.l.bf16 %v423
    %v1276 = vunpack.c.h.bf16 %v423
    %v1277 = vunpack.c.l.bf16 %v424
    %v1278 = vunpack.c.h.bf16 %v424
    %v1279 = vunpack.c.l.bf16 %v425
    %v1280 = vunpack.c.h.bf16 %v425
    %v1281 = vunpack.c.l.bf16 %v426
    %v1282 = vunpack.c.h.bf16 %v426
    %v1283 = vunpack.c.l.bf16 %v427
    %v1284 = vunpack.c.h.bf16 %v427
    %v1285 = vunpack.c.l.bf16 %v428
    %v1286 = vunpack.c.h.bf16 %v428
    %v1287 = vunpack.c.l.bf16 %v429
    %v1288 = vunpack.c.h.bf16 %v429
    %v1289 = vunpack.c.l.bf16 %v430
    %v1290 = vunpack.c.h.bf16 %v430
    %v1291 = vunpack.c.l.bf16 %v431
    %v1292 = vunpack.c.h.bf16 %v431
    %v1293 = vunpack.c.l.bf16 %v432
    %v1294 = vunpack.c.h.bf16 %v432
    %v1295 = vunpack.c.l.bf16 %v433
    %v1296 = vunpack.c.h.bf16 %v433
    %v1297 = vunpack.c.l.bf16 %v434
    %v1298 = vunpack.c.h.bf16 %v434
    %v1299 = vunpack.c.l.bf16 %v435
    %v1300 = vunpack.c.h.bf16 %v435
    %v1301 = vunpack.c.l.bf16 %v436
    %v1302 = vunpack.c.h.bf16 %v436
    %v1303 = vunpack.c.l.bf16 %v437
    %v1304 = vunpack.c.h.bf16 %v437
    %v1305 = vunpack.c.l.bf16 %v438
    %v1306 = vunpack.c.h.bf16 %v438
    %v1307 = vunpack.c.l.bf16 %v439
    %v1308 = vunpack.c.h.bf16 %v439
    %v1309 = vunpack.c.l.bf16 %v440
    %v1310 = vunpack.c.h.bf16 %v440
    %v1311 = vunpack.c.l.bf16 %v441
    %v1312 = vunpack.c.h.bf16 %v441
    %v1313 = vunpack.c.l.bf16 %v442
    %v1314 = vunpack.c.h.bf16 %v442
    %v1315 = vunpack.c.l.bf16 %v443
    %v1316 = vunpack.c.h.bf16 %v443
    %v1317 = vunpack.c.l.bf16 %v444
    %v1318 = vunpack.c.h.bf16 %v444
    %v1319 = vunpack.c.l.bf16 %v445
    %v1320 = vunpack.c.h.bf16 %v445
    %v1321 = vunpack.c.l.bf16 %v446
    %v1322 = vunpack.c.h.bf16 %v446
    %v1323 = vunpack.c.l.bf16 %v447
    %v1324 = vunpack.c.h.bf16 %v447
    %v1325 = vunpack.c.l.bf16 %v448
    %v1326 = vunpack.c.h.bf16 %v448
    %v1327 = vunpack.c.l.bf16 %v449
    %v1328 = vunpack.c.h.bf16 %v449
    %v1329 = vunpack.c.l.bf16 %v450
    %v1330 = vunpack.c.h.bf16 %v450
    %v1331 = vunpack.c.l.bf16 %v451
    %v1332 = vunpack.c.h.bf16 %v451
    %v1333 = vunpack.c.l.bf16 %v452
    %v1334 = vunpack.c.h.bf16 %v452
    %v1335 = vunpack.c.l.bf16 %v453
    %v1336 = vunpack.c.h.bf16 %v453
    %v1337 = vunpack.c.l.bf16 %v454
    %v1338 = vunpack.c.h.bf16 %v454
    %v1339 = vunpack.c.l.bf16 %v455
    %v1340 = vunpack.c.h.bf16 %v455
    %v1341 = vunpack.c.l.bf16 %v456
    %v1342 = vunpack.c.h.bf16 %v456
    %v1343 = vunpack.c.l.bf16 %v457
    %v1344 = vunpack.c.h.bf16 %v457
    %v1345 = vunpack.c.l.bf16 %v458
    %v1346 = vunpack.c.h.bf16 %v458
    %v1347 = vunpack.c.l.bf16 %v459
    %v1348 = vunpack.c.h.bf16 %v459
    %v1349 = vunpack.c.l.bf16 %v460
    %v1350 = vunpack.c.h.bf16 %v460
    %v1351 = vunpack.c.l.bf16 %v461
    %v1352 = vunpack.c.h.bf16 %v461
    %v1353 = vunpack.c.l.bf16 %v462
    %v1354 = vunpack.c.h.bf16 %v462
    %v1355 = vunpack.c.l.bf16 %v463
    %v1356 = vunpack.c.h.bf16 %v463
    %v1357 = vunpack.c.l.bf16 %v464
    %v1358 = vunpack.c.h.bf16 %v464
    %v1359 = vunpack.c.l.bf16 %v465
    %v1360 = vunpack.c.h.bf16 %v465
    %v1361 = vunpack.c.l.bf16 %v466
    %v1362 = vunpack.c.h.bf16 %v466
    %v1363 = vadd.f32 %v467, %v483
    %v1364 = vadd.f32 %v1363, %v499
    %v1365 = vadd.f32 %v1364, %v515
    %v1366 = vadd.f32 %v1365, %v531
    %v1367 = vadd.f32 %v1366, %v547
    %vm1368 = vcmask 1040384
    %v1369 = vsel %vm1368, %v563, 0.0
    %v1370 = vadd.f32 %v1367, %v1369
    %v1371 = vrot.slane %v1370, 4
    %v1372 = vadd.f32 %v1370, %v1371
    %v1373 = vrot.slane %v1372, 2
    %v1374 = vadd.f32 %v1372, %v1373
    %v1375 = vrot.slane %v1374, 1
    %v1376 = vadd.f32 %v1374, %v1375
    %v1377 = vadd.f32 %v468, %v484
    %v1378 = vadd.f32 %v1377, %v500
    %v1379 = vadd.f32 %v1378, %v516
    %v1380 = vadd.f32 %v1379, %v532
    %v1381 = vadd.f32 %v1380, %v548
    %v1382 = vsel %vm1368, %v564, 0.0
    %v1383 = vadd.f32 %v1381, %v1382
    %v1384 = vrot.slane %v1383, 4
    %v1385 = vadd.f32 %v1383, %v1384
    %v1386 = vrot.slane %v1385, 2
    %v1387 = vadd.f32 %v1385, %v1386
    %v1388 = vrot.slane %v1387, 1
    %v1389 = vadd.f32 %v1387, %v1388
    %v1390 = vadd.f32 %v469, %v485
    %v1391 = vadd.f32 %v1390, %v501
    %v1392 = vadd.f32 %v1391, %v517
    %v1393 = vadd.f32 %v1392, %v533
    %v1394 = vadd.f32 %v1393, %v549
    %v1395 = vsel %vm1368, %v565, 0.0
    %v1396 = vadd.f32 %v1394, %v1395
    %v1397 = vrot.slane %v1396, 4
    %v1398 = vadd.f32 %v1396, %v1397
    %v1399 = vrot.slane %v1398, 2
    %v1400 = vadd.f32 %v1398, %v1399
    %v1401 = vrot.slane %v1400, 1
    %v1402 = vadd.f32 %v1400, %v1401
    %v1403 = vadd.f32 %v470, %v486
    %v1404 = vadd.f32 %v1403, %v502
    %v1405 = vadd.f32 %v1404, %v518
    %v1406 = vadd.f32 %v1405, %v534
    %v1407 = vadd.f32 %v1406, %v550
    %v1408 = vsel %vm1368, %v566, 0.0
    %v1409 = vadd.f32 %v1407, %v1408
    %v1410 = vrot.slane %v1409, 4
    %v1411 = vadd.f32 %v1409, %v1410
    %v1412 = vrot.slane %v1411, 2
    %v1413 = vadd.f32 %v1411, %v1412
    %v1414 = vrot.slane %v1413, 1
    %v1415 = vadd.f32 %v1413, %v1414
    %v1416 = vadd.f32 %v471, %v487
    %v1417 = vadd.f32 %v1416, %v503
    %v1418 = vadd.f32 %v1417, %v519
    %v1419 = vadd.f32 %v1418, %v535
    %v1420 = vadd.f32 %v1419, %v551
    %v1421 = vsel %vm1368, %v567, 0.0
    %v1422 = vadd.f32 %v1420, %v1421
    %v1423 = vrot.slane %v1422, 4
    %v1424 = vadd.f32 %v1422, %v1423
    %v1425 = vrot.slane %v1424, 2
    %v1426 = vadd.f32 %v1424, %v1425
    %v1427 = vrot.slane %v1426, 1
    %v1428 = vadd.f32 %v1426, %v1427
    %v1429 = vadd.f32 %v472, %v488
    %v1430 = vadd.f32 %v1429, %v504
    %v1431 = vadd.f32 %v1430, %v520
    %v1432 = vadd.f32 %v1431, %v536
    %v1433 = vadd.f32 %v1432, %v552
    %v1434 = vsel %vm1368, %v568, 0.0
    %v1435 = vadd.f32 %v1433, %v1434
    %v1436 = vrot.slane %v1435, 4
    %v1437 = vadd.f32 %v1435, %v1436
    %v1438 = vrot.slane %v1437, 2
    %v1439 = vadd.f32 %v1437, %v1438
    %v1440 = vrot.slane %v1439, 1
    %v1441 = vadd.f32 %v1439, %v1440
    %v1442 = vadd.f32 %v473, %v489
    %v1443 = vadd.f32 %v1442, %v505
    %v1444 = vadd.f32 %v1443, %v521
    %v1445 = vadd.f32 %v1444, %v537
    %v1446 = vadd.f32 %v1445, %v553
    %v1447 = vsel %vm1368, %v569, 0.0
    %v1448 = vadd.f32 %v1446, %v1447
    %v1449 = vrot.slane %v1448, 4
    %v1450 = vadd.f32 %v1448, %v1449
    %v1451 = vrot.slane %v1450, 2
    %v1452 = vadd.f32 %v1450, %v1451
    %v1453 = vrot.slane %v1452, 1
    %v1454 = vadd.f32 %v1452, %v1453
    %v1455 = vadd.f32 %v474, %v490
    %v1456 = vadd.f32 %v1455, %v506
    %v1457 = vadd.f32 %v1456, %v522
    %v1458 = vadd.f32 %v1457, %v538
    %v1459 = vadd.f32 %v1458, %v554
    %v1460 = vsel %vm1368, %v570, 0.0
    %v1461 = vadd.f32 %v1459, %v1460
    %v1462 = vrot.slane %v1461, 4
    %v1463 = vadd.f32 %v1461, %v1462
    %v1464 = vrot.slane %v1463, 2
    %v1465 = vadd.f32 %v1463, %v1464
    %v1466 = vrot.slane %v1465, 1
    %v1467 = vadd.f32 %v1465, %v1466
    %v1468 = vadd.f32 %v475, %v491
    %v1469 = vadd.f32 %v1468, %v507
    %v1470 = vadd.f32 %v1469, %v523
    %v1471 = vadd.f32 %v1470, %v539
    %v1472 = vadd.f32 %v1471, %v555
    %v1473 = vsel %vm1368, %v571, 0.0
    %v1474 = vadd.f32 %v1472, %v1473
    %v1475 = vrot.slane %v1474, 4
    %v1476 = vadd.f32 %v1474, %v1475
    %v1477 = vrot.slane %v1476, 2
    %v1478 = vadd.f32 %v1476, %v1477
    %v1479 = vrot.slane %v1478, 1
    %v1480 = vadd.f32 %v1478, %v1479
    %v1481 = vadd.f32 %v476, %v492
    %v1482 = vadd.f32 %v1481, %v508
    %v1483 = vadd.f32 %v1482, %v524
    %v1484 = vadd.f32 %v1483, %v540
    %v1485 = vadd.f32 %v1484, %v556
    %v1486 = vsel %vm1368, %v572, 0.0
    %v1487 = vadd.f32 %v1485, %v1486
    %v1488 = vrot.slane %v1487, 4
    %v1489 = vadd.f32 %v1487, %v1488
    %v1490 = vrot.slane %v1489, 2
    %v1491 = vadd.f32 %v1489, %v1490
    %v1492 = vrot.slane %v1491, 1
    %v1493 = vadd.f32 %v1491, %v1492
    %v1494 = vadd.f32 %v477, %v493
    %v1495 = vadd.f32 %v1494, %v509
    %v1496 = vadd.f32 %v1495, %v525
    %v1497 = vadd.f32 %v1496, %v541
    %v1498 = vadd.f32 %v1497, %v557
    %v1499 = vsel %vm1368, %v573, 0.0
    %v1500 = vadd.f32 %v1498, %v1499
    %v1501 = vrot.slane %v1500, 4
    %v1502 = vadd.f32 %v1500, %v1501
    %v1503 = vrot.slane %v1502, 2
    %v1504 = vadd.f32 %v1502, %v1503
    %v1505 = vrot.slane %v1504, 1
    %v1506 = vadd.f32 %v1504, %v1505
    %v1507 = vadd.f32 %v478, %v494
    %v1508 = vadd.f32 %v1507, %v510
    %v1509 = vadd.f32 %v1508, %v526
    %v1510 = vadd.f32 %v1509, %v542
    %v1511 = vadd.f32 %v1510, %v558
    %v1512 = vsel %vm1368, %v574, 0.0
    %v1513 = vadd.f32 %v1511, %v1512
    %v1514 = vrot.slane %v1513, 4
    %v1515 = vadd.f32 %v1513, %v1514
    %v1516 = vrot.slane %v1515, 2
    %v1517 = vadd.f32 %v1515, %v1516
    %v1518 = vrot.slane %v1517, 1
    %v1519 = vadd.f32 %v1517, %v1518
    %v1520 = vadd.f32 %v479, %v495
    %v1521 = vadd.f32 %v1520, %v511
    %v1522 = vadd.f32 %v1521, %v527
    %v1523 = vadd.f32 %v1522, %v543
    %v1524 = vadd.f32 %v1523, %v559
    %v1525 = vsel %vm1368, %v575, 0.0
    %v1526 = vadd.f32 %v1524, %v1525
    %v1527 = vrot.slane %v1526, 4
    %v1528 = vadd.f32 %v1526, %v1527
    %v1529 = vrot.slane %v1528, 2
    %v1530 = vadd.f32 %v1528, %v1529
    %v1531 = vrot.slane %v1530, 1
    %v1532 = vadd.f32 %v1530, %v1531
    %v1533 = vadd.f32 %v480, %v496
    %v1534 = vadd.f32 %v1533, %v512
    %v1535 = vadd.f32 %v1534, %v528
    %v1536 = vadd.f32 %v1535, %v544
    %v1537 = vadd.f32 %v1536, %v560
    %v1538 = vsel %vm1368, %v576, 0.0
    %v1539 = vadd.f32 %v1537, %v1538
    %v1540 = vrot.slane %v1539, 4
    %v1541 = vadd.f32 %v1539, %v1540
    %v1542 = vrot.slane %v1541, 2
    %v1543 = vadd.f32 %v1541, %v1542
    %v1544 = vrot.slane %v1543, 1
    %v1545 = vadd.f32 %v1543, %v1544
    %v1546 = vadd.f32 %v481, %v497
    %v1547 = vadd.f32 %v1546, %v513
    %v1548 = vadd.f32 %v1547, %v529
    %v1549 = vadd.f32 %v1548, %v545
    %v1550 = vadd.f32 %v1549, %v561
    %v1551 = vsel %vm1368, %v577, 0.0
    %v1552 = vadd.f32 %v1550, %v1551
    %v1553 = vrot.slane %v1552, 4
    %v1554 = vadd.f32 %v1552, %v1553
    %v1555 = vrot.slane %v1554, 2
    %v1556 = vadd.f32 %v1554, %v1555
    %v1557 = vrot.slane %v1556, 1
    %v1558 = vadd.f32 %v1556, %v1557
    %v1559 = vadd.f32 %v482, %v498
    %v1560 = vadd.f32 %v1559, %v514
    %v1561 = vadd.f32 %v1560, %v530
    %v1562 = vadd.f32 %v1561, %v546
    %v1563 = vadd.f32 %v1562, %v562
    %v1564 = vsel %vm1368, %v578, 0.0
    %v1565 = vadd.f32 %v1563, %v1564
    %v1566 = vrot.slane %v1565, 4
    %v1567 = vadd.f32 %v1565, %v1566
    %v1568 = vrot.slane %v1567, 2
    %v1569 = vadd.f32 %v1567, %v1568
    %v1570 = vrot.slane %v1569, 1
    %v1571 = vadd.f32 %v1569, %v1570
    %v1572 = vadd.f32 %v579, %v595
    %v1573 = vadd.f32 %v1572, %v611
    %v1574 = vadd.f32 %v1573, %v627
    %v1575 = vadd.f32 %v1574, %v643
    %v1576 = vadd.f32 %v1575, %v659
    %v1577 = vsel %vm1368, %v675, 0.0
    %v1578 = vadd.f32 %v1576, %v1577
    %v1579 = vrot.slane %v1578, 4
    %v1580 = vadd.f32 %v1578, %v1579
    %v1581 = vrot.slane %v1580, 2
    %v1582 = vadd.f32 %v1580, %v1581
    %v1583 = vrot.slane %v1582, 1
    %v1584 = vadd.f32 %v1582, %v1583
    %v1585 = vadd.f32 %v580, %v596
    %v1586 = vadd.f32 %v1585, %v612
    %v1587 = vadd.f32 %v1586, %v628
    %v1588 = vadd.f32 %v1587, %v644
    %v1589 = vadd.f32 %v1588, %v660
    %v1590 = vsel %vm1368, %v676, 0.0
    %v1591 = vadd.f32 %v1589, %v1590
    %v1592 = vrot.slane %v1591, 4
    %v1593 = vadd.f32 %v1591, %v1592
    %v1594 = vrot.slane %v1593, 2
    %v1595 = vadd.f32 %v1593, %v1594
    %v1596 = vrot.slane %v1595, 1
    %v1597 = vadd.f32 %v1595, %v1596
    %v1598 = vadd.f32 %v581, %v597
    %v1599 = vadd.f32 %v1598, %v613
    %v1600 = vadd.f32 %v1599, %v629
    %v1601 = vadd.f32 %v1600, %v645
    %v1602 = vadd.f32 %v1601, %v661
    %v1603 = vsel %vm1368, %v677, 0.0
    %v1604 = vadd.f32 %v1602, %v1603
    %v1605 = vrot.slane %v1604, 4
    %v1606 = vadd.f32 %v1604, %v1605
    %v1607 = vrot.slane %v1606, 2
    %v1608 = vadd.f32 %v1606, %v1607
    %v1609 = vrot.slane %v1608, 1
    %v1610 = vadd.f32 %v1608, %v1609
    %v1611 = vadd.f32 %v582, %v598
    %v1612 = vadd.f32 %v1611, %v614
    %v1613 = vadd.f32 %v1612, %v630
    %v1614 = vadd.f32 %v1613, %v646
    %v1615 = vadd.f32 %v1614, %v662
    %v1616 = vsel %vm1368, %v678, 0.0
    %v1617 = vadd.f32 %v1615, %v1616
    %v1618 = vrot.slane %v1617, 4
    %v1619 = vadd.f32 %v1617, %v1618
    %v1620 = vrot.slane %v1619, 2
    %v1621 = vadd.f32 %v1619, %v1620
    %v1622 = vrot.slane %v1621, 1
    %v1623 = vadd.f32 %v1621, %v1622
    %v1624 = vadd.f32 %v583, %v599
    %v1625 = vadd.f32 %v1624, %v615
    %v1626 = vadd.f32 %v1625, %v631
    %v1627 = vadd.f32 %v1626, %v647
    %v1628 = vadd.f32 %v1627, %v663
    %v1629 = vsel %vm1368, %v679, 0.0
    %v1630 = vadd.f32 %v1628, %v1629
    %v1631 = vrot.slane %v1630, 4
    %v1632 = vadd.f32 %v1630, %v1631
    %v1633 = vrot.slane %v1632, 2
    %v1634 = vadd.f32 %v1632, %v1633
    %v1635 = vrot.slane %v1634, 1
    %v1636 = vadd.f32 %v1634, %v1635
    %v1637 = vadd.f32 %v584, %v600
    %v1638 = vadd.f32 %v1637, %v616
    %v1639 = vadd.f32 %v1638, %v632
    %v1640 = vadd.f32 %v1639, %v648
    %v1641 = vadd.f32 %v1640, %v664
    %v1642 = vsel %vm1368, %v680, 0.0
    %v1643 = vadd.f32 %v1641, %v1642
    %v1644 = vrot.slane %v1643, 4
    %v1645 = vadd.f32 %v1643, %v1644
    %v1646 = vrot.slane %v1645, 2
    %v1647 = vadd.f32 %v1645, %v1646
    %v1648 = vrot.slane %v1647, 1
    %v1649 = vadd.f32 %v1647, %v1648
    %v1650 = vadd.f32 %v585, %v601
    %v1651 = vadd.f32 %v1650, %v617
    %v1652 = vadd.f32 %v1651, %v633
    %v1653 = vadd.f32 %v1652, %v649
    %v1654 = vadd.f32 %v1653, %v665
    %v1655 = vsel %vm1368, %v681, 0.0
    %v1656 = vadd.f32 %v1654, %v1655
    %v1657 = vrot.slane %v1656, 4
    %v1658 = vadd.f32 %v1656, %v1657
    %v1659 = vrot.slane %v1658, 2
    %v1660 = vadd.f32 %v1658, %v1659
    %v1661 = vrot.slane %v1660, 1
    %v1662 = vadd.f32 %v1660, %v1661
    %v1663 = vadd.f32 %v586, %v602
    %v1664 = vadd.f32 %v1663, %v618
    %v1665 = vadd.f32 %v1664, %v634
    %v1666 = vadd.f32 %v1665, %v650
    %v1667 = vadd.f32 %v1666, %v666
    %v1668 = vsel %vm1368, %v682, 0.0
    %v1669 = vadd.f32 %v1667, %v1668
    %v1670 = vrot.slane %v1669, 4
    %v1671 = vadd.f32 %v1669, %v1670
    %v1672 = vrot.slane %v1671, 2
    %v1673 = vadd.f32 %v1671, %v1672
    %v1674 = vrot.slane %v1673, 1
    %v1675 = vadd.f32 %v1673, %v1674
    %v1676 = vadd.f32 %v587, %v603
    %v1677 = vadd.f32 %v1676, %v619
    %v1678 = vadd.f32 %v1677, %v635
    %v1679 = vadd.f32 %v1678, %v651
    %v1680 = vadd.f32 %v1679, %v667
    %v1681 = vsel %vm1368, %v683, 0.0
    %v1682 = vadd.f32 %v1680, %v1681
    %v1683 = vrot.slane %v1682, 4
    %v1684 = vadd.f32 %v1682, %v1683
    %v1685 = vrot.slane %v1684, 2
    %v1686 = vadd.f32 %v1684, %v1685
    %v1687 = vrot.slane %v1686, 1
    %v1688 = vadd.f32 %v1686, %v1687
    %v1689 = vadd.f32 %v588, %v604
    %v1690 = vadd.f32 %v1689, %v620
    %v1691 = vadd.f32 %v1690, %v636
    %v1692 = vadd.f32 %v1691, %v652
    %v1693 = vadd.f32 %v1692, %v668
    %v1694 = vsel %vm1368, %v684, 0.0
    %v1695 = vadd.f32 %v1693, %v1694
    %v1696 = vrot.slane %v1695, 4
    %v1697 = vadd.f32 %v1695, %v1696
    %v1698 = vrot.slane %v1697, 2
    %v1699 = vadd.f32 %v1697, %v1698
    %v1700 = vrot.slane %v1699, 1
    %v1701 = vadd.f32 %v1699, %v1700
    %v1702 = vadd.f32 %v589, %v605
    %v1703 = vadd.f32 %v1702, %v621
    %v1704 = vadd.f32 %v1703, %v637
    %v1705 = vadd.f32 %v1704, %v653
    %v1706 = vadd.f32 %v1705, %v669
    %v1707 = vsel %vm1368, %v685, 0.0
    %v1708 = vadd.f32 %v1706, %v1707
    %v1709 = vrot.slane %v1708, 4
    %v1710 = vadd.f32 %v1708, %v1709
    %v1711 = vrot.slane %v1710, 2
    %v1712 = vadd.f32 %v1710, %v1711
    %v1713 = vrot.slane %v1712, 1
    %v1714 = vadd.f32 %v1712, %v1713
    %v1715 = vadd.f32 %v590, %v606
    %v1716 = vadd.f32 %v1715, %v622
    %v1717 = vadd.f32 %v1716, %v638
    %v1718 = vadd.f32 %v1717, %v654
    %v1719 = vadd.f32 %v1718, %v670
    %v1720 = vsel %vm1368, %v686, 0.0
    %v1721 = vadd.f32 %v1719, %v1720
    %v1722 = vrot.slane %v1721, 4
    %v1723 = vadd.f32 %v1721, %v1722
    %v1724 = vrot.slane %v1723, 2
    %v1725 = vadd.f32 %v1723, %v1724
    %v1726 = vrot.slane %v1725, 1
    %v1727 = vadd.f32 %v1725, %v1726
    %v1728 = vadd.f32 %v591, %v607
    %v1729 = vadd.f32 %v1728, %v623
    %v1730 = vadd.f32 %v1729, %v639
    %v1731 = vadd.f32 %v1730, %v655
    %v1732 = vadd.f32 %v1731, %v671
    %v1733 = vsel %vm1368, %v687, 0.0
    %v1734 = vadd.f32 %v1732, %v1733
    %v1735 = vrot.slane %v1734, 4
    %v1736 = vadd.f32 %v1734, %v1735
    %v1737 = vrot.slane %v1736, 2
    %v1738 = vadd.f32 %v1736, %v1737
    %v1739 = vrot.slane %v1738, 1
    %v1740 = vadd.f32 %v1738, %v1739
    %v1741 = vadd.f32 %v592, %v608
    %v1742 = vadd.f32 %v1741, %v624
    %v1743 = vadd.f32 %v1742, %v640
    %v1744 = vadd.f32 %v1743, %v656
    %v1745 = vadd.f32 %v1744, %v672
    %v1746 = vsel %vm1368, %v688, 0.0
    %v1747 = vadd.f32 %v1745, %v1746
    %v1748 = vrot.slane %v1747, 4
    %v1749 = vadd.f32 %v1747, %v1748
    %v1750 = vrot.slane %v1749, 2
    %v1751 = vadd.f32 %v1749, %v1750
    %v1752 = vrot.slane %v1751, 1
    %v1753 = vadd.f32 %v1751, %v1752
    %v1754 = vadd.f32 %v593, %v609
    %v1755 = vadd.f32 %v1754, %v625
    %v1756 = vadd.f32 %v1755, %v641
    %v1757 = vadd.f32 %v1756, %v657
    %v1758 = vadd.f32 %v1757, %v673
    %v1759 = vsel %vm1368, %v689, 0.0
    %v1760 = vadd.f32 %v1758, %v1759
    %v1761 = vrot.slane %v1760, 4
    %v1762 = vadd.f32 %v1760, %v1761
    %v1763 = vrot.slane %v1762, 2
    %v1764 = vadd.f32 %v1762, %v1763
    %v1765 = vrot.slane %v1764, 1
    %v1766 = vadd.f32 %v1764, %v1765
    %v1767 = vadd.f32 %v594, %v610
    %v1768 = vadd.f32 %v1767, %v626
    %v1769 = vadd.f32 %v1768, %v642
    %v1770 = vadd.f32 %v1769, %v658
    %v1771 = vadd.f32 %v1770, %v674
    %v1772 = vsel %vm1368, %v690, 0.0
    %v1773 = vadd.f32 %v1771, %v1772
    %v1774 = vrot.slane %v1773, 4
    %v1775 = vadd.f32 %v1773, %v1774
    %v1776 = vrot.slane %v1775, 2
    %v1777 = vadd.f32 %v1775, %v1776
    %v1778 = vrot.slane %v1777, 1
    %v1779 = vadd.f32 %v1777, %v1778
    %v1780 = vadd.f32 %v691, %v707
    %v1781 = vadd.f32 %v1780, %v723
    %v1782 = vadd.f32 %v1781, %v739
    %v1783 = vadd.f32 %v1782, %v755
    %v1784 = vadd.f32 %v1783, %v771
    %v1785 = vsel %vm1368, %v787, 0.0
    %v1786 = vadd.f32 %v1784, %v1785
    %v1787 = vrot.slane %v1786, 4
    %v1788 = vadd.f32 %v1786, %v1787
    %v1789 = vrot.slane %v1788, 2
    %v1790 = vadd.f32 %v1788, %v1789
    %v1791 = vrot.slane %v1790, 1
    %v1792 = vadd.f32 %v1790, %v1791
    %v1793 = vadd.f32 %v692, %v708
    %v1794 = vadd.f32 %v1793, %v724
    %v1795 = vadd.f32 %v1794, %v740
    %v1796 = vadd.f32 %v1795, %v756
    %v1797 = vadd.f32 %v1796, %v772
    %v1798 = vsel %vm1368, %v788, 0.0
    %v1799 = vadd.f32 %v1797, %v1798
    %v1800 = vrot.slane %v1799, 4
    %v1801 = vadd.f32 %v1799, %v1800
    %v1802 = vrot.slane %v1801, 2
    %v1803 = vadd.f32 %v1801, %v1802
    %v1804 = vrot.slane %v1803, 1
    %v1805 = vadd.f32 %v1803, %v1804
    %v1806 = vadd.f32 %v693, %v709
    %v1807 = vadd.f32 %v1806, %v725
    %v1808 = vadd.f32 %v1807, %v741
    %v1809 = vadd.f32 %v1808, %v757
    %v1810 = vadd.f32 %v1809, %v773
    %v1811 = vsel %vm1368, %v789, 0.0
    %v1812 = vadd.f32 %v1810, %v1811
    %v1813 = vrot.slane %v1812, 4
    %v1814 = vadd.f32 %v1812, %v1813
    %v1815 = vrot.slane %v1814, 2
    %v1816 = vadd.f32 %v1814, %v1815
    %v1817 = vrot.slane %v1816, 1
    %v1818 = vadd.f32 %v1816, %v1817
    %v1819 = vadd.f32 %v694, %v710
    %v1820 = vadd.f32 %v1819, %v726
    %v1821 = vadd.f32 %v1820, %v742
    %v1822 = vadd.f32 %v1821, %v758
    %v1823 = vadd.f32 %v1822, %v774
    %v1824 = vsel %vm1368, %v790, 0.0
    %v1825 = vadd.f32 %v1823, %v1824
    %v1826 = vrot.slane %v1825, 4
    %v1827 = vadd.f32 %v1825, %v1826
    %v1828 = vrot.slane %v1827, 2
    %v1829 = vadd.f32 %v1827, %v1828
    %v1830 = vrot.slane %v1829, 1
    %v1831 = vadd.f32 %v1829, %v1830
    %v1832 = vadd.f32 %v695, %v711
    %v1833 = vadd.f32 %v1832, %v727
    %v1834 = vadd.f32 %v1833, %v743
    %v1835 = vadd.f32 %v1834, %v759
    %v1836 = vadd.f32 %v1835, %v775
    %v1837 = vsel %vm1368, %v791, 0.0
    %v1838 = vadd.f32 %v1836, %v1837
    %v1839 = vrot.slane %v1838, 4
    %v1840 = vadd.f32 %v1838, %v1839
    %v1841 = vrot.slane %v1840, 2
    %v1842 = vadd.f32 %v1840, %v1841
    %v1843 = vrot.slane %v1842, 1
    %v1844 = vadd.f32 %v1842, %v1843
    %v1845 = vadd.f32 %v696, %v712
    %v1846 = vadd.f32 %v1845, %v728
    %v1847 = vadd.f32 %v1846, %v744
    %v1848 = vadd.f32 %v1847, %v760
    %v1849 = vadd.f32 %v1848, %v776
    %v1850 = vsel %vm1368, %v792, 0.0
    %v1851 = vadd.f32 %v1849, %v1850
    %v1852 = vrot.slane %v1851, 4
    %v1853 = vadd.f32 %v1851, %v1852
    %v1854 = vrot.slane %v1853, 2
    %v1855 = vadd.f32 %v1853, %v1854
    %v1856 = vrot.slane %v1855, 1
    %v1857 = vadd.f32 %v1855, %v1856
    %v1858 = vadd.f32 %v697, %v713
    %v1859 = vadd.f32 %v1858, %v729
    %v1860 = vadd.f32 %v1859, %v745
    %v1861 = vadd.f32 %v1860, %v761
    %v1862 = vadd.f32 %v1861, %v777
    %v1863 = vsel %vm1368, %v793, 0.0
    %v1864 = vadd.f32 %v1862, %v1863
    %v1865 = vrot.slane %v1864, 4
    %v1866 = vadd.f32 %v1864, %v1865
    %v1867 = vrot.slane %v1866, 2
    %v1868 = vadd.f32 %v1866, %v1867
    %v1869 = vrot.slane %v1868, 1
    %v1870 = vadd.f32 %v1868, %v1869
    %v1871 = vadd.f32 %v698, %v714
    %v1872 = vadd.f32 %v1871, %v730
    %v1873 = vadd.f32 %v1872, %v746
    %v1874 = vadd.f32 %v1873, %v762
    %v1875 = vadd.f32 %v1874, %v778
    %v1876 = vsel %vm1368, %v794, 0.0
    %v1877 = vadd.f32 %v1875, %v1876
    %v1878 = vrot.slane %v1877, 4
    %v1879 = vadd.f32 %v1877, %v1878
    %v1880 = vrot.slane %v1879, 2
    %v1881 = vadd.f32 %v1879, %v1880
    %v1882 = vrot.slane %v1881, 1
    %v1883 = vadd.f32 %v1881, %v1882
    %v1884 = vadd.f32 %v699, %v715
    %v1885 = vadd.f32 %v1884, %v731
    %v1886 = vadd.f32 %v1885, %v747
    %v1887 = vadd.f32 %v1886, %v763
    %v1888 = vadd.f32 %v1887, %v779
    %v1889 = vsel %vm1368, %v795, 0.0
    %v1890 = vadd.f32 %v1888, %v1889
    %v1891 = vrot.slane %v1890, 4
    %v1892 = vadd.f32 %v1890, %v1891
    %v1893 = vrot.slane %v1892, 2
    %v1894 = vadd.f32 %v1892, %v1893
    %v1895 = vrot.slane %v1894, 1
    %v1896 = vadd.f32 %v1894, %v1895
    %v1897 = vadd.f32 %v700, %v716
    %v1898 = vadd.f32 %v1897, %v732
    %v1899 = vadd.f32 %v1898, %v748
    %v1900 = vadd.f32 %v1899, %v764
    %v1901 = vadd.f32 %v1900, %v780
    %v1902 = vsel %vm1368, %v796, 0.0
    %v1903 = vadd.f32 %v1901, %v1902
    %v1904 = vrot.slane %v1903, 4
    %v1905 = vadd.f32 %v1903, %v1904
    %v1906 = vrot.slane %v1905, 2
    %v1907 = vadd.f32 %v1905, %v1906
    %v1908 = vrot.slane %v1907, 1
    %v1909 = vadd.f32 %v1907, %v1908
    %v1910 = vadd.f32 %v701, %v717
    %v1911 = vadd.f32 %v1910, %v733
    %v1912 = vadd.f32 %v1911, %v749
    %v1913 = vadd.f32 %v1912, %v765
    %v1914 = vadd.f32 %v1913, %v781
    %v1915 = vsel %vm1368, %v797, 0.0
    %v1916 = vadd.f32 %v1914, %v1915
    %v1917 = vrot.slane %v1916, 4
    %v1918 = vadd.f32 %v1916, %v1917
    %v1919 = vrot.slane %v1918, 2
    %v1920 = vadd.f32 %v1918, %v1919
    %v1921 = vrot.slane %v1920, 1
    %v1922 = vadd.f32 %v1920, %v1921
    %v1923 = vadd.f32 %v702, %v718
    %v1924 = vadd.f32 %v1923, %v734
    %v1925 = vadd.f32 %v1924, %v750
    %v1926 = vadd.f32 %v1925, %v766
    %v1927 = vadd.f32 %v1926, %v782
    %v1928 = vsel %vm1368, %v798, 0.0
    %v1929 = vadd.f32 %v1927, %v1928
    %v1930 = vrot.slane %v1929, 4
    %v1931 = vadd.f32 %v1929, %v1930
    %v1932 = vrot.slane %v1931, 2
    %v1933 = vadd.f32 %v1931, %v1932
    %v1934 = vrot.slane %v1933, 1
    %v1935 = vadd.f32 %v1933, %v1934
    %v1936 = vadd.f32 %v703, %v719
    %v1937 = vadd.f32 %v1936, %v735
    %v1938 = vadd.f32 %v1937, %v751
    %v1939 = vadd.f32 %v1938, %v767
    %v1940 = vadd.f32 %v1939, %v783
    %v1941 = vsel %vm1368, %v799, 0.0
    %v1942 = vadd.f32 %v1940, %v1941
    %v1943 = vrot.slane %v1942, 4
    %v1944 = vadd.f32 %v1942, %v1943
    %v1945 = vrot.slane %v1944, 2
    %v1946 = vadd.f32 %v1944, %v1945
    %v1947 = vrot.slane %v1946, 1
    %v1948 = vadd.f32 %v1946, %v1947
    %v1949 = vadd.f32 %v704, %v720
    %v1950 = vadd.f32 %v1949, %v736
    %v1951 = vadd.f32 %v1950, %v752
    %v1952 = vadd.f32 %v1951, %v768
    %v1953 = vadd.f32 %v1952, %v784
    %v1954 = vsel %vm1368, %v800, 0.0
    %v1955 = vadd.f32 %v1953, %v1954
    %v1956 = vrot.slane %v1955, 4
    %v1957 = vadd.f32 %v1955, %v1956
    %v1958 = vrot.slane %v1957, 2
    %v1959 = vadd.f32 %v1957, %v1958
    %v1960 = vrot.slane %v1959, 1
    %v1961 = vadd.f32 %v1959, %v1960
    %v1962 = vadd.f32 %v705, %v721
    %v1963 = vadd.f32 %v1962, %v737
    %v1964 = vadd.f32 %v1963, %v753
    %v1965 = vadd.f32 %v1964, %v769
    %v1966 = vadd.f32 %v1965, %v785
    %v1967 = vsel %vm1368, %v801, 0.0
    %v1968 = vadd.f32 %v1966, %v1967
    %v1969 = vrot.slane %v1968, 4
    %v1970 = vadd.f32 %v1968, %v1969
    %v1971 = vrot.slane %v1970, 2
    %v1972 = vadd.f32 %v1970, %v1971
    %v1973 = vrot.slane %v1972, 1
    %v1974 = vadd.f32 %v1972, %v1973
    %v1975 = vadd.f32 %v706, %v722
    %v1976 = vadd.f32 %v1975, %v738
    %v1977 = vadd.f32 %v1976, %v754
    %v1978 = vadd.f32 %v1977, %v770
    %v1979 = vadd.f32 %v1978, %v786
    %v1980 = vsel %vm1368, %v802, 0.0
    %v1981 = vadd.f32 %v1979, %v1980
    %v1982 = vrot.slane %v1981, 4
    %v1983 = vadd.f32 %v1981, %v1982
    %v1984 = vrot.slane %v1983, 2
    %v1985 = vadd.f32 %v1983, %v1984
    %v1986 = vrot.slane %v1985, 1
    %v1987 = vadd.f32 %v1985, %v1986
    %v1988 = vadd.f32 %v803, %v819
    %v1989 = vadd.f32 %v1988, %v835
    %v1990 = vadd.f32 %v1989, %v851
    %v1991 = vadd.f32 %v1990, %v867
    %v1992 = vadd.f32 %v1991, %v883
    %v1993 = vsel %vm1368, %v899, 0.0
    %v1994 = vadd.f32 %v1992, %v1993
    %v1995 = vrot.slane %v1994, 4
    %v1996 = vadd.f32 %v1994, %v1995
    %v1997 = vrot.slane %v1996, 2
    %v1998 = vadd.f32 %v1996, %v1997
    %v1999 = vrot.slane %v1998, 1
    %v2000 = vadd.f32 %v1998, %v1999
    %v2001 = vadd.f32 %v804, %v820
    %v2002 = vadd.f32 %v2001, %v836
    %v2003 = vadd.f32 %v2002, %v852
    %v2004 = vadd.f32 %v2003, %v868
    %v2005 = vadd.f32 %v2004, %v884
    %v2006 = vsel %vm1368, %v900, 0.0
    %v2007 = vadd.f32 %v2005, %v2006
    %v2008 = vrot.slane %v2007, 4
    %v2009 = vadd.f32 %v2007, %v2008
    %v2010 = vrot.slane %v2009, 2
    %v2011 = vadd.f32 %v2009, %v2010
    %v2012 = vrot.slane %v2011, 1
    %v2013 = vadd.f32 %v2011, %v2012
    %v2014 = vadd.f32 %v805, %v821
    %v2015 = vadd.f32 %v2014, %v837
    %v2016 = vadd.f32 %v2015, %v853
    %v2017 = vadd.f32 %v2016, %v869
    %v2018 = vadd.f32 %v2017, %v885
    %v2019 = vsel %vm1368, %v901, 0.0
    %v2020 = vadd.f32 %v2018, %v2019
    %v2021 = vrot.slane %v2020, 4
    %v2022 = vadd.f32 %v2020, %v2021
    %v2023 = vrot.slane %v2022, 2
    %v2024 = vadd.f32 %v2022, %v2023
    %v2025 = vrot.slane %v2024, 1
    %v2026 = vadd.f32 %v2024, %v2025
    %v2027 = vadd.f32 %v806, %v822
    %v2028 = vadd.f32 %v2027, %v838
    %v2029 = vadd.f32 %v2028, %v854
    %v2030 = vadd.f32 %v2029, %v870
    %v2031 = vadd.f32 %v2030, %v886
    %v2032 = vsel %vm1368, %v902, 0.0
    %v2033 = vadd.f32 %v2031, %v2032
    %v2034 = vrot.slane %v2033, 4
    %v2035 = vadd.f32 %v2033, %v2034
    %v2036 = vrot.slane %v2035, 2
    %v2037 = vadd.f32 %v2035, %v2036
    %v2038 = vrot.slane %v2037, 1
    %v2039 = vadd.f32 %v2037, %v2038
    %v2040 = vadd.f32 %v807, %v823
    %v2041 = vadd.f32 %v2040, %v839
    %v2042 = vadd.f32 %v2041, %v855
    %v2043 = vadd.f32 %v2042, %v871
    %v2044 = vadd.f32 %v2043, %v887
    %v2045 = vsel %vm1368, %v903, 0.0
    %v2046 = vadd.f32 %v2044, %v2045
    %v2047 = vrot.slane %v2046, 4
    %v2048 = vadd.f32 %v2046, %v2047
    %v2049 = vrot.slane %v2048, 2
    %v2050 = vadd.f32 %v2048, %v2049
    %v2051 = vrot.slane %v2050, 1
    %v2052 = vadd.f32 %v2050, %v2051
    %v2053 = vadd.f32 %v808, %v824
    %v2054 = vadd.f32 %v2053, %v840
    %v2055 = vadd.f32 %v2054, %v856
    %v2056 = vadd.f32 %v2055, %v872
    %v2057 = vadd.f32 %v2056, %v888
    %v2058 = vsel %vm1368, %v904, 0.0
    %v2059 = vadd.f32 %v2057, %v2058
    %v2060 = vrot.slane %v2059, 4
    %v2061 = vadd.f32 %v2059, %v2060
    %v2062 = vrot.slane %v2061, 2
    %v2063 = vadd.f32 %v2061, %v2062
    %v2064 = vrot.slane %v2063, 1
    %v2065 = vadd.f32 %v2063, %v2064
    %v2066 = vadd.f32 %v809, %v825
    %v2067 = vadd.f32 %v2066, %v841
    %v2068 = vadd.f32 %v2067, %v857
    %v2069 = vadd.f32 %v2068, %v873
    %v2070 = vadd.f32 %v2069, %v889
    %v2071 = vsel %vm1368, %v905, 0.0
    %v2072 = vadd.f32 %v2070, %v2071
    %v2073 = vrot.slane %v2072, 4
    %v2074 = vadd.f32 %v2072, %v2073
    %v2075 = vrot.slane %v2074, 2
    %v2076 = vadd.f32 %v2074, %v2075
    %v2077 = vrot.slane %v2076, 1
    %v2078 = vadd.f32 %v2076, %v2077
    %v2079 = vadd.f32 %v810, %v826
    %v2080 = vadd.f32 %v2079, %v842
    %v2081 = vadd.f32 %v2080, %v858
    %v2082 = vadd.f32 %v2081, %v874
    %v2083 = vadd.f32 %v2082, %v890
    %v2084 = vsel %vm1368, %v906, 0.0
    %v2085 = vadd.f32 %v2083, %v2084
    %v2086 = vrot.slane %v2085, 4
    %v2087 = vadd.f32 %v2085, %v2086
    %v2088 = vrot.slane %v2087, 2
    %v2089 = vadd.f32 %v2087, %v2088
    %v2090 = vrot.slane %v2089, 1
    %v2091 = vadd.f32 %v2089, %v2090
    %v2092 = vadd.f32 %v811, %v827
    %v2093 = vadd.f32 %v2092, %v843
    %v2094 = vadd.f32 %v2093, %v859
    %v2095 = vadd.f32 %v2094, %v875
    %v2096 = vadd.f32 %v2095, %v891
    %v2097 = vsel %vm1368, %v907, 0.0
    %v2098 = vadd.f32 %v2096, %v2097
    %v2099 = vrot.slane %v2098, 4
    %v2100 = vadd.f32 %v2098, %v2099
    %v2101 = vrot.slane %v2100, 2
    %v2102 = vadd.f32 %v2100, %v2101
    %v2103 = vrot.slane %v2102, 1
    %v2104 = vadd.f32 %v2102, %v2103
    %v2105 = vadd.f32 %v812, %v828
    %v2106 = vadd.f32 %v2105, %v844
    %v2107 = vadd.f32 %v2106, %v860
    %v2108 = vadd.f32 %v2107, %v876
    %v2109 = vadd.f32 %v2108, %v892
    %v2110 = vsel %vm1368, %v908, 0.0
    %v2111 = vadd.f32 %v2109, %v2110
    %v2112 = vrot.slane %v2111, 4
    %v2113 = vadd.f32 %v2111, %v2112
    %v2114 = vrot.slane %v2113, 2
    %v2115 = vadd.f32 %v2113, %v2114
    %v2116 = vrot.slane %v2115, 1
    %v2117 = vadd.f32 %v2115, %v2116
    %v2118 = vadd.f32 %v813, %v829
    %v2119 = vadd.f32 %v2118, %v845
    %v2120 = vadd.f32 %v2119, %v861
    %v2121 = vadd.f32 %v2120, %v877
    %v2122 = vadd.f32 %v2121, %v893
    %v2123 = vsel %vm1368, %v909, 0.0
    %v2124 = vadd.f32 %v2122, %v2123
    %v2125 = vrot.slane %v2124, 4
    %v2126 = vadd.f32 %v2124, %v2125
    %v2127 = vrot.slane %v2126, 2
    %v2128 = vadd.f32 %v2126, %v2127
    %v2129 = vrot.slane %v2128, 1
    %v2130 = vadd.f32 %v2128, %v2129
    %v2131 = vadd.f32 %v814, %v830
    %v2132 = vadd.f32 %v2131, %v846
    %v2133 = vadd.f32 %v2132, %v862
    %v2134 = vadd.f32 %v2133, %v878
    %v2135 = vadd.f32 %v2134, %v894
    %v2136 = vsel %vm1368, %v910, 0.0
    %v2137 = vadd.f32 %v2135, %v2136
    %v2138 = vrot.slane %v2137, 4
    %v2139 = vadd.f32 %v2137, %v2138
    %v2140 = vrot.slane %v2139, 2
    %v2141 = vadd.f32 %v2139, %v2140
    %v2142 = vrot.slane %v2141, 1
    %v2143 = vadd.f32 %v2141, %v2142
    %v2144 = vadd.f32 %v815, %v831
    %v2145 = vadd.f32 %v2144, %v847
    %v2146 = vadd.f32 %v2145, %v863
    %v2147 = vadd.f32 %v2146, %v879
    %v2148 = vadd.f32 %v2147, %v895
    %v2149 = vsel %vm1368, %v911, 0.0
    %v2150 = vadd.f32 %v2148, %v2149
    %v2151 = vrot.slane %v2150, 4
    %v2152 = vadd.f32 %v2150, %v2151
    %v2153 = vrot.slane %v2152, 2
    %v2154 = vadd.f32 %v2152, %v2153
    %v2155 = vrot.slane %v2154, 1
    %v2156 = vadd.f32 %v2154, %v2155
    %v2157 = vadd.f32 %v816, %v832
    %v2158 = vadd.f32 %v2157, %v848
    %v2159 = vadd.f32 %v2158, %v864
    %v2160 = vadd.f32 %v2159, %v880
    %v2161 = vadd.f32 %v2160, %v896
    %v2162 = vsel %vm1368, %v912, 0.0
    %v2163 = vadd.f32 %v2161, %v2162
    %v2164 = vrot.slane %v2163, 4
    %v2165 = vadd.f32 %v2163, %v2164
    %v2166 = vrot.slane %v2165, 2
    %v2167 = vadd.f32 %v2165, %v2166
    %v2168 = vrot.slane %v2167, 1
    %v2169 = vadd.f32 %v2167, %v2168
    %v2170 = vadd.f32 %v817, %v833
    %v2171 = vadd.f32 %v2170, %v849
    %v2172 = vadd.f32 %v2171, %v865
    %v2173 = vadd.f32 %v2172, %v881
    %v2174 = vadd.f32 %v2173, %v897
    %v2175 = vsel %vm1368, %v913, 0.0
    %v2176 = vadd.f32 %v2174, %v2175
    %v2177 = vrot.slane %v2176, 4
    %v2178 = vadd.f32 %v2176, %v2177
    %v2179 = vrot.slane %v2178, 2
    %v2180 = vadd.f32 %v2178, %v2179
    %v2181 = vrot.slane %v2180, 1
    %v2182 = vadd.f32 %v2180, %v2181
    %v2183 = vadd.f32 %v818, %v834
    %v2184 = vadd.f32 %v2183, %v850
    %v2185 = vadd.f32 %v2184, %v866
    %v2186 = vadd.f32 %v2185, %v882
    %v2187 = vadd.f32 %v2186, %v898
    %v2188 = vsel %vm1368, %v914, 0.0
    %v2189 = vadd.f32 %v2187, %v2188
    %v2190 = vrot.slane %v2189, 4
    %v2191 = vadd.f32 %v2189, %v2190
    %v2192 = vrot.slane %v2191, 2
    %v2193 = vadd.f32 %v2191, %v2192
    %v2194 = vrot.slane %v2193, 1
    %v2195 = vadd.f32 %v2193, %v2194
    %v2196 = vadd.f32 %v915, %v931
    %v2197 = vadd.f32 %v2196, %v947
    %v2198 = vadd.f32 %v2197, %v963
    %v2199 = vadd.f32 %v2198, %v979
    %v2200 = vadd.f32 %v2199, %v995
    %v2201 = vsel %vm1368, %v1011, 0.0
    %v2202 = vadd.f32 %v2200, %v2201
    %v2203 = vrot.slane %v2202, 4
    %v2204 = vadd.f32 %v2202, %v2203
    %v2205 = vrot.slane %v2204, 2
    %v2206 = vadd.f32 %v2204, %v2205
    %v2207 = vrot.slane %v2206, 1
    %v2208 = vadd.f32 %v2206, %v2207
    %v2209 = vadd.f32 %v916, %v932
    %v2210 = vadd.f32 %v2209, %v948
    %v2211 = vadd.f32 %v2210, %v964
    %v2212 = vadd.f32 %v2211, %v980
    %v2213 = vadd.f32 %v2212, %v996
    %v2214 = vsel %vm1368, %v1012, 0.0
    %v2215 = vadd.f32 %v2213, %v2214
    %v2216 = vrot.slane %v2215, 4
    %v2217 = vadd.f32 %v2215, %v2216
    %v2218 = vrot.slane %v2217, 2
    %v2219 = vadd.f32 %v2217, %v2218
    %v2220 = vrot.slane %v2219, 1
    %v2221 = vadd.f32 %v2219, %v2220
    %v2222 = vadd.f32 %v917, %v933
    %v2223 = vadd.f32 %v2222, %v949
    %v2224 = vadd.f32 %v2223, %v965
    %v2225 = vadd.f32 %v2224, %v981
    %v2226 = vadd.f32 %v2225, %v997
    %v2227 = vsel %vm1368, %v1013, 0.0
    %v2228 = vadd.f32 %v2226, %v2227
    %v2229 = vrot.slane %v2228, 4
    %v2230 = vadd.f32 %v2228, %v2229
    %v2231 = vrot.slane %v2230, 2
    %v2232 = vadd.f32 %v2230, %v2231
    %v2233 = vrot.slane %v2232, 1
    %v2234 = vadd.f32 %v2232, %v2233
    %v2235 = vadd.f32 %v918, %v934
    %v2236 = vadd.f32 %v2235, %v950
    %v2237 = vadd.f32 %v2236, %v966
    %v2238 = vadd.f32 %v2237, %v982
    %v2239 = vadd.f32 %v2238, %v998
    %v2240 = vsel %vm1368, %v1014, 0.0
    %v2241 = vadd.f32 %v2239, %v2240
    %v2242 = vrot.slane %v2241, 4
    %v2243 = vadd.f32 %v2241, %v2242
    %v2244 = vrot.slane %v2243, 2
    %v2245 = vadd.f32 %v2243, %v2244
    %v2246 = vrot.slane %v2245, 1
    %v2247 = vadd.f32 %v2245, %v2246
    %v2248 = vadd.f32 %v919, %v935
    %v2249 = vadd.f32 %v2248, %v951
    %v2250 = vadd.f32 %v2249, %v967
    %v2251 = vadd.f32 %v2250, %v983
    %v2252 = vadd.f32 %v2251, %v999
    %v2253 = vsel %vm1368, %v1015, 0.0
    %v2254 = vadd.f32 %v2252, %v2253
    %v2255 = vrot.slane %v2254, 4
    %v2256 = vadd.f32 %v2254, %v2255
    %v2257 = vrot.slane %v2256, 2
    %v2258 = vadd.f32 %v2256, %v2257
    %v2259 = vrot.slane %v2258, 1
    %v2260 = vadd.f32 %v2258, %v2259
    %v2261 = vadd.f32 %v920, %v936
    %v2262 = vadd.f32 %v2261, %v952
    %v2263 = vadd.f32 %v2262, %v968
    %v2264 = vadd.f32 %v2263, %v984
    %v2265 = vadd.f32 %v2264, %v1000
    %v2266 = vsel %vm1368, %v1016, 0.0
    %v2267 = vadd.f32 %v2265, %v2266
    %v2268 = vrot.slane %v2267, 4
    %v2269 = vadd.f32 %v2267, %v2268
    %v2270 = vrot.slane %v2269, 2
    %v2271 = vadd.f32 %v2269, %v2270
    %v2272 = vrot.slane %v2271, 1
    %v2273 = vadd.f32 %v2271, %v2272
    %v2274 = vadd.f32 %v921, %v937
    %v2275 = vadd.f32 %v2274, %v953
    %v2276 = vadd.f32 %v2275, %v969
    %v2277 = vadd.f32 %v2276, %v985
    %v2278 = vadd.f32 %v2277, %v1001
    %v2279 = vsel %vm1368, %v1017, 0.0
    %v2280 = vadd.f32 %v2278, %v2279
    %v2281 = vrot.slane %v2280, 4
    %v2282 = vadd.f32 %v2280, %v2281
    %v2283 = vrot.slane %v2282, 2
    %v2284 = vadd.f32 %v2282, %v2283
    %v2285 = vrot.slane %v2284, 1
    %v2286 = vadd.f32 %v2284, %v2285
    %v2287 = vadd.f32 %v922, %v938
    %v2288 = vadd.f32 %v2287, %v954
    %v2289 = vadd.f32 %v2288, %v970
    %v2290 = vadd.f32 %v2289, %v986
    %v2291 = vadd.f32 %v2290, %v1002
    %v2292 = vsel %vm1368, %v1018, 0.0
    %v2293 = vadd.f32 %v2291, %v2292
    %v2294 = vrot.slane %v2293, 4
    %v2295 = vadd.f32 %v2293, %v2294
    %v2296 = vrot.slane %v2295, 2
    %v2297 = vadd.f32 %v2295, %v2296
    %v2298 = vrot.slane %v2297, 1
    %v2299 = vadd.f32 %v2297, %v2298
    %v2300 = vadd.f32 %v923, %v939
    %v2301 = vadd.f32 %v2300, %v955
    %v2302 = vadd.f32 %v2301, %v971
    %v2303 = vadd.f32 %v2302, %v987
    %v2304 = vadd.f32 %v2303, %v1003
    %v2305 = vsel %vm1368, %v1019, 0.0
    %v2306 = vadd.f32 %v2304, %v2305
    %v2307 = vrot.slane %v2306, 4
    %v2308 = vadd.f32 %v2306, %v2307
    %v2309 = vrot.slane %v2308, 2
    %v2310 = vadd.f32 %v2308, %v2309
    %v2311 = vrot.slane %v2310, 1
    %v2312 = vadd.f32 %v2310, %v2311
    %v2313 = vadd.f32 %v924, %v940
    %v2314 = vadd.f32 %v2313, %v956
    %v2315 = vadd.f32 %v2314, %v972
    %v2316 = vadd.f32 %v2315, %v988
    %v2317 = vadd.f32 %v2316, %v1004
    %v2318 = vsel %vm1368, %v1020, 0.0
    %v2319 = vadd.f32 %v2317, %v2318
    %v2320 = vrot.slane %v2319, 4
    %v2321 = vadd.f32 %v2319, %v2320
    %v2322 = vrot.slane %v2321, 2
    %v2323 = vadd.f32 %v2321, %v2322
    %v2324 = vrot.slane %v2323, 1
    %v2325 = vadd.f32 %v2323, %v2324
    %v2326 = vadd.f32 %v925, %v941
    %v2327 = vadd.f32 %v2326, %v957
    %v2328 = vadd.f32 %v2327, %v973
    %v2329 = vadd.f32 %v2328, %v989
    %v2330 = vadd.f32 %v2329, %v1005
    %v2331 = vsel %vm1368, %v1021, 0.0
    %v2332 = vadd.f32 %v2330, %v2331
    %v2333 = vrot.slane %v2332, 4
    %v2334 = vadd.f32 %v2332, %v2333
    %v2335 = vrot.slane %v2334, 2
    %v2336 = vadd.f32 %v2334, %v2335
    %v2337 = vrot.slane %v2336, 1
    %v2338 = vadd.f32 %v2336, %v2337
    %v2339 = vadd.f32 %v926, %v942
    %v2340 = vadd.f32 %v2339, %v958
    %v2341 = vadd.f32 %v2340, %v974
    %v2342 = vadd.f32 %v2341, %v990
    %v2343 = vadd.f32 %v2342, %v1006
    %v2344 = vsel %vm1368, %v1022, 0.0
    %v2345 = vadd.f32 %v2343, %v2344
    %v2346 = vrot.slane %v2345, 4
    %v2347 = vadd.f32 %v2345, %v2346
    %v2348 = vrot.slane %v2347, 2
    %v2349 = vadd.f32 %v2347, %v2348
    %v2350 = vrot.slane %v2349, 1
    %v2351 = vadd.f32 %v2349, %v2350
    %v2352 = vadd.f32 %v927, %v943
    %v2353 = vadd.f32 %v2352, %v959
    %v2354 = vadd.f32 %v2353, %v975
    %v2355 = vadd.f32 %v2354, %v991
    %v2356 = vadd.f32 %v2355, %v1007
    %v2357 = vsel %vm1368, %v1023, 0.0
    %v2358 = vadd.f32 %v2356, %v2357
    %v2359 = vrot.slane %v2358, 4
    %v2360 = vadd.f32 %v2358, %v2359
    %v2361 = vrot.slane %v2360, 2
    %v2362 = vadd.f32 %v2360, %v2361
    %v2363 = vrot.slane %v2362, 1
    %v2364 = vadd.f32 %v2362, %v2363
    %v2365 = vadd.f32 %v928, %v944
    %v2366 = vadd.f32 %v2365, %v960
    %v2367 = vadd.f32 %v2366, %v976
    %v2368 = vadd.f32 %v2367, %v992
    %v2369 = vadd.f32 %v2368, %v1008
    %v2370 = vsel %vm1368, %v1024, 0.0
    %v2371 = vadd.f32 %v2369, %v2370
    %v2372 = vrot.slane %v2371, 4
    %v2373 = vadd.f32 %v2371, %v2372
    %v2374 = vrot.slane %v2373, 2
    %v2375 = vadd.f32 %v2373, %v2374
    %v2376 = vrot.slane %v2375, 1
    %v2377 = vadd.f32 %v2375, %v2376
    %v2378 = vadd.f32 %v929, %v945
    %v2379 = vadd.f32 %v2378, %v961
    %v2380 = vadd.f32 %v2379, %v977
    %v2381 = vadd.f32 %v2380, %v993
    %v2382 = vadd.f32 %v2381, %v1009
    %v2383 = vsel %vm1368, %v1025, 0.0
    %v2384 = vadd.f32 %v2382, %v2383
    %v2385 = vrot.slane %v2384, 4
    %v2386 = vadd.f32 %v2384, %v2385
    %v2387 = vrot.slane %v2386, 2
    %v2388 = vadd.f32 %v2386, %v2387
    %v2389 = vrot.slane %v2388, 1
    %v2390 = vadd.f32 %v2388, %v2389
    %v2391 = vadd.f32 %v930, %v946
    %v2392 = vadd.f32 %v2391, %v962
    %v2393 = vadd.f32 %v2392, %v978
    %v2394 = vadd.f32 %v2393, %v994
    %v2395 = vadd.f32 %v2394, %v1010
    %v2396 = vsel %vm1368, %v1026, 0.0
    %v2397 = vadd.f32 %v2395, %v2396
    %v2398 = vrot.slane %v2397, 4
    %v2399 = vadd.f32 %v2397, %v2398
    %v2400 = vrot.slane %v2399, 2
    %v2401 = vadd.f32 %v2399, %v2400
    %v2402 = vrot.slane %v2401, 1
    %v2403 = vadd.f32 %v2401, %v2402
    %v2404 = vadd.f32 %v1027, %v1043
    %v2405 = vadd.f32 %v2404, %v1059
    %v2406 = vadd.f32 %v2405, %v1075
    %v2407 = vadd.f32 %v2406, %v1091
    %v2408 = vadd.f32 %v2407, %v1107
    %v2409 = vsel %vm1368, %v1123, 0.0
    %v2410 = vadd.f32 %v2408, %v2409
    %v2411 = vrot.slane %v2410, 4
    %v2412 = vadd.f32 %v2410, %v2411
    %v2413 = vrot.slane %v2412, 2
    %v2414 = vadd.f32 %v2412, %v2413
    %v2415 = vrot.slane %v2414, 1
    %v2416 = vadd.f32 %v2414, %v2415
    %v2417 = vadd.f32 %v1028, %v1044
    %v2418 = vadd.f32 %v2417, %v1060
    %v2419 = vadd.f32 %v2418, %v1076
    %v2420 = vadd.f32 %v2419, %v1092
    %v2421 = vadd.f32 %v2420, %v1108
    %v2422 = vsel %vm1368, %v1124, 0.0
    %v2423 = vadd.f32 %v2421, %v2422
    %v2424 = vrot.slane %v2423, 4
    %v2425 = vadd.f32 %v2423, %v2424
    %v2426 = vrot.slane %v2425, 2
    %v2427 = vadd.f32 %v2425, %v2426
    %v2428 = vrot.slane %v2427, 1
    %v2429 = vadd.f32 %v2427, %v2428
    %v2430 = vadd.f32 %v1029, %v1045
    %v2431 = vadd.f32 %v2430, %v1061
    %v2432 = vadd.f32 %v2431, %v1077
    %v2433 = vadd.f32 %v2432, %v1093
    %v2434 = vadd.f32 %v2433, %v1109
    %v2435 = vsel %vm1368, %v1125, 0.0
    %v2436 = vadd.f32 %v2434, %v2435
    %v2437 = vrot.slane %v2436, 4
    %v2438 = vadd.f32 %v2436, %v2437
    %v2439 = vrot.slane %v2438, 2
    %v2440 = vadd.f32 %v2438, %v2439
    %v2441 = vrot.slane %v2440, 1
    %v2442 = vadd.f32 %v2440, %v2441
    %v2443 = vadd.f32 %v1030, %v1046
    %v2444 = vadd.f32 %v2443, %v1062
    %v2445 = vadd.f32 %v2444, %v1078
    %v2446 = vadd.f32 %v2445, %v1094
    %v2447 = vadd.f32 %v2446, %v1110
    %v2448 = vsel %vm1368, %v1126, 0.0
    %v2449 = vadd.f32 %v2447, %v2448
    %v2450 = vrot.slane %v2449, 4
    %v2451 = vadd.f32 %v2449, %v2450
    %v2452 = vrot.slane %v2451, 2
    %v2453 = vadd.f32 %v2451, %v2452
    %v2454 = vrot.slane %v2453, 1
    %v2455 = vadd.f32 %v2453, %v2454
    %v2456 = vadd.f32 %v1031, %v1047
    %v2457 = vadd.f32 %v2456, %v1063
    %v2458 = vadd.f32 %v2457, %v1079
    %v2459 = vadd.f32 %v2458, %v1095
    %v2460 = vadd.f32 %v2459, %v1111
    %v2461 = vsel %vm1368, %v1127, 0.0
    %v2462 = vadd.f32 %v2460, %v2461
    %v2463 = vrot.slane %v2462, 4
    %v2464 = vadd.f32 %v2462, %v2463
    %v2465 = vrot.slane %v2464, 2
    %v2466 = vadd.f32 %v2464, %v2465
    %v2467 = vrot.slane %v2466, 1
    %v2468 = vadd.f32 %v2466, %v2467
    %v2469 = vadd.f32 %v1032, %v1048
    %v2470 = vadd.f32 %v2469, %v1064
    %v2471 = vadd.f32 %v2470, %v1080
    %v2472 = vadd.f32 %v2471, %v1096
    %v2473 = vadd.f32 %v2472, %v1112
    %v2474 = vsel %vm1368, %v1128, 0.0
    %v2475 = vadd.f32 %v2473, %v2474
    %v2476 = vrot.slane %v2475, 4
    %v2477 = vadd.f32 %v2475, %v2476
    %v2478 = vrot.slane %v2477, 2
    %v2479 = vadd.f32 %v2477, %v2478
    %v2480 = vrot.slane %v2479, 1
    %v2481 = vadd.f32 %v2479, %v2480
    %v2482 = vadd.f32 %v1033, %v1049
    %v2483 = vadd.f32 %v2482, %v1065
    %v2484 = vadd.f32 %v2483, %v1081
    %v2485 = vadd.f32 %v2484, %v1097
    %v2486 = vadd.f32 %v2485, %v1113
    %v2487 = vsel %vm1368, %v1129, 0.0
    %v2488 = vadd.f32 %v2486, %v2487
    %v2489 = vrot.slane %v2488, 4
    %v2490 = vadd.f32 %v2488, %v2489
    %v2491 = vrot.slane %v2490, 2
    %v2492 = vadd.f32 %v2490, %v2491
    %v2493 = vrot.slane %v2492, 1
    %v2494 = vadd.f32 %v2492, %v2493
    %v2495 = vadd.f32 %v1034, %v1050
    %v2496 = vadd.f32 %v2495, %v1066
    %v2497 = vadd.f32 %v2496, %v1082
    %v2498 = vadd.f32 %v2497, %v1098
    %v2499 = vadd.f32 %v2498, %v1114
    %v2500 = vsel %vm1368, %v1130, 0.0
    %v2501 = vadd.f32 %v2499, %v2500
    %v2502 = vrot.slane %v2501, 4
    %v2503 = vadd.f32 %v2501, %v2502
    %v2504 = vrot.slane %v2503, 2
    %v2505 = vadd.f32 %v2503, %v2504
    %v2506 = vrot.slane %v2505, 1
    %v2507 = vadd.f32 %v2505, %v2506
    %v2508 = vadd.f32 %v1035, %v1051
    %v2509 = vadd.f32 %v2508, %v1067
    %v2510 = vadd.f32 %v2509, %v1083
    %v2511 = vadd.f32 %v2510, %v1099
    %v2512 = vadd.f32 %v2511, %v1115
    %v2513 = vsel %vm1368, %v1131, 0.0
    %v2514 = vadd.f32 %v2512, %v2513
    %v2515 = vrot.slane %v2514, 4
    %v2516 = vadd.f32 %v2514, %v2515
    %v2517 = vrot.slane %v2516, 2
    %v2518 = vadd.f32 %v2516, %v2517
    %v2519 = vrot.slane %v2518, 1
    %v2520 = vadd.f32 %v2518, %v2519
    %v2521 = vadd.f32 %v1036, %v1052
    %v2522 = vadd.f32 %v2521, %v1068
    %v2523 = vadd.f32 %v2522, %v1084
    %v2524 = vadd.f32 %v2523, %v1100
    %v2525 = vadd.f32 %v2524, %v1116
    %v2526 = vsel %vm1368, %v1132, 0.0
    %v2527 = vadd.f32 %v2525, %v2526
    %v2528 = vrot.slane %v2527, 4
    %v2529 = vadd.f32 %v2527, %v2528
    %v2530 = vrot.slane %v2529, 2
    %v2531 = vadd.f32 %v2529, %v2530
    %v2532 = vrot.slane %v2531, 1
    %v2533 = vadd.f32 %v2531, %v2532
    %v2534 = vadd.f32 %v1037, %v1053
    %v2535 = vadd.f32 %v2534, %v1069
    %v2536 = vadd.f32 %v2535, %v1085
    %v2537 = vadd.f32 %v2536, %v1101
    %v2538 = vadd.f32 %v2537, %v1117
    %v2539 = vsel %vm1368, %v1133, 0.0
    %v2540 = vadd.f32 %v2538, %v2539
    %v2541 = vrot.slane %v2540, 4
    %v2542 = vadd.f32 %v2540, %v2541
    %v2543 = vrot.slane %v2542, 2
    %v2544 = vadd.f32 %v2542, %v2543
    %v2545 = vrot.slane %v2544, 1
    %v2546 = vadd.f32 %v2544, %v2545
    %v2547 = vadd.f32 %v1038, %v1054
    %v2548 = vadd.f32 %v2547, %v1070
    %v2549 = vadd.f32 %v2548, %v1086
    %v2550 = vadd.f32 %v2549, %v1102
    %v2551 = vadd.f32 %v2550, %v1118
    %v2552 = vsel %vm1368, %v1134, 0.0
    %v2553 = vadd.f32 %v2551, %v2552
    %v2554 = vrot.slane %v2553, 4
    %v2555 = vadd.f32 %v2553, %v2554
    %v2556 = vrot.slane %v2555, 2
    %v2557 = vadd.f32 %v2555, %v2556
    %v2558 = vrot.slane %v2557, 1
    %v2559 = vadd.f32 %v2557, %v2558
    %v2560 = vadd.f32 %v1039, %v1055
    %v2561 = vadd.f32 %v2560, %v1071
    %v2562 = vadd.f32 %v2561, %v1087
    %v2563 = vadd.f32 %v2562, %v1103
    %v2564 = vadd.f32 %v2563, %v1119
    %v2565 = vsel %vm1368, %v1135, 0.0
    %v2566 = vadd.f32 %v2564, %v2565
    %v2567 = vrot.slane %v2566, 4
    %v2568 = vadd.f32 %v2566, %v2567
    %v2569 = vrot.slane %v2568, 2
    %v2570 = vadd.f32 %v2568, %v2569
    %v2571 = vrot.slane %v2570, 1
    %v2572 = vadd.f32 %v2570, %v2571
    %v2573 = vadd.f32 %v1040, %v1056
    %v2574 = vadd.f32 %v2573, %v1072
    %v2575 = vadd.f32 %v2574, %v1088
    %v2576 = vadd.f32 %v2575, %v1104
    %v2577 = vadd.f32 %v2576, %v1120
    %v2578 = vsel %vm1368, %v1136, 0.0
    %v2579 = vadd.f32 %v2577, %v2578
    %v2580 = vrot.slane %v2579, 4
    %v2581 = vadd.f32 %v2579, %v2580
    %v2582 = vrot.slane %v2581, 2
    %v2583 = vadd.f32 %v2581, %v2582
    %v2584 = vrot.slane %v2583, 1
    %v2585 = vadd.f32 %v2583, %v2584
    %v2586 = vadd.f32 %v1041, %v1057
    %v2587 = vadd.f32 %v2586, %v1073
    %v2588 = vadd.f32 %v2587, %v1089
    %v2589 = vadd.f32 %v2588, %v1105
    %v2590 = vadd.f32 %v2589, %v1121
    %v2591 = vsel %vm1368, %v1137, 0.0
    %v2592 = vadd.f32 %v2590, %v2591
    %v2593 = vrot.slane %v2592, 4
    %v2594 = vadd.f32 %v2592, %v2593
    %v2595 = vrot.slane %v2594, 2
    %v2596 = vadd.f32 %v2594, %v2595
    %v2597 = vrot.slane %v2596, 1
    %v2598 = vadd.f32 %v2596, %v2597
    %v2599 = vadd.f32 %v1042, %v1058
    %v2600 = vadd.f32 %v2599, %v1074
    %v2601 = vadd.f32 %v2600, %v1090
    %v2602 = vadd.f32 %v2601, %v1106
    %v2603 = vadd.f32 %v2602, %v1122
    %v2604 = vsel %vm1368, %v1138, 0.0
    %v2605 = vadd.f32 %v2603, %v2604
    %v2606 = vrot.slane %v2605, 4
    %v2607 = vadd.f32 %v2605, %v2606
    %v2608 = vrot.slane %v2607, 2
    %v2609 = vadd.f32 %v2607, %v2608
    %v2610 = vrot.slane %v2609, 1
    %v2611 = vadd.f32 %v2609, %v2610
    %v2612 = vadd.f32 %v1139, %v1155
    %v2613 = vadd.f32 %v2612, %v1171
    %v2614 = vadd.f32 %v2613, %v1187
    %v2615 = vadd.f32 %v2614, %v1203
    %v2616 = vadd.f32 %v2615, %v1219
    %v2617 = vsel %vm1368, %v1235, 0.0
    %v2618 = vadd.f32 %v2616, %v2617
    %v2619 = vrot.slane %v2618, 4
    %v2620 = vadd.f32 %v2618, %v2619
    %v2621 = vrot.slane %v2620, 2
    %v2622 = vadd.f32 %v2620, %v2621
    %v2623 = vrot.slane %v2622, 1
    %v2624 = vadd.f32 %v2622, %v2623
    %v2625 = vadd.f32 %v1140, %v1156
    %v2626 = vadd.f32 %v2625, %v1172
    %v2627 = vadd.f32 %v2626, %v1188
    %v2628 = vadd.f32 %v2627, %v1204
    %v2629 = vadd.f32 %v2628, %v1220
    %v2630 = vsel %vm1368, %v1236, 0.0
    %v2631 = vadd.f32 %v2629, %v2630
    %v2632 = vrot.slane %v2631, 4
    %v2633 = vadd.f32 %v2631, %v2632
    %v2634 = vrot.slane %v2633, 2
    %v2635 = vadd.f32 %v2633, %v2634
    %v2636 = vrot.slane %v2635, 1
    %v2637 = vadd.f32 %v2635, %v2636
    %v2638 = vadd.f32 %v1141, %v1157
    %v2639 = vadd.f32 %v2638, %v1173
    %v2640 = vadd.f32 %v2639, %v1189
    %v2641 = vadd.f32 %v2640, %v1205
    %v2642 = vadd.f32 %v2641, %v1221
    %v2643 = vsel %vm1368, %v1237, 0.0
    %v2644 = vadd.f32 %v2642, %v2643
    %v2645 = vrot.slane %v2644, 4
    %v2646 = vadd.f32 %v2644, %v2645
    %v2647 = vrot.slane %v2646, 2
    %v2648 = vadd.f32 %v2646, %v2647
    %v2649 = vrot.slane %v2648, 1
    %v2650 = vadd.f32 %v2648, %v2649
    %v2651 = vadd.f32 %v1142, %v1158
    %v2652 = vadd.f32 %v2651, %v1174
    %v2653 = vadd.f32 %v2652, %v1190
    %v2654 = vadd.f32 %v2653, %v1206
    %v2655 = vadd.f32 %v2654, %v1222
    %v2656 = vsel %vm1368, %v1238, 0.0
    %v2657 = vadd.f32 %v2655, %v2656
    %v2658 = vrot.slane %v2657, 4
    %v2659 = vadd.f32 %v2657, %v2658
    %v2660 = vrot.slane %v2659, 2
    %v2661 = vadd.f32 %v2659, %v2660
    %v2662 = vrot.slane %v2661, 1
    %v2663 = vadd.f32 %v2661, %v2662
    %v2664 = vadd.f32 %v1143, %v1159
    %v2665 = vadd.f32 %v2664, %v1175
    %v2666 = vadd.f32 %v2665, %v1191
    %v2667 = vadd.f32 %v2666, %v1207
    %v2668 = vadd.f32 %v2667, %v1223
    %v2669 = vsel %vm1368, %v1239, 0.0
    %v2670 = vadd.f32 %v2668, %v2669
    %v2671 = vrot.slane %v2670, 4
    %v2672 = vadd.f32 %v2670, %v2671
    %v2673 = vrot.slane %v2672, 2
    %v2674 = vadd.f32 %v2672, %v2673
    %v2675 = vrot.slane %v2674, 1
    %v2676 = vadd.f32 %v2674, %v2675
    %v2677 = vadd.f32 %v1144, %v1160
    %v2678 = vadd.f32 %v2677, %v1176
    %v2679 = vadd.f32 %v2678, %v1192
    %v2680 = vadd.f32 %v2679, %v1208
    %v2681 = vadd.f32 %v2680, %v1224
    %v2682 = vsel %vm1368, %v1240, 0.0
    %v2683 = vadd.f32 %v2681, %v2682
    %v2684 = vrot.slane %v2683, 4
    %v2685 = vadd.f32 %v2683, %v2684
    %v2686 = vrot.slane %v2685, 2
    %v2687 = vadd.f32 %v2685, %v2686
    %v2688 = vrot.slane %v2687, 1
    %v2689 = vadd.f32 %v2687, %v2688
    %v2690 = vadd.f32 %v1145, %v1161
    %v2691 = vadd.f32 %v2690, %v1177
    %v2692 = vadd.f32 %v2691, %v1193
    %v2693 = vadd.f32 %v2692, %v1209
    %v2694 = vadd.f32 %v2693, %v1225
    %v2695 = vsel %vm1368, %v1241, 0.0
    %v2696 = vadd.f32 %v2694, %v2695
    %v2697 = vrot.slane %v2696, 4
    %v2698 = vadd.f32 %v2696, %v2697
    %v2699 = vrot.slane %v2698, 2
    %v2700 = vadd.f32 %v2698, %v2699
    %v2701 = vrot.slane %v2700, 1
    %v2702 = vadd.f32 %v2700, %v2701
    %v2703 = vadd.f32 %v1146, %v1162
    %v2704 = vadd.f32 %v2703, %v1178
    %v2705 = vadd.f32 %v2704, %v1194
    %v2706 = vadd.f32 %v2705, %v1210
    %v2707 = vadd.f32 %v2706, %v1226
    %v2708 = vsel %vm1368, %v1242, 0.0
    %v2709 = vadd.f32 %v2707, %v2708
    %v2710 = vrot.slane %v2709, 4
    %v2711 = vadd.f32 %v2709, %v2710
    %v2712 = vrot.slane %v2711, 2
    %v2713 = vadd.f32 %v2711, %v2712
    %v2714 = vrot.slane %v2713, 1
    %v2715 = vadd.f32 %v2713, %v2714
    %v2716 = vadd.f32 %v1147, %v1163
    %v2717 = vadd.f32 %v2716, %v1179
    %v2718 = vadd.f32 %v2717, %v1195
    %v2719 = vadd.f32 %v2718, %v1211
    %v2720 = vadd.f32 %v2719, %v1227
    %v2721 = vsel %vm1368, %v1243, 0.0
    %v2722 = vadd.f32 %v2720, %v2721
    %v2723 = vrot.slane %v2722, 4
    %v2724 = vadd.f32 %v2722, %v2723
    %v2725 = vrot.slane %v2724, 2
    %v2726 = vadd.f32 %v2724, %v2725
    %v2727 = vrot.slane %v2726, 1
    %v2728 = vadd.f32 %v2726, %v2727
    %v2729 = vadd.f32 %v1148, %v1164
    %v2730 = vadd.f32 %v2729, %v1180
    %v2731 = vadd.f32 %v2730, %v1196
    %v2732 = vadd.f32 %v2731, %v1212
    %v2733 = vadd.f32 %v2732, %v1228
    %v2734 = vsel %vm1368, %v1244, 0.0
    %v2735 = vadd.f32 %v2733, %v2734
    %v2736 = vrot.slane %v2735, 4
    %v2737 = vadd.f32 %v2735, %v2736
    %v2738 = vrot.slane %v2737, 2
    %v2739 = vadd.f32 %v2737, %v2738
    %v2740 = vrot.slane %v2739, 1
    %v2741 = vadd.f32 %v2739, %v2740
    %v2742 = vadd.f32 %v1149, %v1165
    %v2743 = vadd.f32 %v2742, %v1181
    %v2744 = vadd.f32 %v2743, %v1197
    %v2745 = vadd.f32 %v2744, %v1213
    %v2746 = vadd.f32 %v2745, %v1229
    %v2747 = vsel %vm1368, %v1245, 0.0
    %v2748 = vadd.f32 %v2746, %v2747
    %v2749 = vrot.slane %v2748, 4
    %v2750 = vadd.f32 %v2748, %v2749
    %v2751 = vrot.slane %v2750, 2
    %v2752 = vadd.f32 %v2750, %v2751
    %v2753 = vrot.slane %v2752, 1
    %v2754 = vadd.f32 %v2752, %v2753
    %v2755 = vadd.f32 %v1150, %v1166
    %v2756 = vadd.f32 %v2755, %v1182
    %v2757 = vadd.f32 %v2756, %v1198
    %v2758 = vadd.f32 %v2757, %v1214
    %v2759 = vadd.f32 %v2758, %v1230
    %v2760 = vsel %vm1368, %v1246, 0.0
    %v2761 = vadd.f32 %v2759, %v2760
    %v2762 = vrot.slane %v2761, 4
    %v2763 = vadd.f32 %v2761, %v2762
    %v2764 = vrot.slane %v2763, 2
    %v2765 = vadd.f32 %v2763, %v2764
    %v2766 = vrot.slane %v2765, 1
    %v2767 = vadd.f32 %v2765, %v2766
    %v2768 = vadd.f32 %v1151, %v1167
    %v2769 = vadd.f32 %v2768, %v1183
    %v2770 = vadd.f32 %v2769, %v1199
    %v2771 = vadd.f32 %v2770, %v1215
    %v2772 = vadd.f32 %v2771, %v1231
    %v2773 = vsel %vm1368, %v1247, 0.0
    %v2774 = vadd.f32 %v2772, %v2773
    %v2775 = vrot.slane %v2774, 4
    %v2776 = vadd.f32 %v2774, %v2775
    %v2777 = vrot.slane %v2776, 2
    %v2778 = vadd.f32 %v2776, %v2777
    %v2779 = vrot.slane %v2778, 1
    %v2780 = vadd.f32 %v2778, %v2779
    %v2781 = vadd.f32 %v1152, %v1168
    %v2782 = vadd.f32 %v2781, %v1184
    %v2783 = vadd.f32 %v2782, %v1200
    %v2784 = vadd.f32 %v2783, %v1216
    %v2785 = vadd.f32 %v2784, %v1232
    %v2786 = vsel %vm1368, %v1248, 0.0
    %v2787 = vadd.f32 %v2785, %v2786
    %v2788 = vrot.slane %v2787, 4
    %v2789 = vadd.f32 %v2787, %v2788
    %v2790 = vrot.slane %v2789, 2
    %v2791 = vadd.f32 %v2789, %v2790
    %v2792 = vrot.slane %v2791, 1
    %v2793 = vadd.f32 %v2791, %v2792
    %v2794 = vadd.f32 %v1153, %v1169
    %v2795 = vadd.f32 %v2794, %v1185
    %v2796 = vadd.f32 %v2795, %v1201
    %v2797 = vadd.f32 %v2796, %v1217
    %v2798 = vadd.f32 %v2797, %v1233
    %v2799 = vsel %vm1368, %v1249, 0.0
    %v2800 = vadd.f32 %v2798, %v2799
    %v2801 = vrot.slane %v2800, 4
    %v2802 = vadd.f32 %v2800, %v2801
    %v2803 = vrot.slane %v2802, 2
    %v2804 = vadd.f32 %v2802, %v2803
    %v2805 = vrot.slane %v2804, 1
    %v2806 = vadd.f32 %v2804, %v2805
    %v2807 = vadd.f32 %v1154, %v1170
    %v2808 = vadd.f32 %v2807, %v1186
    %v2809 = vadd.f32 %v2808, %v1202
    %v2810 = vadd.f32 %v2809, %v1218
    %v2811 = vadd.f32 %v2810, %v1234
    %v2812 = vsel %vm1368, %v1250, 0.0
    %v2813 = vadd.f32 %v2811, %v2812
    %v2814 = vrot.slane %v2813, 4
    %v2815 = vadd.f32 %v2813, %v2814
    %v2816 = vrot.slane %v2815, 2
    %v2817 = vadd.f32 %v2815, %v2816
    %v2818 = vrot.slane %v2817, 1
    %v2819 = vadd.f32 %v2817, %v2818
    %v2820 = vadd.f32 %v1251, %v1267
    %v2821 = vadd.f32 %v2820, %v1283
    %v2822 = vadd.f32 %v2821, %v1299
    %v2823 = vadd.f32 %v2822, %v1315
    %v2824 = vadd.f32 %v2823, %v1331
    %v2825 = vsel %vm1368, %v1347, 0.0
    %v2826 = vadd.f32 %v2824, %v2825
    %v2827 = vrot.slane %v2826, 4
    %v2828 = vadd.f32 %v2826, %v2827
    %v2829 = vrot.slane %v2828, 2
    %v2830 = vadd.f32 %v2828, %v2829
    %v2831 = vrot.slane %v2830, 1
    %v2832 = vadd.f32 %v2830, %v2831
    %v2833 = vadd.f32 %v1252, %v1268
    %v2834 = vadd.f32 %v2833, %v1284
    %v2835 = vadd.f32 %v2834, %v1300
    %v2836 = vadd.f32 %v2835, %v1316
    %v2837 = vadd.f32 %v2836, %v1332
    %v2838 = vsel %vm1368, %v1348, 0.0
    %v2839 = vadd.f32 %v2837, %v2838
    %v2840 = vrot.slane %v2839, 4
    %v2841 = vadd.f32 %v2839, %v2840
    %v2842 = vrot.slane %v2841, 2
    %v2843 = vadd.f32 %v2841, %v2842
    %v2844 = vrot.slane %v2843, 1
    %v2845 = vadd.f32 %v2843, %v2844
    %v2846 = vadd.f32 %v1253, %v1269
    %v2847 = vadd.f32 %v2846, %v1285
    %v2848 = vadd.f32 %v2847, %v1301
    %v2849 = vadd.f32 %v2848, %v1317
    %v2850 = vadd.f32 %v2849, %v1333
    %v2851 = vsel %vm1368, %v1349, 0.0
    %v2852 = vadd.f32 %v2850, %v2851
    %v2853 = vrot.slane %v2852, 4
    %v2854 = vadd.f32 %v2852, %v2853
    %v2855 = vrot.slane %v2854, 2
    %v2856 = vadd.f32 %v2854, %v2855
    %v2857 = vrot.slane %v2856, 1
    %v2858 = vadd.f32 %v2856, %v2857
    %v2859 = vadd.f32 %v1254, %v1270
    %v2860 = vadd.f32 %v2859, %v1286
    %v2861 = vadd.f32 %v2860, %v1302
    %v2862 = vadd.f32 %v2861, %v1318
    %v2863 = vadd.f32 %v2862, %v1334
    %v2864 = vsel %vm1368, %v1350, 0.0
    %v2865 = vadd.f32 %v2863, %v2864
    %v2866 = vrot.slane %v2865, 4
    %v2867 = vadd.f32 %v2865, %v2866
    %v2868 = vrot.slane %v2867, 2
    %v2869 = vadd.f32 %v2867, %v2868
    %v2870 = vrot.slane %v2869, 1
    %v2871 = vadd.f32 %v2869, %v2870
    %v2872 = vadd.f32 %v1255, %v1271
    %v2873 = vadd.f32 %v2872, %v1287
    %v2874 = vadd.f32 %v2873, %v1303
    %v2875 = vadd.f32 %v2874, %v1319
    %v2876 = vadd.f32 %v2875, %v1335
    %v2877 = vsel %vm1368, %v1351, 0.0
    %v2878 = vadd.f32 %v2876, %v2877
    %v2879 = vrot.slane %v2878, 4
    %v2880 = vadd.f32 %v2878, %v2879
    %v2881 = vrot.slane %v2880, 2
    %v2882 = vadd.f32 %v2880, %v2881
    %v2883 = vrot.slane %v2882, 1
    %v2884 = vadd.f32 %v2882, %v2883
    %v2885 = vadd.f32 %v1256, %v1272
    %v2886 = vadd.f32 %v2885, %v1288
    %v2887 = vadd.f32 %v2886, %v1304
    %v2888 = vadd.f32 %v2887, %v1320
    %v2889 = vadd.f32 %v2888, %v1336
    %v2890 = vsel %vm1368, %v1352, 0.0
    %v2891 = vadd.f32 %v2889, %v2890
    %v2892 = vrot.slane %v2891, 4
    %v2893 = vadd.f32 %v2891, %v2892
    %v2894 = vrot.slane %v2893, 2
    %v2895 = vadd.f32 %v2893, %v2894
    %v2896 = vrot.slane %v2895, 1
    %v2897 = vadd.f32 %v2895, %v2896
    %v2898 = vadd.f32 %v1257, %v1273
    %v2899 = vadd.f32 %v2898, %v1289
    %v2900 = vadd.f32 %v2899, %v1305
    %v2901 = vadd.f32 %v2900, %v1321
    %v2902 = vadd.f32 %v2901, %v1337
    %v2903 = vsel %vm1368, %v1353, 0.0
    %v2904 = vadd.f32 %v2902, %v2903
    %v2905 = vrot.slane %v2904, 4
    %v2906 = vadd.f32 %v2904, %v2905
    %v2907 = vrot.slane %v2906, 2
    %v2908 = vadd.f32 %v2906, %v2907
    %v2909 = vrot.slane %v2908, 1
    %v2910 = vadd.f32 %v2908, %v2909
    %v2911 = vadd.f32 %v1258, %v1274
    %v2912 = vadd.f32 %v2911, %v1290
    %v2913 = vadd.f32 %v2912, %v1306
    %v2914 = vadd.f32 %v2913, %v1322
    %v2915 = vadd.f32 %v2914, %v1338
    %v2916 = vsel %vm1368, %v1354, 0.0
    %v2917 = vadd.f32 %v2915, %v2916
    %v2918 = vrot.slane %v2917, 4
    %v2919 = vadd.f32 %v2917, %v2918
    %v2920 = vrot.slane %v2919, 2
    %v2921 = vadd.f32 %v2919, %v2920
    %v2922 = vrot.slane %v2921, 1
    %v2923 = vadd.f32 %v2921, %v2922
    %v2924 = vadd.f32 %v1259, %v1275
    %v2925 = vadd.f32 %v2924, %v1291
    %v2926 = vadd.f32 %v2925, %v1307
    %v2927 = vadd.f32 %v2926, %v1323
    %v2928 = vadd.f32 %v2927, %v1339
    %v2929 = vsel %vm1368, %v1355, 0.0
    %v2930 = vadd.f32 %v2928, %v2929
    %v2931 = vrot.slane %v2930, 4
    %v2932 = vadd.f32 %v2930, %v2931
    %v2933 = vrot.slane %v2932, 2
    %v2934 = vadd.f32 %v2932, %v2933
    %v2935 = vrot.slane %v2934, 1
    %v2936 = vadd.f32 %v2934, %v2935
    %v2937 = vadd.f32 %v1260, %v1276
    %v2938 = vadd.f32 %v2937, %v1292
    %v2939 = vadd.f32 %v2938, %v1308
    %v2940 = vadd.f32 %v2939, %v1324
    %v2941 = vadd.f32 %v2940, %v1340
    %v2942 = vsel %vm1368, %v1356, 0.0
    %v2943 = vadd.f32 %v2941, %v2942
    %v2944 = vrot.slane %v2943, 4
    %v2945 = vadd.f32 %v2943, %v2944
    %v2946 = vrot.slane %v2945, 2
    %v2947 = vadd.f32 %v2945, %v2946
    %v2948 = vrot.slane %v2947, 1
    %v2949 = vadd.f32 %v2947, %v2948
    %v2950 = vadd.f32 %v1261, %v1277
    %v2951 = vadd.f32 %v2950, %v1293
    %v2952 = vadd.f32 %v2951, %v1309
    %v2953 = vadd.f32 %v2952, %v1325
    %v2954 = vadd.f32 %v2953, %v1341
    %v2955 = vsel %vm1368, %v1357, 0.0
    %v2956 = vadd.f32 %v2954, %v2955
    %v2957 = vrot.slane %v2956, 4
    %v2958 = vadd.f32 %v2956, %v2957
    %v2959 = vrot.slane %v2958, 2
    %v2960 = vadd.f32 %v2958, %v2959
    %v2961 = vrot.slane %v2960, 1
    %v2962 = vadd.f32 %v2960, %v2961
    %v2963 = vadd.f32 %v1262, %v1278
    %v2964 = vadd.f32 %v2963, %v1294
    %v2965 = vadd.f32 %v2964, %v1310
    %v2966 = vadd.f32 %v2965, %v1326
    %v2967 = vadd.f32 %v2966, %v1342
    %v2968 = vsel %vm1368, %v1358, 0.0
    %v2969 = vadd.f32 %v2967, %v2968
    %v2970 = vrot.slane %v2969, 4
    %v2971 = vadd.f32 %v2969, %v2970
    %v2972 = vrot.slane %v2971, 2
    %v2973 = vadd.f32 %v2971, %v2972
    %v2974 = vrot.slane %v2973, 1
    %v2975 = vadd.f32 %v2973, %v2974
    %v2976 = vadd.f32 %v1263, %v1279
    %v2977 = vadd.f32 %v2976, %v1295
    %v2978 = vadd.f32 %v2977, %v1311
    %v2979 = vadd.f32 %v2978, %v1327
    %v2980 = vadd.f32 %v2979, %v1343
    %v2981 = vsel %vm1368, %v1359, 0.0
    %v2982 = vadd.f32 %v2980, %v2981
    %v2983 = vrot.slane %v2982, 4
    %v2984 = vadd.f32 %v2982, %v2983
    %v2985 = vrot.slane %v2984, 2
    %v2986 = vadd.f32 %v2984, %v2985
    %v2987 = vrot.slane %v2986, 1
    %v2988 = vadd.f32 %v2986, %v2987
    %v2989 = vadd.f32 %v1264, %v1280
    %v2990 = vadd.f32 %v2989, %v1296
    %v2991 = vadd.f32 %v2990, %v1312
    %v2992 = vadd.f32 %v2991, %v1328
    %v2993 = vadd.f32 %v2992, %v1344
    %v2994 = vsel %vm1368, %v1360, 0.0
    %v2995 = vadd.f32 %v2993, %v2994
    %v2996 = vrot.slane %v2995, 4
    %v2997 = vadd.f32 %v2995, %v2996
    %v2998 = vrot.slane %v2997, 2
    %v2999 = vadd.f32 %v2997, %v2998
    %v3000 = vrot.slane %v2999, 1
    %v3001 = vadd.f32 %v2999, %v3000
    %v3002 = vadd.f32 %v1265, %v1281
    %v3003 = vadd.f32 %v3002, %v1297
    %v3004 = vadd.f32 %v3003, %v1313
    %v3005 = vadd.f32 %v3004, %v1329
    %v3006 = vadd.f32 %v3005, %v1345
    %v3007 = vsel %vm1368, %v1361, 0.0
    %v3008 = vadd.f32 %v3006, %v3007
    %v3009 = vrot.slane %v3008, 4
    %v3010 = vadd.f32 %v3008, %v3009
    %v3011 = vrot.slane %v3010, 2
    %v3012 = vadd.f32 %v3010, %v3011
    %v3013 = vrot.slane %v3012, 1
    %v3014 = vadd.f32 %v3012, %v3013
    %v3015 = vadd.f32 %v1266, %v1282
    %v3016 = vadd.f32 %v3015, %v1298
    %v3017 = vadd.f32 %v3016, %v1314
    %v3018 = vadd.f32 %v3017, %v1330
    %v3019 = vadd.f32 %v3018, %v1346
    %v3020 = vsel %vm1368, %v1362, 0.0
    %v3021 = vadd.f32 %v3019, %v3020
    %v3022 = vrot.slane %v3021, 4
    %v3023 = vadd.f32 %v3021, %v3022
    %v3024 = vrot.slane %v3023, 2
    %v3025 = vadd.f32 %v3023, %v3024
    %v3026 = vrot.slane %v3025, 1
    %v3027 = vadd.f32 %v3025, %v3026
    %v3028 = vpack.c.bf16 %v1376, %v1376
    %v3029 = vpack.c.bf16 %v1389, %v1389
    %v3030 = vpack.c.bf16 %v1402, %v1402
    %v3031 = vpack.c.bf16 %v1415, %v1415
    %v3032 = vpack.c.bf16 %v1428, %v1428
    %v3033 = vpack.c.bf16 %v1441, %v1441
    %v3034 = vpack.c.bf16 %v1454, %v1454
    %v3035 = vpack.c.bf16 %v1467, %v1467
    %v3036 = vpack.c.bf16 %v1480, %v1480
    %v3037 = vpack.c.bf16 %v1493, %v1493
    %v3038 = vpack.c.bf16 %v1506, %v1506
    %v3039 = vpack.c.bf16 %v1519, %v1519
    %v3040 = vpack.c.bf16 %v1532, %v1532
    %v3041 = vpack.c.bf16 %v1545, %v1545
    %v3042 = vpack.c.bf16 %v1558, %v1558
    %v3043 = vpack.c.bf16 %v1571, %v1571
    %v3044 = vpack.c.bf16 %v1584, %v1584
    %v3045 = vpack.c.bf16 %v1597, %v1597
    %v3046 = vpack.c.bf16 %v1610, %v1610
    %v3047 = vpack.c.bf16 %v1623, %v1623
    %v3048 = vpack.c.bf16 %v1636, %v1636
    %v3049 = vpack.c.bf16 %v1649, %v1649
    %v3050 = vpack.c.bf16 %v1662, %v1662
    %v3051 = vpack.c.bf16 %v1675, %v1675
    %v3052 = vpack.c.bf16 %v1688, %v1688
    %v3053 = vpack.c.bf16 %v1701, %v1701
    %v3054 = vpack.c.bf16 %v1714, %v1714
    %v3055 = vpack.c.bf16 %v1727, %v1727
    %v3056 = vpack.c.bf16 %v1740, %v1740
    %v3057 = vpack.c.bf16 %v1753, %v1753
    %v3058 = vpack.c.bf16 %v1766, %v1766
    %v3059 = vpack.c.bf16 %v1779, %v1779
    %v3060 = vpack.c.bf16 %v1792, %v1792
    %v3061 = vpack.c.bf16 %v1805, %v1805
    %v3062 = vpack.c.bf16 %v1818, %v1818
    %v3063 = vpack.c.bf16 %v1831, %v1831
    %v3064 = vpack.c.bf16 %v1844, %v1844
    %v3065 = vpack.c.bf16 %v1857, %v1857
    %v3066 = vpack.c.bf16 %v1870, %v1870
    %v3067 = vpack.c.bf16 %v1883, %v1883
    %v3068 = vpack.c.bf16 %v1896, %v1896
    %v3069 = vpack.c.bf16 %v1909, %v1909
    %v3070 = vpack.c.bf16 %v1922, %v1922
    %v3071 = vpack.c.bf16 %v1935, %v1935
    %v3072 = vpack.c.bf16 %v1948, %v1948
    %v3073 = vpack.c.bf16 %v1961, %v1961
    %v3074 = vpack.c.bf16 %v1974, %v1974
    %v3075 = vpack.c.bf16 %v1987, %v1987
    %v3076 = vpack.c.bf16 %v2000, %v2000
    %v3077 = vpack.c.bf16 %v2013, %v2013
    %v3078 = vpack.c.bf16 %v2026, %v2026
    %v3079 = vpack.c.bf16 %v2039, %v2039
    %v3080 = vpack.c.bf16 %v2052, %v2052
    %v3081 = vpack.c.bf16 %v2065, %v2065
    %v3082 = vpack.c.bf16 %v2078, %v2078
    %v3083 = vpack.c.bf16 %v2091, %v2091
    %v3084 = vpack.c.bf16 %v2104, %v2104
    %v3085 = vpack.c.bf16 %v2117, %v2117
    %v3086 = vpack.c.bf16 %v2130, %v2130
    %v3087 = vpack.c.bf16 %v2143, %v2143
    %v3088 = vpack.c.bf16 %v2156, %v2156
    %v3089 = vpack.c.bf16 %v2169, %v2169
    %v3090 = vpack.c.bf16 %v2182, %v2182
    %v3091 = vpack.c.bf16 %v2195, %v2195
    %v3092 = vpack.c.bf16 %v2208, %v2208
    %v3093 = vpack.c.bf16 %v2221, %v2221
    %v3094 = vpack.c.bf16 %v2234, %v2234
    %v3095 = vpack.c.bf16 %v2247, %v2247
    %v3096 = vpack.c.bf16 %v2260, %v2260
    %v3097 = vpack.c.bf16 %v2273, %v2273
    %v3098 = vpack.c.bf16 %v2286, %v2286
    %v3099 = vpack.c.bf16 %v2299, %v2299
    %v3100 = vpack.c.bf16 %v2312, %v2312
    %v3101 = vpack.c.bf16 %v2325, %v2325
    %v3102 = vpack.c.bf16 %v2338, %v2338
    %v3103 = vpack.c.bf16 %v2351, %v2351
    %v3104 = vpack.c.bf16 %v2364, %v2364
    %v3105 = vpack.c.bf16 %v2377, %v2377
    %v3106 = vpack.c.bf16 %v2390, %v2390
    %v3107 = vpack.c.bf16 %v2403, %v2403
    %v3108 = vpack.c.bf16 %v2416, %v2416
    %v3109 = vpack.c.bf16 %v2429, %v2429
    %v3110 = vpack.c.bf16 %v2442, %v2442
    %v3111 = vpack.c.bf16 %v2455, %v2455
    %v3112 = vpack.c.bf16 %v2468, %v2468
    %v3113 = vpack.c.bf16 %v2481, %v2481
    %v3114 = vpack.c.bf16 %v2494, %v2494
    %v3115 = vpack.c.bf16 %v2507, %v2507
    %v3116 = vpack.c.bf16 %v2520, %v2520
    %v3117 = vpack.c.bf16 %v2533, %v2533
    %v3118 = vpack.c.bf16 %v2546, %v2546
    %v3119 = vpack.c.bf16 %v2559, %v2559
    %v3120 = vpack.c.bf16 %v2572, %v2572
    %v3121 = vpack.c.bf16 %v2585, %v2585
    %v3122 = vpack.c.bf16 %v2598, %v2598
    %v3123 = vpack.c.bf16 %v2611, %v2611
    %v3124 = vpack.c.bf16 %v2624, %v2624
    %v3125 = vpack.c.bf16 %v2637, %v2637
    %v3126 = vpack.c.bf16 %v2650, %v2650
    %v3127 = vpack.c.bf16 %v2663, %v2663
    %v3128 = vpack.c.bf16 %v2676, %v2676
    %v3129 = vpack.c.bf16 %v2689, %v2689
    %v3130 = vpack.c.bf16 %v2702, %v2702
    %v3131 = vpack.c.bf16 %v2715, %v2715
    %v3132 = vpack.c.bf16 %v2728, %v2728
    %v3133 = vpack.c.bf16 %v2741, %v2741
    %v3134 = vpack.c.bf16 %v2754, %v2754
    %v3135 = vpack.c.bf16 %v2767, %v2767
    %v3136 = vpack.c.bf16 %v2780, %v2780
    %v3137 = vpack.c.bf16 %v2793, %v2793
    %v3138 = vpack.c.bf16 %v2806, %v2806
    %v3139 = vpack.c.bf16 %v2819, %v2819
    %v3140 = vpack.c.bf16 %v2832, %v2832
    %v3141 = vpack.c.bf16 %v2845, %v2845
    %v3142 = vpack.c.bf16 %v2858, %v2858
    %v3143 = vpack.c.bf16 %v2871, %v2871
    %v3144 = vpack.c.bf16 %v2884, %v2884
    %v3145 = vpack.c.bf16 %v2897, %v2897
    %v3146 = vpack.c.bf16 %v2910, %v2910
    %v3147 = vpack.c.bf16 %v2923, %v2923
    %v3148 = vpack.c.bf16 %v2936, %v2936
    %v3149 = vpack.c.bf16 %v2949, %v2949
    %v3150 = vpack.c.bf16 %v2962, %v2962
    %v3151 = vpack.c.bf16 %v2975, %v2975
    %v3152 = vpack.c.bf16 %v2988, %v2988
    %v3153 = vpack.c.bf16 %v3001, %v3001
    %v3154 = vpack.c.bf16 %v3014, %v3014
    %v3155 = vpack.c.bf16 %v3027, %v3027
    %v3156 = vld [vmem:[%s1] sm:$0xf]
    %v3157 = vld [vmem:[%s1 + $0x4] sm:$0xf]
    %v3158 = vld [vmem:[%s1 + $0x8] sm:$0xf]
    %v3159 = vld [vmem:[%s1 + $0xc] sm:$0xf]
    %v3160 = vld [vmem:[%s1 + $0x10] sm:$0xf]
    %v3161 = vld [vmem:[%s1 + $0x14] sm:$0xf]
    %v3162 = vld [vmem:[%s1 + $0x18] sm:$0xf]
    %v3163 = vld [vmem:[%s1 + $0x1c] sm:$0xf]
    %v3164 = vld [vmem:[%s1 + $0x20] sm:$0xf]
    %v3165 = vld [vmem:[%s1 + $0x24] sm:$0xf]
    %v3166 = vld [vmem:[%s1 + $0x28] sm:$0xf]
    %v3167 = vld [vmem:[%s1 + $0x2c] sm:$0xf]
    %v3168 = vld [vmem:[%s1 + $0x30] sm:$0xf]
    %v3169 = vld [vmem:[%s1 + $0x34] sm:$0xf]
    %v3170 = vld [vmem:[%s1 + $0x38] sm:$0xf]
    %v3171 = vld [vmem:[%s1 + $0x3c] sm:$0xf]
    %v3172 = vld [vmem:[%s1 + $0x40] sm:$0xf]
    %v3173 = vld [vmem:[%s1 + $0x44] sm:$0xf]
    %v3174 = vld [vmem:[%s1 + $0x48] sm:$0xf]
    %v3175 = vld [vmem:[%s1 + $0x4c] sm:$0xf]
    %v3176 = vld [vmem:[%s1 + $0x50] sm:$0xf]
    %v3177 = vld [vmem:[%s1 + $0x54] sm:$0xf]
    %v3178 = vld [vmem:[%s1 + $0x58] sm:$0xf]
    %v3179 = vld [vmem:[%s1 + $0x5c] sm:$0xf]
    %v3180 = vld [vmem:[%s1 + $0x60] sm:$0xf]
    %v3181 = vld [vmem:[%s1 + $0x64] sm:$0xf]
    %v3182 = vld [vmem:[%s1 + $0x68] sm:$0xf]
    %v3183 = vld [vmem:[%s1 + $0x6c] sm:$0xf]
    %v3184 = vld [vmem:[%s1 + $0x70] sm:$0xf]
    %v3185 = vld [vmem:[%s1 + $0x74] sm:$0xf]
    %v3186 = vld [vmem:[%s1 + $0x78] sm:$0xf]
    %v3187 = vld [vmem:[%s1 + $0x7c] sm:$0xf]
    %v3188 = vld [vmem:[%s1 + $0x80] sm:$0xf]
    %v3189 = vld [vmem:[%s1 + $0x84] sm:$0xf]
    %v3190 = vld [vmem:[%s1 + $0x88] sm:$0xf]
    %v3191 = vld [vmem:[%s1 + $0x8c] sm:$0xf]
    %v3192 = vld [vmem:[%s1 + $0x90] sm:$0xf]
    %v3193 = vld [vmem:[%s1 + $0x94] sm:$0xf]
    %v3194 = vld [vmem:[%s1 + $0x98] sm:$0xf]
    %v3195 = vld [vmem:[%s1 + $0x9c] sm:$0xf]
    %v3196 = vld [vmem:[%s1 + $0xa0] sm:$0xf]
    %v3197 = vld [vmem:[%s1 + $0xa4] sm:$0xf]
    %v3198 = vld [vmem:[%s1 + $0xa8] sm:$0xf]
    %v3199 = vld [vmem:[%s1 + $0xac] sm:$0xf]
    %v3200 = vld [vmem:[%s1 + $0xb0] sm:$0xf]
    %v3201 = vld [vmem:[%s1 + $0xb4] sm:$0xf]
    %v3202 = vld [vmem:[%s1 + $0xb8] sm:$0xf]
    %v3203 = vld [vmem:[%s1 + $0xbc] sm:$0xf]
    %v3204 = vld [vmem:[%s1 + $0xc0] sm:$0xf]
    %v3205 = vld [vmem:[%s1 + $0xc4] sm:$0xf]
    %v3206 = vld [vmem:[%s1 + $0xc8] sm:$0xf]
    %v3207 = vld [vmem:[%s1 + $0xcc] sm:$0xf]
    %v3208 = vld [vmem:[%s1 + $0xd0] sm:$0xf]
    %v3209 = vld [vmem:[%s1 + $0xd4] sm:$0xf]
    %v3210 = vld [vmem:[%s1 + $0xd8] sm:$0xf]
    %v3211 = vld [vmem:[%s1 + $0xdc] sm:$0xf]
    %v3212 = vld [vmem:[%s1 + $0xe0] sm:$0xf]
    %v3213 = vld [vmem:[%s1 + $0xe4] sm:$0xf]
    %v3214 = vld [vmem:[%s1 + $0xe8] sm:$0xf]
    %v3215 = vld [vmem:[%s1 + $0xec] sm:$0xf]
    %v3216 = vld [vmem:[%s1 + $0xf0] sm:$0xf]
    %v3217 = vld [vmem:[%s1 + $0xf4] sm:$0xf]
    %v3218 = vld [vmem:[%s1 + $0xf8] sm:$0xf]
    %v3219 = vld [vmem:[%s1 + $0xfc] sm:$0xf]
    %v3220 = vld [vmem:[%s1 + $0x100] sm:$0xf]
    %v3221 = vld [vmem:[%s1 + $0x104] sm:$0xf]
    %v3222 = vld [vmem:[%s1 + $0x108] sm:$0xf]
    %v3223 = vld [vmem:[%s1 + $0x10c] sm:$0xf]
    %v3224 = vld [vmem:[%s1 + $0x110] sm:$0xf]
    %v3225 = vld [vmem:[%s1 + $0x114] sm:$0xf]
    %v3226 = vld [vmem:[%s1 + $0x118] sm:$0xf]
    %v3227 = vld [vmem:[%s1 + $0x11c] sm:$0xf]
    %v3228 = vld [vmem:[%s1 + $0x120] sm:$0xf]
    %v3229 = vld [vmem:[%s1 + $0x124] sm:$0xf]
    %v3230 = vld [vmem:[%s1 + $0x128] sm:$0xf]
    %v3231 = vld [vmem:[%s1 + $0x12c] sm:$0xf]
    %v3232 = vld [vmem:[%s1 + $0x130] sm:$0xf]
    %v3233 = vld [vmem:[%s1 + $0x134] sm:$0xf]
    %v3234 = vld [vmem:[%s1 + $0x138] sm:$0xf]
    %v3235 = vld [vmem:[%s1 + $0x13c] sm:$0xf]
    %v3236 = vld [vmem:[%s1 + $0x140] sm:$0xf]
    %v3237 = vld [vmem:[%s1 + $0x144] sm:$0xf]
    %v3238 = vld [vmem:[%s1 + $0x148] sm:$0xf]
    %v3239 = vld [vmem:[%s1 + $0x14c] sm:$0xf]
    %v3240 = vld [vmem:[%s1 + $0x150] sm:$0xf]
    %v3241 = vld [vmem:[%s1 + $0x154] sm:$0xf]
    %v3242 = vld [vmem:[%s1 + $0x158] sm:$0xf]
    %v3243 = vld [vmem:[%s1 + $0x15c] sm:$0xf]
    %v3244 = vld [vmem:[%s1 + $0x160] sm:$0xf]
    %v3245 = vld [vmem:[%s1 + $0x164] sm:$0xf]
    %v3246 = vld [vmem:[%s1 + $0x168] sm:$0xf]
    %v3247 = vld [vmem:[%s1 + $0x16c] sm:$0xf]
    %v3248 = vld [vmem:[%s1 + $0x170] sm:$0xf]
    %v3249 = vld [vmem:[%s1 + $0x174] sm:$0xf]
    %v3250 = vld [vmem:[%s1 + $0x178] sm:$0xf]
    %v3251 = vld [vmem:[%s1 + $0x17c] sm:$0xf]
    %v3252 = vld [vmem:[%s1 + $0x180] sm:$0xf]
    %v3253 = vld [vmem:[%s1 + $0x184] sm:$0xf]
    %v3254 = vld [vmem:[%s1 + $0x188] sm:$0xf]
    %v3255 = vld [vmem:[%s1 + $0x18c] sm:$0xf]
    %v3256 = vld [vmem:[%s1 + $0x190] sm:$0xf]
    %v3257 = vld [vmem:[%s1 + $0x194] sm:$0xf]
    %v3258 = vld [vmem:[%s1 + $0x198] sm:$0xf]
    %v3259 = vld [vmem:[%s1 + $0x19c] sm:$0xf]
    %v3260 = vld [vmem:[%s1 + $0x1a0] sm:$0xf]
    %v3261 = vld [vmem:[%s1 + $0x1a4] sm:$0xf]
    %v3262 = vld [vmem:[%s1 + $0x1a8] sm:$0xf]
    %v3263 = vld [vmem:[%s1 + $0x1ac] sm:$0xf]
    %v3264 = vld [vmem:[%s1 + $0x1b0] sm:$0xf]
    %v3265 = vld [vmem:[%s1 + $0x1b4] sm:$0xf]
    %v3266 = vld [vmem:[%s1 + $0x1b8] sm:$0xf]
    %v3267 = vld [vmem:[%s1 + $0x1bc] sm:$0xf]
    %v3268 = vld [vmem:[%s1 + $0x1c0] sm:$0xf]
    %v3269 = vld [vmem:[%s1 + $0x1c4] sm:$0xf]
    %v3270 = vld [vmem:[%s1 + $0x1c8] sm:$0xf]
    %v3271 = vld [vmem:[%s1 + $0x1cc] sm:$0xf]
    %v3272 = vld [vmem:[%s1 + $0x1d0] sm:$0xf]
    %v3273 = vld [vmem:[%s1 + $0x1d4] sm:$0xf]
    %v3274 = vld [vmem:[%s1 + $0x1d8] sm:$0xf]
    %v3275 = vld [vmem:[%s1 + $0x1dc] sm:$0xf]
    %v3276 = vld [vmem:[%s1 + $0x1e0] sm:$0xf]
    %v3277 = vld [vmem:[%s1 + $0x1e4] sm:$0xf]
    %v3278 = vld [vmem:[%s1 + $0x1e8] sm:$0xf]
    %v3279 = vld [vmem:[%s1 + $0x1ec] sm:$0xf]
    %v3280 = vld [vmem:[%s1 + $0x1f0] sm:$0xf]
    %v3281 = vld [vmem:[%s1 + $0x1f4] sm:$0xf]
    %v3282 = vld [vmem:[%s1 + $0x1f8] sm:$0xf]
    %v3283 = vld [vmem:[%s1 + $0x1fc] sm:$0xf]
    %v3284 = vld [vmem:[%s1 + $0x200] sm:$0xf]
    %v3285 = vld [vmem:[%s1 + $0x204] sm:$0xf]
    %v3286 = vld [vmem:[%s1 + $0x208] sm:$0xf]
    %v3287 = vld [vmem:[%s1 + $0x20c] sm:$0xf]
    %v3288 = vld [vmem:[%s1 + $0x210] sm:$0xf]
    %v3289 = vld [vmem:[%s1 + $0x214] sm:$0xf]
    %v3290 = vld [vmem:[%s1 + $0x218] sm:$0xf]
    %v3291 = vld [vmem:[%s1 + $0x21c] sm:$0xf]
    %v3292 = vld [vmem:[%s1 + $0x220] sm:$0xf]
    %v3293 = vld [vmem:[%s1 + $0x224] sm:$0xf]
    %v3294 = vld [vmem:[%s1 + $0x228] sm:$0xf]
    %v3295 = vld [vmem:[%s1 + $0x22c] sm:$0xf]
    %v3296 = vld [vmem:[%s1 + $0x230] sm:$0xf]
    %v3297 = vld [vmem:[%s1 + $0x234] sm:$0xf]
    %v3298 = vld [vmem:[%s1 + $0x238] sm:$0xf]
    %v3299 = vld [vmem:[%s1 + $0x23c] sm:$0xf]
    %v3300 = vld [vmem:[%s1 + $0x240] sm:$0xf]
    %v3301 = vld [vmem:[%s1 + $0x244] sm:$0xf]
    %v3302 = vld [vmem:[%s1 + $0x248] sm:$0xf]
    %v3303 = vld [vmem:[%s1 + $0x24c] sm:$0xf]
    %v3304 = vld [vmem:[%s1 + $0x250] sm:$0xf]
    %v3305 = vld [vmem:[%s1 + $0x254] sm:$0xf]
    %v3306 = vld [vmem:[%s1 + $0x258] sm:$0xf]
    %v3307 = vld [vmem:[%s1 + $0x25c] sm:$0xf]
    %v3308 = vld [vmem:[%s1 + $0x260] sm:$0xf]
    %v3309 = vld [vmem:[%s1 + $0x264] sm:$0xf]
    %v3310 = vld [vmem:[%s1 + $0x268] sm:$0xf]
    %v3311 = vld [vmem:[%s1 + $0x26c] sm:$0xf]
    %v3312 = vld [vmem:[%s1 + $0x270] sm:$0xf]
    %v3313 = vld [vmem:[%s1 + $0x274] sm:$0xf]
    %v3314 = vld [vmem:[%s1 + $0x278] sm:$0xf]
    %v3315 = vld [vmem:[%s1 + $0x27c] sm:$0xf]
    %v3316 = vld [vmem:[%s1 + $0x280] sm:$0xf]
    %v3317 = vld [vmem:[%s1 + $0x284] sm:$0xf]
    %v3318 = vld [vmem:[%s1 + $0x288] sm:$0xf]
    %v3319 = vld [vmem:[%s1 + $0x28c] sm:$0xf]
    %v3320 = vld [vmem:[%s1 + $0x290] sm:$0xf]
    %v3321 = vld [vmem:[%s1 + $0x294] sm:$0xf]
    %v3322 = vld [vmem:[%s1 + $0x298] sm:$0xf]
    %v3323 = vld [vmem:[%s1 + $0x29c] sm:$0xf]
    %v3324 = vld [vmem:[%s1 + $0x2a0] sm:$0xf]
    %v3325 = vld [vmem:[%s1 + $0x2a4] sm:$0xf]
    %v3326 = vld [vmem:[%s1 + $0x2a8] sm:$0xf]
    %v3327 = vld [vmem:[%s1 + $0x2ac] sm:$0xf]
    %v3328 = vld [vmem:[%s1 + $0x2b0] sm:$0xf]
    %v3329 = vld [vmem:[%s1 + $0x2b4] sm:$0xf]
    %v3330 = vld [vmem:[%s1 + $0x2b8] sm:$0xf]
    %v3331 = vld [vmem:[%s1 + $0x2bc] sm:$0xf]
    %v3332 = vld [vmem:[%s1 + $0x2c0] sm:$0xf]
    %v3333 = vld [vmem:[%s1 + $0x2c4] sm:$0xf]
    %v3334 = vld [vmem:[%s1 + $0x2c8] sm:$0xf]
    %v3335 = vld [vmem:[%s1 + $0x2cc] sm:$0xf]
    %v3336 = vld [vmem:[%s1 + $0x2d0] sm:$0xf]
    %v3337 = vld [vmem:[%s1 + $0x2d4] sm:$0xf]
    %v3338 = vld [vmem:[%s1 + $0x2d8] sm:$0xf]
    %v3339 = vld [vmem:[%s1 + $0x2dc] sm:$0xf]
    %v3340 = vld [vmem:[%s1 + $0x2e0] sm:$0xf]
    %v3341 = vld [vmem:[%s1 + $0x2e4] sm:$0xf]
    %v3342 = vld [vmem:[%s1 + $0x2e8] sm:$0xf]
    %v3343 = vld [vmem:[%s1 + $0x2ec] sm:$0xf]
    %v3344 = vld [vmem:[%s1 + $0x2f0] sm:$0xf]
    %v3345 = vld [vmem:[%s1 + $0x2f4] sm:$0xf]
    %v3346 = vld [vmem:[%s1 + $0x2f8] sm:$0xf]
    %v3347 = vld [vmem:[%s1 + $0x2fc] sm:$0xf]
    %v3348 = vld [vmem:[%s1 + $0x300] sm:$0xf]
    %v3349 = vld [vmem:[%s1 + $0x304] sm:$0xf]
    %v3350 = vld [vmem:[%s1 + $0x308] sm:$0xf]
    %v3351 = vld [vmem:[%s1 + $0x30c] sm:$0xf]
    %v3352 = vld [vmem:[%s1 + $0x310] sm:$0xf]
    %v3353 = vld [vmem:[%s1 + $0x314] sm:$0xf]
    %v3354 = vld [vmem:[%s1 + $0x318] sm:$0xf]
    %v3355 = vld [vmem:[%s1 + $0x31c] sm:$0xf]
    %v3356 = vld [vmem:[%s1 + $0x320] sm:$0xf]
    %v3357 = vld [vmem:[%s1 + $0x324] sm:$0xf]
    %v3358 = vld [vmem:[%s1 + $0x328] sm:$0xf]
    %v3359 = vld [vmem:[%s1 + $0x32c] sm:$0xf]
    %v3360 = vld [vmem:[%s1 + $0x330] sm:$0xf]
    %v3361 = vld [vmem:[%s1 + $0x334] sm:$0xf]
    %v3362 = vld [vmem:[%s1 + $0x338] sm:$0xf]
    %v3363 = vld [vmem:[%s1 + $0x33c] sm:$0xf]
    %v3364 = vld [vmem:[%s1 + $0x340] sm:$0xf]
    %v3365 = vld [vmem:[%s1 + $0x344] sm:$0xf]
    %v3366 = vld [vmem:[%s1 + $0x348] sm:$0xf]
    %v3367 = vld [vmem:[%s1 + $0x34c] sm:$0xf]
    %v3368 = vld [vmem:[%s1 + $0x350] sm:$0xf]
    %v3369 = vld [vmem:[%s1 + $0x354] sm:$0xf]
    %v3370 = vld [vmem:[%s1 + $0x358] sm:$0xf]
    %v3371 = vld [vmem:[%s1 + $0x35c] sm:$0xf]
    %v3372 = vld [vmem:[%s1 + $0x360] sm:$0xf]
    %v3373 = vld [vmem:[%s1 + $0x364] sm:$0xf]
    %v3374 = vld [vmem:[%s1 + $0x368] sm:$0xf]
    %v3375 = vld [vmem:[%s1 + $0x36c] sm:$0xf]
    %v3376 = vld [vmem:[%s1 + $0x370] sm:$0xf]
    %v3377 = vld [vmem:[%s1 + $0x374] sm:$0xf]
    %v3378 = vld [vmem:[%s1 + $0x378] sm:$0xf]
    %v3379 = vld [vmem:[%s1 + $0x37c] sm:$0xf]
    %v3380 = vld [vmem:[%s1 + $0x380] sm:$0xf]
    %v3381 = vld [vmem:[%s1 + $0x384] sm:$0xf]
    %v3382 = vld [vmem:[%s1 + $0x388] sm:$0xf]
    %v3383 = vld [vmem:[%s1 + $0x38c] sm:$0xf]
    %v3384 = vld [vmem:[%s1 + $0x390] sm:$0xf]
    %v3385 = vld [vmem:[%s1 + $0x394] sm:$0xf]
    %v3386 = vld [vmem:[%s1 + $0x398] sm:$0xf]
    %v3387 = vld [vmem:[%s1 + $0x39c] sm:$0xf]
    %v3388 = vld [vmem:[%s1 + $0x3a0] sm:$0xf]
    %v3389 = vld [vmem:[%s1 + $0x3a4] sm:$0xf]
    %v3390 = vld [vmem:[%s1 + $0x3a8] sm:$0xf]
    %v3391 = vld [vmem:[%s1 + $0x3ac] sm:$0xf]
    %v3392 = vld [vmem:[%s1 + $0x3b0] sm:$0xf]
    %v3393 = vld [vmem:[%s1 + $0x3b4] sm:$0xf]
    %v3394 = vld [vmem:[%s1 + $0x3b8] sm:$0xf]
    %v3395 = vld [vmem:[%s1 + $0x3bc] sm:$0xf]
    %v3396 = vld [vmem:[%s1 + $0x3c0] sm:$0xf]
    %v3397 = vld [vmem:[%s1 + $0x3c4] sm:$0xf]
    %v3398 = vld [vmem:[%s1 + $0x3c8] sm:$0xf]
    %v3399 = vld [vmem:[%s1 + $0x3cc] sm:$0xf]
    %v3400 = vld [vmem:[%s1 + $0x3d0] sm:$0xf]
    %v3401 = vld [vmem:[%s1 + $0x3d4] sm:$0xf]
    %v3402 = vld [vmem:[%s1 + $0x3d8] sm:$0xf]
    %v3403 = vld [vmem:[%s1 + $0x3dc] sm:$0xf]
    %v3404 = vld [vmem:[%s1 + $0x3e0] sm:$0xf]
    %v3405 = vld [vmem:[%s1 + $0x3e4] sm:$0xf]
    %v3406 = vld [vmem:[%s1 + $0x3e8] sm:$0xf]
    %v3407 = vld [vmem:[%s1 + $0x3ec] sm:$0xf]
    %v3408 = vld [vmem:[%s1 + $0x3f0] sm:$0xf]
    %v3409 = vld [vmem:[%s1 + $0x3f4] sm:$0xf]
    %v3410 = vld [vmem:[%s1 + $0x3f8] sm:$0xf]
    %v3411 = vld [vmem:[%s1 + $0x3fc] sm:$0xf]
    %v3540 = vunpack.c.l.b16 %v3028
    %v3541 = vunpack.c.l.b16 %v3029
    %v3542 = vunpack.c.l.b16 %v3030
    %v3543 = vunpack.c.l.b16 %v3031
    %v3544 = vunpack.c.l.b16 %v3032
    %v3545 = vunpack.c.l.b16 %v3033
    %v3546 = vunpack.c.l.b16 %v3034
    %v3547 = vunpack.c.l.b16 %v3035
    %v3548 = vunpack.c.l.b16 %v3036
    %v3549 = vunpack.c.l.b16 %v3037
    %v3550 = vunpack.c.l.b16 %v3038
    %v3551 = vunpack.c.l.b16 %v3039
    %v3552 = vunpack.c.l.b16 %v3040
    %v3553 = vunpack.c.l.b16 %v3041
    %v3554 = vunpack.c.l.b16 %v3042
    %v3555 = vunpack.c.l.b16 %v3043
    %v3556 = vunpack.c.l.b16 %v3044
    %v3557 = vunpack.c.l.b16 %v3045
    %v3558 = vunpack.c.l.b16 %v3046
    %v3559 = vunpack.c.l.b16 %v3047
    %v3560 = vunpack.c.l.b16 %v3048
    %v3561 = vunpack.c.l.b16 %v3049
    %v3562 = vunpack.c.l.b16 %v3050
    %v3563 = vunpack.c.l.b16 %v3051
    %v3564 = vunpack.c.l.b16 %v3052
    %v3565 = vunpack.c.l.b16 %v3053
    %v3566 = vunpack.c.l.b16 %v3054
    %v3567 = vunpack.c.l.b16 %v3055
    %v3568 = vunpack.c.l.b16 %v3056
    %v3569 = vunpack.c.l.b16 %v3057
    %v3570 = vunpack.c.l.b16 %v3058
    %v3571 = vunpack.c.l.b16 %v3059
    %v3572 = vunpack.c.l.b16 %v3060
    %v3573 = vunpack.c.l.b16 %v3061
    %v3574 = vunpack.c.l.b16 %v3062
    %v3575 = vunpack.c.l.b16 %v3063
    %v3576 = vunpack.c.l.b16 %v3064
    %v3577 = vunpack.c.l.b16 %v3065
    %v3578 = vunpack.c.l.b16 %v3066
    %v3579 = vunpack.c.l.b16 %v3067
    %v3580 = vunpack.c.l.b16 %v3068
    %v3581 = vunpack.c.l.b16 %v3069
    %v3582 = vunpack.c.l.b16 %v3070
    %v3583 = vunpack.c.l.b16 %v3071
    %v3584 = vunpack.c.l.b16 %v3072
    %v3585 = vunpack.c.l.b16 %v3073
    %v3586 = vunpack.c.l.b16 %v3074
    %v3587 = vunpack.c.l.b16 %v3075
    %v3588 = vunpack.c.l.b16 %v3076
    %v3589 = vunpack.c.l.b16 %v3077
    %v3590 = vunpack.c.l.b16 %v3078
    %v3591 = vunpack.c.l.b16 %v3079
    %v3592 = vunpack.c.l.b16 %v3080
    %v3593 = vunpack.c.l.b16 %v3081
    %v3594 = vunpack.c.l.b16 %v3082
    %v3595 = vunpack.c.l.b16 %v3083
    %v3596 = vunpack.c.l.b16 %v3084
    %v3597 = vunpack.c.l.b16 %v3085
    %v3598 = vunpack.c.l.b16 %v3086
    %v3599 = vunpack.c.l.b16 %v3087
    %v3600 = vunpack.c.l.b16 %v3088
    %v3601 = vunpack.c.l.b16 %v3089
    %v3602 = vunpack.c.l.b16 %v3090
    %v3603 = vunpack.c.l.b16 %v3091
    %v3604 = vunpack.c.l.b16 %v3092
    %v3605 = vunpack.c.l.b16 %v3093
    %v3606 = vunpack.c.l.b16 %v3094
    %v3607 = vunpack.c.l.b16 %v3095
    %v3608 = vunpack.c.l.b16 %v3096
    %v3609 = vunpack.c.l.b16 %v3097
    %v3610 = vunpack.c.l.b16 %v3098
    %v3611 = vunpack.c.l.b16 %v3099
    %v3612 = vunpack.c.l.b16 %v3100
    %v3613 = vunpack.c.l.b16 %v3101
    %v3614 = vunpack.c.l.b16 %v3102
    %v3615 = vunpack.c.l.b16 %v3103
    %v3616 = vunpack.c.l.b16 %v3104
    %v3617 = vunpack.c.l.b16 %v3105
    %v3618 = vunpack.c.l.b16 %v3106
    %v3619 = vunpack.c.l.b16 %v3107
    %v3620 = vunpack.c.l.b16 %v3108
    %v3621 = vunpack.c.l.b16 %v3109
    %v3622 = vunpack.c.l.b16 %v3110
    %v3623 = vunpack.c.l.b16 %v3111
    %v3624 = vunpack.c.l.b16 %v3112
    %v3625 = vunpack.c.l.b16 %v3113
    %v3626 = vunpack.c.l.b16 %v3114
    %v3627 = vunpack.c.l.b16 %v3115
    %v3628 = vunpack.c.l.b16 %v3116
    %v3629 = vunpack.c.l.b16 %v3117
    %v3630 = vunpack.c.l.b16 %v3118
    %v3631 = vunpack.c.l.b16 %v3119
    %v3632 = vunpack.c.l.b16 %v3120
    %v3633 = vunpack.c.l.b16 %v3121
    %v3634 = vunpack.c.l.b16 %v3122
    %v3635 = vunpack.c.l.b16 %v3123
    %v3636 = vunpack.c.l.b16 %v3124
    %v3637 = vunpack.c.l.b16 %v3125
    %v3638 = vunpack.c.l.b16 %v3126
    %v3639 = vunpack.c.l.b16 %v3127
    %v3640 = vunpack.c.l.b16 %v3128
    %v3641 = vunpack.c.l.b16 %v3129
    %v3642 = vunpack.c.l.b16 %v3130
    %v3643 = vunpack.c.l.b16 %v3131
    %v3644 = vunpack.c.l.b16 %v3132
    %v3645 = vunpack.c.l.b16 %v3133
    %v3646 = vunpack.c.l.b16 %v3134
    %v3647 = vunpack.c.l.b16 %v3135
    %v3648 = vunpack.c.l.b16 %v3136
    %v3649 = vunpack.c.l.b16 %v3137
    %v3650 = vunpack.c.l.b16 %v3138
    %v3651 = vunpack.c.l.b16 %v3139
    %v3652 = vunpack.c.l.b16 %v3140
    %v3653 = vunpack.c.l.b16 %v3141
    %v3654 = vunpack.c.l.b16 %v3142
    %v3655 = vunpack.c.l.b16 %v3143
    %v3656 = vunpack.c.l.b16 %v3144
    %v3657 = vunpack.c.l.b16 %v3145
    %v3658 = vunpack.c.l.b16 %v3146
    %v3659 = vunpack.c.l.b16 %v3147
    %v3660 = vunpack.c.l.b16 %v3148
    %v3661 = vunpack.c.l.b16 %v3149
    %v3662 = vunpack.c.l.b16 %v3150
    %v3663 = vunpack.c.l.b16 %v3151
    %v3664 = vunpack.c.l.b16 %v3152
    %v3665 = vunpack.c.l.b16 %v3153
    %v3666 = vunpack.c.l.b16 %v3154
    %v3667 = vunpack.c.l.b16 %v3155
    %vm3668 = vcmask 1041409
    %v3669 = vsel %vm3668, %v3556, %v3540
    %vm3670 = vcmask 1042434
    %v3671 = vsel %vm3670, %v3572, %v3669
    %vm3672 = vcmask 1043459
    %v3673 = vsel %vm3672, %v3588, %v3671
    %vm3674 = vcmask 1044484
    %v3675 = vsel %vm3674, %v3604, %v3673
    %vm3676 = vcmask 1045509
    %v3677 = vsel %vm3676, %v3620, %v3675
    %vm3678 = vcmask 1046534
    %v3679 = vsel %vm3678, %v3636, %v3677
    %vm3680 = vcmask 1047559
    %v3681 = vsel %vm3680, %v3652, %v3679
    %v3682 = vsel %vm3668, %v3557, %v3541
    %v3683 = vsel %vm3670, %v3573, %v3682
    %v3684 = vsel %vm3672, %v3589, %v3683
    %v3685 = vsel %vm3674, %v3605, %v3684
    %v3686 = vsel %vm3676, %v3621, %v3685
    %v3687 = vsel %vm3678, %v3637, %v3686
    %v3688 = vsel %vm3680, %v3653, %v3687
    %v3689 = vsel %vm3668, %v3558, %v3542
    %v3690 = vsel %vm3670, %v3574, %v3689
    %v3691 = vsel %vm3672, %v3590, %v3690
    %v3692 = vsel %vm3674, %v3606, %v3691
    %v3693 = vsel %vm3676, %v3622, %v3692
    %v3694 = vsel %vm3678, %v3638, %v3693
    %v3695 = vsel %vm3680, %v3654, %v3694
    %v3696 = vsel %vm3668, %v3559, %v3543
    %v3697 = vsel %vm3670, %v3575, %v3696
    %v3698 = vsel %vm3672, %v3591, %v3697
    %v3699 = vsel %vm3674, %v3607, %v3698
    %v3700 = vsel %vm3676, %v3623, %v3699
    %v3701 = vsel %vm3678, %v3639, %v3700
    %v3702 = vsel %vm3680, %v3655, %v3701
    %v3703 = vsel %vm3668, %v3560, %v3544
    %v3704 = vsel %vm3670, %v3576, %v3703
    %v3705 = vsel %vm3672, %v3592, %v3704
    %v3706 = vsel %vm3674, %v3608, %v3705
    %v3707 = vsel %vm3676, %v3624, %v3706
    %v3708 = vsel %vm3678, %v3640, %v3707
    %v3709 = vsel %vm3680, %v3656, %v3708
    %v3710 = vsel %vm3668, %v3561, %v3545
    %v3711 = vsel %vm3670, %v3577, %v3710
    %v3712 = vsel %vm3672, %v3593, %v3711
    %v3713 = vsel %vm3674, %v3609, %v3712
    %v3714 = vsel %vm3676, %v3625, %v3713
    %v3715 = vsel %vm3678, %v3641, %v3714
    %v3716 = vsel %vm3680, %v3657, %v3715
    %v3717 = vsel %vm3668, %v3562, %v3546
    %v3718 = vsel %vm3670, %v3578, %v3717
    %v3719 = vsel %vm3672, %v3594, %v3718
    %v3720 = vsel %vm3674, %v3610, %v3719
    %v3721 = vsel %vm3676, %v3626, %v3720
    %v3722 = vsel %vm3678, %v3642, %v3721
    %v3723 = vsel %vm3680, %v3658, %v3722
    %v3724 = vsel %vm3668, %v3563, %v3547
    %v3725 = vsel %vm3670, %v3579, %v3724
    %v3726 = vsel %vm3672, %v3595, %v3725
    %v3727 = vsel %vm3674, %v3611, %v3726
    %v3728 = vsel %vm3676, %v3627, %v3727
    %v3729 = vsel %vm3678, %v3643, %v3728
    %v3730 = vsel %vm3680, %v3659, %v3729
    %v3731 = vsel %vm3668, %v3564, %v3548
    %v3732 = vsel %vm3670, %v3580, %v3731
    %v3733 = vsel %vm3672, %v3596, %v3732
    %v3734 = vsel %vm3674, %v3612, %v3733
    %v3735 = vsel %vm3676, %v3628, %v3734
    %v3736 = vsel %vm3678, %v3644, %v3735
    %v3737 = vsel %vm3680, %v3660, %v3736
    %v3738 = vsel %vm3668, %v3565, %v3549
    %v3739 = vsel %vm3670, %v3581, %v3738
    %v3740 = vsel %vm3672, %v3597, %v3739
    %v3741 = vsel %vm3674, %v3613, %v3740
    %v3742 = vsel %vm3676, %v3629, %v3741
    %v3743 = vsel %vm3678, %v3645, %v3742
    %v3744 = vsel %vm3680, %v3661, %v3743
    %v3745 = vsel %vm3668, %v3566, %v3550
    %v3746 = vsel %vm3670, %v3582, %v3745
    %v3747 = vsel %vm3672, %v3598, %v3746
    %v3748 = vsel %vm3674, %v3614, %v3747
    %v3749 = vsel %vm3676, %v3630, %v3748
    %v3750 = vsel %vm3678, %v3646, %v3749
    %v3751 = vsel %vm3680, %v3662, %v3750
    %v3752 = vsel %vm3668, %v3567, %v3551
    %v3753 = vsel %vm3670, %v3583, %v3752
    %v3754 = vsel %vm3672, %v3599, %v3753
    %v3755 = vsel %vm3674, %v3615, %v3754
    %v3756 = vsel %vm3676, %v3631, %v3755
    %v3757 = vsel %vm3678, %v3647, %v3756
    %v3758 = vsel %vm3680, %v3663, %v3757
    %v3759 = vsel %vm3668, %v3568, %v3552
    %v3760 = vsel %vm3670, %v3584, %v3759
    %v3761 = vsel %vm3672, %v3600, %v3760
    %v3762 = vsel %vm3674, %v3616, %v3761
    %v3763 = vsel %vm3676, %v3632, %v3762
    %v3764 = vsel %vm3678, %v3648, %v3763
    %v3765 = vsel %vm3680, %v3664, %v3764
    %v3766 = vsel %vm3668, %v3569, %v3553
    %v3767 = vsel %vm3670, %v3585, %v3766
    %v3768 = vsel %vm3672, %v3601, %v3767
    %v3769 = vsel %vm3674, %v3617, %v3768
    %v3770 = vsel %vm3676, %v3633, %v3769
    %v3771 = vsel %vm3678, %v3649, %v3770
    %v3772 = vsel %vm3680, %v3665, %v3771
    %v3773 = vsel %vm3668, %v3570, %v3554
    %v3774 = vsel %vm3670, %v3586, %v3773
    %v3775 = vsel %vm3672, %v3602, %v3774
    %v3776 = vsel %vm3674, %v3618, %v3775
    %v3777 = vsel %vm3676, %v3634, %v3776
    %v3778 = vsel %vm3678, %v3650, %v3777
    %v3779 = vsel %vm3680, %v3666, %v3778
    %v3780 = vsel %vm3668, %v3571, %v3555
    %v3781 = vsel %vm3670, %v3587, %v3780
    %v3782 = vsel %vm3672, %v3603, %v3781
    %v3783 = vsel %vm3674, %v3619, %v3782
    %v3784 = vsel %vm3676, %v3635, %v3783
    %v3785 = vsel %vm3678, %v3651, %v3784
    %v3786 = vsel %vm3680, %v3667, %v3785
    %v3787 = vpack.c.b16 %v3681, %v3681
    %v3788 = vpack.c.b16 %v3688, %v3688
    %v3789 = vpack.c.b16 %v3695, %v3695
    %v3790 = vpack.c.b16 %v3702, %v3702
    %v3791 = vpack.c.b16 %v3709, %v3709
    %v3792 = vpack.c.b16 %v3716, %v3716
    %v3793 = vpack.c.b16 %v3723, %v3723
    %v3794 = vpack.c.b16 %v3730, %v3730
    %v3795 = vpack.c.b16 %v3737, %v3737
    %v3796 = vpack.c.b16 %v3744, %v3744
    %v3797 = vpack.c.b16 %v3751, %v3751
    %v3798 = vpack.c.b16 %v3758, %v3758
    %v3799 = vpack.c.b16 %v3765, %v3765
    %v3800 = vpack.c.b16 %v3772, %v3772
    %v3801 = vpack.c.b16 %v3779, %v3779
    %v3802 = vpack.c.b16 %v3786, %v3786
    %v4075 = vunpack.c.l.b16 %v3156
    %v4076 = vunpack.c.l.b16 %v3157
    %v4077 = vunpack.c.l.b16 %v3158
    %v4078 = vunpack.c.l.b16 %v3159
    %v4079 = vunpack.c.l.b16 %v3160
    %v4080 = vunpack.c.l.b16 %v3161
    %v4081 = vunpack.c.l.b16 %v3162
    %v4082 = vunpack.c.l.b16 %v3163
    %v4083 = vunpack.c.l.b16 %v3164
    %v4084 = vunpack.c.l.b16 %v3165
    %v4085 = vunpack.c.l.b16 %v3166
    %v4086 = vunpack.c.l.b16 %v3167
    %v4087 = vunpack.c.l.b16 %v3168
    %v4088 = vunpack.c.l.b16 %v3169
    %v4089 = vunpack.c.l.b16 %v3170
    %v4090 = vunpack.c.l.b16 %v3171
    %v4091 = vunpack.c.l.b16 %v3172
    %v4092 = vunpack.c.l.b16 %v3173
    %v4093 = vunpack.c.l.b16 %v3174
    %v4094 = vunpack.c.l.b16 %v3175
    %v4095 = vunpack.c.l.b16 %v3176
    %v4096 = vunpack.c.l.b16 %v3177
    %v4097 = vunpack.c.l.b16 %v3178
    %v4098 = vunpack.c.l.b16 %v3179
    %v4099 = vunpack.c.l.b16 %v3180
    %v4100 = vunpack.c.l.b16 %v3181
    %v4101 = vunpack.c.l.b16 %v3182
    %v4102 = vunpack.c.l.b16 %v3183
    %v4103 = vunpack.c.l.b16 %v3184
    %v4104 = vunpack.c.l.b16 %v3185
    %v4105 = vunpack.c.l.b16 %v3186
    %v4106 = vunpack.c.l.b16 %v3187
    %v4107 = vunpack.c.l.b16 %v3188
    %v4108 = vunpack.c.l.b16 %v3189
    %v4109 = vunpack.c.l.b16 %v3190
    %v4110 = vunpack.c.l.b16 %v3191
    %v4111 = vunpack.c.l.b16 %v3192
    %v4112 = vunpack.c.l.b16 %v3193
    %v4113 = vunpack.c.l.b16 %v3194
    %v4114 = vunpack.c.l.b16 %v3195
    %v4115 = vunpack.c.l.b16 %v3196
    %v4116 = vunpack.c.l.b16 %v3197
    %v4117 = vunpack.c.l.b16 %v3198
    %v4118 = vunpack.c.l.b16 %v3199
    %v4119 = vunpack.c.l.b16 %v3200
    %v4120 = vunpack.c.l.b16 %v3201
    %v4121 = vunpack.c.l.b16 %v3202
    %v4122 = vunpack.c.l.b16 %v3203
    %v4123 = vunpack.c.l.b16 %v3204
    %v4124 = vunpack.c.l.b16 %v3205
    %v4125 = vunpack.c.l.b16 %v3206
    %v4126 = vunpack.c.l.b16 %v3207
    %v4127 = vunpack.c.l.b16 %v3208
    %v4128 = vunpack.c.l.b16 %v3209
    %v4129 = vunpack.c.l.b16 %v3210
    %v4130 = vunpack.c.l.b16 %v3211
    %v4131 = vunpack.c.l.b16 %v3212
    %v4132 = vunpack.c.l.b16 %v3213
    %v4133 = vunpack.c.l.b16 %v3214
    %v4134 = vunpack.c.l.b16 %v3215
    %v4135 = vunpack.c.l.b16 %v3216
    %v4136 = vunpack.c.l.b16 %v3217
    %v4137 = vunpack.c.l.b16 %v3218
    %v4138 = vunpack.c.l.b16 %v3219
    %v4139 = vunpack.c.l.b16 %v3220
    %v4140 = vunpack.c.l.b16 %v3221
    %v4141 = vunpack.c.l.b16 %v3222
    %v4142 = vunpack.c.l.b16 %v3223
    %v4143 = vunpack.c.l.b16 %v3224
    %v4144 = vunpack.c.l.b16 %v3225
    %v4145 = vunpack.c.l.b16 %v3226
    %v4146 = vunpack.c.l.b16 %v3227
    %v4147 = vunpack.c.l.b16 %v3228
    %v4148 = vunpack.c.l.b16 %v3229
    %v4149 = vunpack.c.l.b16 %v3230
    %v4150 = vunpack.c.l.b16 %v3231
    %v4151 = vunpack.c.l.b16 %v3232
    %v4152 = vunpack.c.l.b16 %v3233
    %v4153 = vunpack.c.l.b16 %v3234
    %v4154 = vunpack.c.l.b16 %v3235
    %v4155 = vunpack.c.l.b16 %v3236
    %v4156 = vunpack.c.l.b16 %v3237
    %v4157 = vunpack.c.l.b16 %v3238
    %v4158 = vunpack.c.l.b16 %v3239
    %v4159 = vunpack.c.l.b16 %v3240
    %v4160 = vunpack.c.l.b16 %v3241
    %v4161 = vunpack.c.l.b16 %v3242
    %v4162 = vunpack.c.l.b16 %v3243
    %v4163 = vunpack.c.l.b16 %v3244
    %v4164 = vunpack.c.l.b16 %v3245
    %v4165 = vunpack.c.l.b16 %v3246
    %v4166 = vunpack.c.l.b16 %v3247
    %v4167 = vunpack.c.l.b16 %v3248
    %v4168 = vunpack.c.l.b16 %v3249
    %v4169 = vunpack.c.l.b16 %v3250
    %v4170 = vunpack.c.l.b16 %v3251
    %v4171 = vunpack.c.l.b16 %v3252
    %v4172 = vunpack.c.l.b16 %v3253
    %v4173 = vunpack.c.l.b16 %v3254
    %v4174 = vunpack.c.l.b16 %v3255
    %v4175 = vunpack.c.l.b16 %v3256
    %v4176 = vunpack.c.l.b16 %v3257
    %v4177 = vunpack.c.l.b16 %v3258
    %v4178 = vunpack.c.l.b16 %v3259
    %v4179 = vunpack.c.l.b16 %v3260
    %v4180 = vunpack.c.l.b16 %v3261
    %v4181 = vunpack.c.l.b16 %v3262
    %v4182 = vunpack.c.l.b16 %v3263
    %v4183 = vunpack.c.l.b16 %v3264
    %v4184 = vunpack.c.l.b16 %v3265
    %v4185 = vunpack.c.l.b16 %v3266
    %v4186 = vunpack.c.l.b16 %v3267
    %v4187 = vunpack.c.l.b16 %v3268
    %v4188 = vunpack.c.l.b16 %v3269
    %v4189 = vunpack.c.l.b16 %v3270
    %v4190 = vunpack.c.l.b16 %v3271
    %v4191 = vunpack.c.l.b16 %v3272
    %v4192 = vunpack.c.l.b16 %v3273
    %v4193 = vunpack.c.l.b16 %v3274
    %v4194 = vunpack.c.l.b16 %v3275
    %v4195 = vunpack.c.l.b16 %v3276
    %v4196 = vunpack.c.l.b16 %v3277
    %v4197 = vunpack.c.l.b16 %v3278
    %v4198 = vunpack.c.l.b16 %v3279
    %v4199 = vunpack.c.l.b16 %v3280
    %v4200 = vunpack.c.l.b16 %v3281
    %v4201 = vunpack.c.l.b16 %v3282
    %v4202 = vunpack.c.l.b16 %v3283
    %v4203 = vunpack.c.l.b16 %v3284
    %v4204 = vunpack.c.l.b16 %v3285
    %v4205 = vunpack.c.l.b16 %v3286
    %v4206 = vunpack.c.l.b16 %v3287
    %v4207 = vunpack.c.l.b16 %v3288
    %v4208 = vunpack.c.l.b16 %v3289
    %v4209 = vunpack.c.l.b16 %v3290
    %v4210 = vunpack.c.l.b16 %v3291
    %v4211 = vunpack.c.l.b16 %v3292
    %v4212 = vunpack.c.l.b16 %v3293
    %v4213 = vunpack.c.l.b16 %v3294
    %v4214 = vunpack.c.l.b16 %v3295
    %v4215 = vunpack.c.l.b16 %v3296
    %v4216 = vunpack.c.l.b16 %v3297
    %v4217 = vunpack.c.l.b16 %v3298
    %v4218 = vunpack.c.l.b16 %v3299
    %v4219 = vunpack.c.l.b16 %v3300
    %v4220 = vunpack.c.l.b16 %v3301
    %v4221 = vunpack.c.l.b16 %v3302
    %v4222 = vunpack.c.l.b16 %v3303
    %v4223 = vunpack.c.l.b16 %v3304
    %v4224 = vunpack.c.l.b16 %v3305
    %v4225 = vunpack.c.l.b16 %v3306
    %v4226 = vunpack.c.l.b16 %v3307
    %v4227 = vunpack.c.l.b16 %v3308
    %v4228 = vunpack.c.l.b16 %v3309
    %v4229 = vunpack.c.l.b16 %v3310
    %v4230 = vunpack.c.l.b16 %v3311
    %v4231 = vunpack.c.l.b16 %v3312
    %v4232 = vunpack.c.l.b16 %v3313
    %v4233 = vunpack.c.l.b16 %v3314
    %v4234 = vunpack.c.l.b16 %v3315
    %v4235 = vunpack.c.l.b16 %v3316
    %v4236 = vunpack.c.l.b16 %v3317
    %v4237 = vunpack.c.l.b16 %v3318
    %v4238 = vunpack.c.l.b16 %v3319
    %v4239 = vunpack.c.l.b16 %v3320
    %v4240 = vunpack.c.l.b16 %v3321
    %v4241 = vunpack.c.l.b16 %v3322
    %v4242 = vunpack.c.l.b16 %v3323
    %v4243 = vunpack.c.l.b16 %v3324
    %v4244 = vunpack.c.l.b16 %v3325
    %v4245 = vunpack.c.l.b16 %v3326
    %v4246 = vunpack.c.l.b16 %v3327
    %v4247 = vunpack.c.l.b16 %v3328
    %v4248 = vunpack.c.l.b16 %v3329
    %v4249 = vunpack.c.l.b16 %v3330
    %v4250 = vunpack.c.l.b16 %v3331
    %v4251 = vunpack.c.l.b16 %v3332
    %v4252 = vunpack.c.l.b16 %v3333
    %v4253 = vunpack.c.l.b16 %v3334
    %v4254 = vunpack.c.l.b16 %v3335
    %v4255 = vunpack.c.l.b16 %v3336
    %v4256 = vunpack.c.l.b16 %v3337
    %v4257 = vunpack.c.l.b16 %v3338
    %v4258 = vunpack.c.l.b16 %v3339
    %v4259 = vunpack.c.l.b16 %v3340
    %v4260 = vunpack.c.l.b16 %v3341
    %v4261 = vunpack.c.l.b16 %v3342
    %v4262 = vunpack.c.l.b16 %v3343
    %v4263 = vunpack.c.l.b16 %v3344
    %v4264 = vunpack.c.l.b16 %v3345
    %v4265 = vunpack.c.l.b16 %v3346
    %v4266 = vunpack.c.l.b16 %v3347
    %v4267 = vunpack.c.l.b16 %v3348
    %v4268 = vunpack.c.l.b16 %v3349
    %v4269 = vunpack.c.l.b16 %v3350
    %v4270 = vunpack.c.l.b16 %v3351
    %v4271 = vunpack.c.l.b16 %v3352
    %v4272 = vunpack.c.l.b16 %v3353
    %v4273 = vunpack.c.l.b16 %v3354
    %v4274 = vunpack.c.l.b16 %v3355
    %v4275 = vunpack.c.l.b16 %v3356
    %v4276 = vunpack.c.l.b16 %v3357
    %v4277 = vunpack.c.l.b16 %v3358
    %v4278 = vunpack.c.l.b16 %v3359
    %v4279 = vunpack.c.l.b16 %v3360
    %v4280 = vunpack.c.l.b16 %v3361
    %v4281 = vunpack.c.l.b16 %v3362
    %v4282 = vunpack.c.l.b16 %v3363
    %v4283 = vunpack.c.l.b16 %v3364
    %v4284 = vunpack.c.l.b16 %v3365
    %v4285 = vunpack.c.l.b16 %v3366
    %v4286 = vunpack.c.l.b16 %v3367
    %v4287 = vunpack.c.l.b16 %v3368
    %v4288 = vunpack.c.l.b16 %v3369
    %v4289 = vunpack.c.l.b16 %v3370
    %v4290 = vunpack.c.l.b16 %v3371
    %v4291 = vunpack.c.l.b16 %v3372
    %v4292 = vunpack.c.l.b16 %v3373
    %v4293 = vunpack.c.l.b16 %v3374
    %v4294 = vunpack.c.l.b16 %v3375
    %v4295 = vunpack.c.l.b16 %v3376
    %v4296 = vunpack.c.l.b16 %v3377
    %v4297 = vunpack.c.l.b16 %v3378
    %v4298 = vunpack.c.l.b16 %v3379
    %v4299 = vunpack.c.l.b16 %v3380
    %v4300 = vunpack.c.l.b16 %v3381
    %v4301 = vunpack.c.l.b16 %v3382
    %v4302 = vunpack.c.l.b16 %v3383
    %v4303 = vunpack.c.l.b16 %v3384
    %v4304 = vunpack.c.l.b16 %v3385
    %v4305 = vunpack.c.l.b16 %v3386
    %v4306 = vunpack.c.l.b16 %v3387
    %v4307 = vunpack.c.l.b16 %v3388
    %v4308 = vunpack.c.l.b16 %v3389
    %v4309 = vunpack.c.l.b16 %v3390
    %v4310 = vunpack.c.l.b16 %v3391
    %v4311 = vunpack.c.l.b16 %v3392
    %v4312 = vunpack.c.l.b16 %v3393
    %v4313 = vunpack.c.l.b16 %v3394
    %v4314 = vunpack.c.l.b16 %v3395
    %v4315 = vunpack.c.l.b16 %v3396
    %v4316 = vunpack.c.l.b16 %v3397
    %v4317 = vunpack.c.l.b16 %v3398
    %v4318 = vunpack.c.l.b16 %v3399
    %v4319 = vunpack.c.l.b16 %v3400
    %v4320 = vunpack.c.l.b16 %v3401
    %v4321 = vunpack.c.l.b16 %v3402
    %v4322 = vunpack.c.l.b16 %v3403
    %v4323 = vunpack.c.l.b16 %v3404
    %v4324 = vunpack.c.l.b16 %v3405
    %v4325 = vunpack.c.l.b16 %v3406
    %v4326 = vunpack.c.l.b16 %v3407
    %v4327 = vunpack.c.l.b16 %v3408
    %v4328 = vunpack.c.l.b16 %v3409
    %v4329 = vunpack.c.l.b16 %v3410
    %v4330 = vunpack.c.l.b16 %v3411
    %v4331 = vpack.c.b16 %v4076, %v4075
    %v4332 = vpack.c.b16 %v4078, %v4077
    %v4333 = vpack.c.b16 %v4080, %v4079
    %v4334 = vpack.c.b16 %v4082, %v4081
    %v4335 = vpack.c.b16 %v4084, %v4083
    %v4336 = vpack.c.b16 %v4086, %v4085
    %v4337 = vpack.c.b16 %v4088, %v4087
    %v4338 = vpack.c.b16 %v4090, %v4089
    %v4339 = vpack.c.b16 %v4092, %v4091
    %v4340 = vpack.c.b16 %v4094, %v4093
    %v4341 = vpack.c.b16 %v4096, %v4095
    %v4342 = vpack.c.b16 %v4098, %v4097
    %v4343 = vpack.c.b16 %v4100, %v4099
    %v4344 = vpack.c.b16 %v4102, %v4101
    %v4345 = vpack.c.b16 %v4104, %v4103
    %v4346 = vpack.c.b16 %v4106, %v4105
    %v4347 = vpack.c.b16 %v4108, %v4107
    %v4348 = vpack.c.b16 %v4110, %v4109
    %v4349 = vpack.c.b16 %v4112, %v4111
    %v4350 = vpack.c.b16 %v4114, %v4113
    %v4351 = vpack.c.b16 %v4116, %v4115
    %v4352 = vpack.c.b16 %v4118, %v4117
    %v4353 = vpack.c.b16 %v4120, %v4119
    %v4354 = vpack.c.b16 %v4122, %v4121
    %v4355 = vpack.c.b16 %v4124, %v4123
    %v4356 = vpack.c.b16 %v4126, %v4125
    %v4357 = vpack.c.b16 %v4128, %v4127
    %v4358 = vpack.c.b16 %v4130, %v4129
    %v4359 = vpack.c.b16 %v4132, %v4131
    %v4360 = vpack.c.b16 %v4134, %v4133
    %v4361 = vpack.c.b16 %v4136, %v4135
    %v4362 = vpack.c.b16 %v4138, %v4137
    %v4363 = vpack.c.b16 %v4140, %v4139
    %v4364 = vpack.c.b16 %v4142, %v4141
    %v4365 = vpack.c.b16 %v4144, %v4143
    %v4366 = vpack.c.b16 %v4146, %v4145
    %v4367 = vpack.c.b16 %v4148, %v4147
    %v4368 = vpack.c.b16 %v4150, %v4149
    %v4369 = vpack.c.b16 %v4152, %v4151
    %v4370 = vpack.c.b16 %v4154, %v4153
    %v4371 = vpack.c.b16 %v4156, %v4155
    %v4372 = vpack.c.b16 %v4158, %v4157
    %v4373 = vpack.c.b16 %v4160, %v4159
    %v4374 = vpack.c.b16 %v4162, %v4161
    %v4375 = vpack.c.b16 %v4164, %v4163
    %v4376 = vpack.c.b16 %v4166, %v4165
    %v4377 = vpack.c.b16 %v4168, %v4167
    %v4378 = vpack.c.b16 %v4170, %v4169
    %v4379 = vpack.c.b16 %v4172, %v4171
    %v4380 = vpack.c.b16 %v4174, %v4173
    %v4381 = vpack.c.b16 %v4176, %v4175
    %v4382 = vpack.c.b16 %v4178, %v4177
    %v4383 = vpack.c.b16 %v4180, %v4179
    %v4384 = vpack.c.b16 %v4182, %v4181
    %v4385 = vpack.c.b16 %v4184, %v4183
    %v4386 = vpack.c.b16 %v4186, %v4185
    %v4387 = vpack.c.b16 %v4188, %v4187
    %v4388 = vpack.c.b16 %v4190, %v4189
    %v4389 = vpack.c.b16 %v4192, %v4191
    %v4390 = vpack.c.b16 %v4194, %v4193
    %v4391 = vpack.c.b16 %v4196, %v4195
    %v4392 = vpack.c.b16 %v4198, %v4197
    %v4393 = vpack.c.b16 %v4200, %v4199
    %v4394 = vpack.c.b16 %v4202, %v4201
    %v4395 = vpack.c.b16 %v4204, %v4203
    %v4396 = vpack.c.b16 %v4206, %v4205
    %v4397 = vpack.c.b16 %v4208, %v4207
    %v4398 = vpack.c.b16 %v4210, %v4209
    %v4399 = vpack.c.b16 %v4212, %v4211
    %v4400 = vpack.c.b16 %v4214, %v4213
    %v4401 = vpack.c.b16 %v4216, %v4215
    %v4402 = vpack.c.b16 %v4218, %v4217
    %v4403 = vpack.c.b16 %v4220, %v4219
    %v4404 = vpack.c.b16 %v4222, %v4221
    %v4405 = vpack.c.b16 %v4224, %v4223
    %v4406 = vpack.c.b16 %v4226, %v4225
    %v4407 = vpack.c.b16 %v4228, %v4227
    %v4408 = vpack.c.b16 %v4230, %v4229
    %v4409 = vpack.c.b16 %v4232, %v4231
    %v4410 = vpack.c.b16 %v4234, %v4233
    %v4411 = vpack.c.b16 %v4236, %v4235
    %v4412 = vpack.c.b16 %v4238, %v4237
    %v4413 = vpack.c.b16 %v4240, %v4239
    %v4414 = vpack.c.b16 %v4242, %v4241
    %v4415 = vpack.c.b16 %v4244, %v4243
    %v4416 = vpack.c.b16 %v4246, %v4245
    %v4417 = vpack.c.b16 %v4248, %v4247
    %v4418 = vpack.c.b16 %v4250, %v4249
    %v4419 = vpack.c.b16 %v4252, %v4251
    %v4420 = vpack.c.b16 %v4254, %v4253
    %v4421 = vpack.c.b16 %v4256, %v4255
    %v4422 = vpack.c.b16 %v4258, %v4257
    %v4423 = vpack.c.b16 %v4260, %v4259
    %v4424 = vpack.c.b16 %v4262, %v4261
    %v4425 = vpack.c.b16 %v4264, %v4263
    %v4426 = vpack.c.b16 %v4266, %v4265
    %v4427 = vpack.c.b16 %v4268, %v4267
    %v4428 = vpack.c.b16 %v4270, %v4269
    %v4429 = vpack.c.b16 %v4272, %v4271
    %v4430 = vpack.c.b16 %v4274, %v4273
    %v4431 = vpack.c.b16 %v4276, %v4275
    %v4432 = vpack.c.b16 %v4278, %v4277
    %v4433 = vpack.c.b16 %v4280, %v4279
    %v4434 = vpack.c.b16 %v4282, %v4281
    %v4435 = vpack.c.b16 %v4284, %v4283
    %v4436 = vpack.c.b16 %v4286, %v4285
    %v4437 = vpack.c.b16 %v4288, %v4287
    %v4438 = vpack.c.b16 %v4290, %v4289
    %v4439 = vpack.c.b16 %v4292, %v4291
    %v4440 = vpack.c.b16 %v4294, %v4293
    %v4441 = vpack.c.b16 %v4296, %v4295
    %v4442 = vpack.c.b16 %v4298, %v4297
    %v4443 = vpack.c.b16 %v4300, %v4299
    %v4444 = vpack.c.b16 %v4302, %v4301
    %v4445 = vpack.c.b16 %v4304, %v4303
    %v4446 = vpack.c.b16 %v4306, %v4305
    %v4447 = vpack.c.b16 %v4308, %v4307
    %v4448 = vpack.c.b16 %v4310, %v4309
    %v4449 = vpack.c.b16 %v4312, %v4311
    %v4450 = vpack.c.b16 %v4314, %v4313
    %v4451 = vpack.c.b16 %v4316, %v4315
    %v4452 = vpack.c.b16 %v4318, %v4317
    %v4453 = vpack.c.b16 %v4320, %v4319
    %v4454 = vpack.c.b16 %v4322, %v4321
    %v4455 = vpack.c.b16 %v4324, %v4323
    %v4456 = vpack.c.b16 %v4326, %v4325
    %v4457 = vpack.c.b16 %v4328, %v4327
    %v4458 = vpack.c.b16 %v4330, %v4329
    %4587 = vmatprep.subr.bf16.mxu0 0
    %4588 = vmatpush1.bf16.msra.mxu0 %v4338
    %4589 = vmatprep.subr.bf16.mxu0 0
    %4590 = vmatpush1.bf16.msra.mxu0 %v4337
    %4591 = vmatprep.subr.bf16.mxu0 0
    %4592 = vmatpush1.bf16.msra.mxu0 %v4336
    %4593 = vmatprep.subr.bf16.mxu0 0
    %4594 = vmatpush1.bf16.msra.mxu0 %v4335
    %4595 = vmatprep.subr.bf16.mxu0 0
    %4596 = vmatpush1.bf16.msra.mxu0 %v4334
    %4597 = vmatprep.subr.bf16.mxu0 0
    %4598 = vmatpush1.bf16.msra.mxu0 %v4333
    %4599 = vmatprep.subr.bf16.mxu0 0
    %4600 = vmatpush1.bf16.msra.mxu0 %v4332
    %4601 = vmatprep.subr.bf16.mxu0 0
    %4602 = vmatpush1.bf16.msra.mxu0 %v4331
    %4603 = vmatprep.subr.bf16.mxu0 0
    %4604 = vmatpush2.bf16.msra.mxu0 %v4346
    %4605 = vmatprep.subr.bf16.mxu0 0
    %4606 = vmatpush2.bf16.msra.mxu0 %v4345
    %4607 = vmatprep.subr.bf16.mxu0 0
    %4608 = vmatpush2.bf16.msra.mxu0 %v4344
    %4609 = vmatprep.subr.bf16.mxu0 0
    %4610 = vmatpush2.bf16.msra.mxu0 %v4343
    %4611 = vmatprep.subr.bf16.mxu0 0
    %4612 = vmatpush2.bf16.msra.mxu0 %v4342
    %4613 = vmatprep.subr.bf16.mxu0 0
    %4614 = vmatpush2.bf16.msra.mxu0 %v4341
    %4615 = vmatprep.subr.bf16.mxu0 0
    %4616 = vmatpush2.bf16.msra.mxu0 %v4340
    %4617 = vmatprep.subr.bf16.mxu0 0
    %4618 = vmatpush2.bf16.msra.mxu0 %v4339
    %4619 = vmatprep.mubr.bf16.mxu0 %v3788
    %4620 = vmatmul.mubr.bf16.gmra.mxu0 %v3787
    %v4621 = vpop.f32.mrf.mxu0
    %v4622 = vadd.f32 0.0, %v4621
    %v4623 = vpop.f32.mrf.mxu0
    %v4624 = vpop.f32.mrf.mxu0
    %v4625 = vpop.f32.mrf.mxu0
    %4626 = vdwg.mxu0
    %4627 = vmatprep.subr.bf16.mxu0 0
    %4628 = vmatpush1.bf16.msra.mxu0 %v4354
    %4629 = vmatprep.subr.bf16.mxu0 0
    %4630 = vmatpush1.bf16.msra.mxu0 %v4353
    %4631 = vmatprep.subr.bf16.mxu0 0
    %4632 = vmatpush1.bf16.msra.mxu0 %v4352
    %4633 = vmatprep.subr.bf16.mxu0 0
    %4634 = vmatpush1.bf16.msra.mxu0 %v4351
    %4635 = vmatprep.subr.bf16.mxu0 0
    %4636 = vmatpush1.bf16.msra.mxu0 %v4350
    %4637 = vmatprep.subr.bf16.mxu0 0
    %4638 = vmatpush1.bf16.msra.mxu0 %v4349
    %4639 = vmatprep.subr.bf16.mxu0 0
    %4640 = vmatpush1.bf16.msra.mxu0 %v4348
    %4641 = vmatprep.subr.bf16.mxu0 0
    %4642 = vmatpush1.bf16.msra.mxu0 %v4347
    %4643 = vmatprep.subr.bf16.mxu0 0
    %4644 = vmatpush2.bf16.msra.mxu0 %v4362
    %4645 = vmatprep.subr.bf16.mxu0 0
    %4646 = vmatpush2.bf16.msra.mxu0 %v4361
    %4647 = vmatprep.subr.bf16.mxu0 0
    %4648 = vmatpush2.bf16.msra.mxu0 %v4360
    %4649 = vmatprep.subr.bf16.mxu0 0
    %4650 = vmatpush2.bf16.msra.mxu0 %v4359
    %4651 = vmatprep.subr.bf16.mxu0 0
    %4652 = vmatpush2.bf16.msra.mxu0 %v4358
    %4653 = vmatprep.subr.bf16.mxu0 0
    %4654 = vmatpush2.bf16.msra.mxu0 %v4357
    %4655 = vmatprep.subr.bf16.mxu0 0
    %4656 = vmatpush2.bf16.msra.mxu0 %v4356
    %4657 = vmatprep.subr.bf16.mxu0 0
    %4658 = vmatpush2.bf16.msra.mxu0 %v4355
    %4659 = vmatprep.mubr.bf16.mxu0 %v3790
    %4660 = vmatmul.mubr.bf16.gmra.mxu0 %v3789
    %v4661 = vpop.f32.mrf.mxu0
    %v4662 = vadd.f32 %v4622, %v4661
    %v4663 = vpop.f32.mrf.mxu0
    %v4664 = vpop.f32.mrf.mxu0
    %v4665 = vpop.f32.mrf.mxu0
    %4666 = vdwg.mxu0
    %4667 = vmatprep.subr.bf16.mxu0 0
    %4668 = vmatpush1.bf16.msra.mxu0 %v4370
    %4669 = vmatprep.subr.bf16.mxu0 0
    %4670 = vmatpush1.bf16.msra.mxu0 %v4369
    %4671 = vmatprep.subr.bf16.mxu0 0
    %4672 = vmatpush1.bf16.msra.mxu0 %v4368
    %4673 = vmatprep.subr.bf16.mxu0 0
    %4674 = vmatpush1.bf16.msra.mxu0 %v4367
    %4675 = vmatprep.subr.bf16.mxu0 0
    %4676 = vmatpush1.bf16.msra.mxu0 %v4366
    %4677 = vmatprep.subr.bf16.mxu0 0
    %4678 = vmatpush1.bf16.msra.mxu0 %v4365
    %4679 = vmatprep.subr.bf16.mxu0 0
    %4680 = vmatpush1.bf16.msra.mxu0 %v4364
    %4681 = vmatprep.subr.bf16.mxu0 0
    %4682 = vmatpush1.bf16.msra.mxu0 %v4363
    %4683 = vmatprep.subr.bf16.mxu0 0
    %4684 = vmatpush2.bf16.msra.mxu0 %v4378
    %4685 = vmatprep.subr.bf16.mxu0 0
    %4686 = vmatpush2.bf16.msra.mxu0 %v4377
    %4687 = vmatprep.subr.bf16.mxu0 0
    %4688 = vmatpush2.bf16.msra.mxu0 %v4376
    %4689 = vmatprep.subr.bf16.mxu0 0
    %4690 = vmatpush2.bf16.msra.mxu0 %v4375
    %4691 = vmatprep.subr.bf16.mxu0 0
    %4692 = vmatpush2.bf16.msra.mxu0 %v4374
    %4693 = vmatprep.subr.bf16.mxu0 0
    %4694 = vmatpush2.bf16.msra.mxu0 %v4373
    %4695 = vmatprep.subr.bf16.mxu0 0
    %4696 = vmatpush2.bf16.msra.mxu0 %v4372
    %4697 = vmatprep.subr.bf16.mxu0 0
    %4698 = vmatpush2.bf16.msra.mxu0 %v4371
    %4699 = vmatprep.mubr.bf16.mxu0 %v3792
    %4700 = vmatmul.mubr.bf16.gmra.mxu0 %v3791
    %v4701 = vpop.f32.mrf.mxu0
    %v4702 = vadd.f32 %v4662, %v4701
    %v4703 = vpop.f32.mrf.mxu0
    %v4704 = vpop.f32.mrf.mxu0
    %v4705 = vpop.f32.mrf.mxu0
    %4706 = vdwg.mxu0
    %4707 = vmatprep.subr.bf16.mxu0 0
    %4708 = vmatpush1.bf16.msra.mxu0 %v4386
    %4709 = vmatprep.subr.bf16.mxu0 0
    %4710 = vmatpush1.bf16.msra.mxu0 %v4385
    %4711 = vmatprep.subr.bf16.mxu0 0
    %4712 = vmatpush1.bf16.msra.mxu0 %v4384
    %4713 = vmatprep.subr.bf16.mxu0 0
    %4714 = vmatpush1.bf16.msra.mxu0 %v4383
    %4715 = vmatprep.subr.bf16.mxu0 0
    %4716 = vmatpush1.bf16.msra.mxu0 %v4382
    %4717 = vmatprep.subr.bf16.mxu0 0
    %4718 = vmatpush1.bf16.msra.mxu0 %v4381
    %4719 = vmatprep.subr.bf16.mxu0 0
    %4720 = vmatpush1.bf16.msra.mxu0 %v4380
    %4721 = vmatprep.subr.bf16.mxu0 0
    %4722 = vmatpush1.bf16.msra.mxu0 %v4379
    %4723 = vmatprep.subr.bf16.mxu0 0
    %4724 = vmatpush2.bf16.msra.mxu0 %v4394
    %4725 = vmatprep.subr.bf16.mxu0 0
    %4726 = vmatpush2.bf16.msra.mxu0 %v4393
    %4727 = vmatprep.subr.bf16.mxu0 0
    %4728 = vmatpush2.bf16.msra.mxu0 %v4392
    %4729 = vmatprep.subr.bf16.mxu0 0
    %4730 = vmatpush2.bf16.msra.mxu0 %v4391
    %4731 = vmatprep.subr.bf16.mxu0 0
    %4732 = vmatpush2.bf16.msra.mxu0 %v4390
    %4733 = vmatprep.subr.bf16.mxu0 0
    %4734 = vmatpush2.bf16.msra.mxu0 %v4389
    %4735 = vmatprep.subr.bf16.mxu0 0
    %4736 = vmatpush2.bf16.msra.mxu0 %v4388
    %4737 = vmatprep.subr.bf16.mxu0 0
    %4738 = vmatpush2.bf16.msra.mxu0 %v4387
    %4739 = vmatprep.mubr.bf16.mxu0 %v3794
    %4740 = vmatmul.mubr.bf16.gmra.mxu0 %v3793
    %v4741 = vpop.f32.mrf.mxu0
    %v4742 = vadd.f32 %v4702, %v4741
    %v4743 = vpop.f32.mrf.mxu0
    %v4744 = vpop.f32.mrf.mxu0
    %v4745 = vpop.f32.mrf.mxu0
    %4746 = vdwg.mxu0
    %4747 = vmatprep.subr.bf16.mxu0 0
    %4748 = vmatpush1.bf16.msra.mxu0 %v4402
    %4749 = vmatprep.subr.bf16.mxu0 0
    %4750 = vmatpush1.bf16.msra.mxu0 %v4401
    %4751 = vmatprep.subr.bf16.mxu0 0
    %4752 = vmatpush1.bf16.msra.mxu0 %v4400
    %4753 = vmatprep.subr.bf16.mxu0 0
    %4754 = vmatpush1.bf16.msra.mxu0 %v4399
    %4755 = vmatprep.subr.bf16.mxu0 0
    %4756 = vmatpush1.bf16.msra.mxu0 %v4398
    %4757 = vmatprep.subr.bf16.mxu0 0
    %4758 = vmatpush1.bf16.msra.mxu0 %v4397
    %4759 = vmatprep.subr.bf16.mxu0 0
    %4760 = vmatpush1.bf16.msra.mxu0 %v4396
    %4761 = vmatprep.subr.bf16.mxu0 0
    %4762 = vmatpush1.bf16.msra.mxu0 %v4395
    %4763 = vmatprep.subr.bf16.mxu0 0
    %4764 = vmatpush2.bf16.msra.mxu0 %v4410
    %4765 = vmatprep.subr.bf16.mxu0 0
    %4766 = vmatpush2.bf16.msra.mxu0 %v4409
    %4767 = vmatprep.subr.bf16.mxu0 0
    %4768 = vmatpush2.bf16.msra.mxu0 %v4408
    %4769 = vmatprep.subr.bf16.mxu0 0
    %4770 = vmatpush2.bf16.msra.mxu0 %v4407
    %4771 = vmatprep.subr.bf16.mxu0 0
    %4772 = vmatpush2.bf16.msra.mxu0 %v4406
    %4773 = vmatprep.subr.bf16.mxu0 0
    %4774 = vmatpush2.bf16.msra.mxu0 %v4405
    %4775 = vmatprep.subr.bf16.mxu0 0
    %4776 = vmatpush2.bf16.msra.mxu0 %v4404
    %4777 = vmatprep.subr.bf16.mxu0 0
    %4778 = vmatpush2.bf16.msra.mxu0 %v4403
    %4779 = vmatprep.mubr.bf16.mxu0 %v3796
    %4780 = vmatmul.mubr.bf16.gmra.mxu0 %v3795
    %v4781 = vpop.f32.mrf.mxu0
    %v4782 = vadd.f32 %v4742, %v4781
    %v4783 = vpop.f32.mrf.mxu0
    %v4784 = vpop.f32.mrf.mxu0
    %v4785 = vpop.f32.mrf.mxu0
    %4786 = vdwg.mxu0
    %4787 = vmatprep.subr.bf16.mxu0 0
    %4788 = vmatpush1.bf16.msra.mxu0 %v4418
    %4789 = vmatprep.subr.bf16.mxu0 0
    %4790 = vmatpush1.bf16.msra.mxu0 %v4417
    %4791 = vmatprep.subr.bf16.mxu0 0
    %4792 = vmatpush1.bf16.msra.mxu0 %v4416
    %4793 = vmatprep.subr.bf16.mxu0 0
    %4794 = vmatpush1.bf16.msra.mxu0 %v4415
    %4795 = vmatprep.subr.bf16.mxu0 0
    %4796 = vmatpush1.bf16.msra.mxu0 %v4414
    %4797 = vmatprep.subr.bf16.mxu0 0
    %4798 = vmatpush1.bf16.msra.mxu0 %v4413
    %4799 = vmatprep.subr.bf16.mxu0 0
    %4800 = vmatpush1.bf16.msra.mxu0 %v4412
    %4801 = vmatprep.subr.bf16.mxu0 0
    %4802 = vmatpush1.bf16.msra.mxu0 %v4411
    %4803 = vmatprep.subr.bf16.mxu0 0
    %4804 = vmatpush2.bf16.msra.mxu0 %v4426
    %4805 = vmatprep.subr.bf16.mxu0 0
    %4806 = vmatpush2.bf16.msra.mxu0 %v4425
    %4807 = vmatprep.subr.bf16.mxu0 0
    %4808 = vmatpush2.bf16.msra.mxu0 %v4424
    %4809 = vmatprep.subr.bf16.mxu0 0
    %4810 = vmatpush2.bf16.msra.mxu0 %v4423
    %4811 = vmatprep.subr.bf16.mxu0 0
    %4812 = vmatpush2.bf16.msra.mxu0 %v4422
    %4813 = vmatprep.subr.bf16.mxu0 0
    %4814 = vmatpush2.bf16.msra.mxu0 %v4421
    %4815 = vmatprep.subr.bf16.mxu0 0
    %4816 = vmatpush2.bf16.msra.mxu0 %v4420
    %4817 = vmatprep.subr.bf16.mxu0 0
    %4818 = vmatpush2.bf16.msra.mxu0 %v4419
    %4819 = vmatprep.mubr.bf16.mxu0 %v3798
    %4820 = vmatmul.mubr.bf16.gmra.mxu0 %v3797
    %v4821 = vpop.f32.mrf.mxu0
    %v4822 = vadd.f32 %v4782, %v4821
    %v4823 = vpop.f32.mrf.mxu0
    %v4824 = vpop.f32.mrf.mxu0
    %v4825 = vpop.f32.mrf.mxu0
    %4826 = vdwg.mxu0
    %4827 = vmatprep.subr.bf16.mxu0 0
    %4828 = vmatpush1.bf16.msra.mxu0 %v4434
    %4829 = vmatprep.subr.bf16.mxu0 0
    %4830 = vmatpush1.bf16.msra.mxu0 %v4433
    %4831 = vmatprep.subr.bf16.mxu0 0
    %4832 = vmatpush1.bf16.msra.mxu0 %v4432
    %4833 = vmatprep.subr.bf16.mxu0 0
    %4834 = vmatpush1.bf16.msra.mxu0 %v4431
    %4835 = vmatprep.subr.bf16.mxu0 0
    %4836 = vmatpush1.bf16.msra.mxu0 %v4430
    %4837 = vmatprep.subr.bf16.mxu0 0
    %4838 = vmatpush1.bf16.msra.mxu0 %v4429
    %4839 = vmatprep.subr.bf16.mxu0 0
    %4840 = vmatpush1.bf16.msra.mxu0 %v4428
    %4841 = vmatprep.subr.bf16.mxu0 0
    %4842 = vmatpush1.bf16.msra.mxu0 %v4427
    %4843 = vmatprep.subr.bf16.mxu0 0
    %4844 = vmatpush2.bf16.msra.mxu0 %v4442
    %4845 = vmatprep.subr.bf16.mxu0 0
    %4846 = vmatpush2.bf16.msra.mxu0 %v4441
    %4847 = vmatprep.subr.bf16.mxu0 0
    %4848 = vmatpush2.bf16.msra.mxu0 %v4440
    %4849 = vmatprep.subr.bf16.mxu0 0
    %4850 = vmatpush2.bf16.msra.mxu0 %v4439
    %4851 = vmatprep.subr.bf16.mxu0 0
    %4852 = vmatpush2.bf16.msra.mxu0 %v4438
    %4853 = vmatprep.subr.bf16.mxu0 0
    %4854 = vmatpush2.bf16.msra.mxu0 %v4437
    %4855 = vmatprep.subr.bf16.mxu0 0
    %4856 = vmatpush2.bf16.msra.mxu0 %v4436
    %4857 = vmatprep.subr.bf16.mxu0 0
    %4858 = vmatpush2.bf16.msra.mxu0 %v4435
    %4859 = vmatprep.mubr.bf16.mxu0 %v3800
    %4860 = vmatmul.mubr.bf16.gmra.mxu0 %v3799
    %v4861 = vpop.f32.mrf.mxu0
    %v4862 = vadd.f32 %v4822, %v4861
    %v4863 = vpop.f32.mrf.mxu0
    %v4864 = vpop.f32.mrf.mxu0
    %v4865 = vpop.f32.mrf.mxu0
    %4866 = vdwg.mxu0
    %4867 = vmatprep.subr.bf16.mxu0 0
    %4868 = vmatpush1.bf16.msra.mxu0 %v4450
    %4869 = vmatprep.subr.bf16.mxu0 0
    %4870 = vmatpush1.bf16.msra.mxu0 %v4449
    %4871 = vmatprep.subr.bf16.mxu0 0
    %4872 = vmatpush1.bf16.msra.mxu0 %v4448
    %4873 = vmatprep.subr.bf16.mxu0 0
    %4874 = vmatpush1.bf16.msra.mxu0 %v4447
    %4875 = vmatprep.subr.bf16.mxu0 0
    %4876 = vmatpush1.bf16.msra.mxu0 %v4446
    %4877 = vmatprep.subr.bf16.mxu0 0
    %4878 = vmatpush1.bf16.msra.mxu0 %v4445
    %4879 = vmatprep.subr.bf16.mxu0 0
    %4880 = vmatpush1.bf16.msra.mxu0 %v4444
    %4881 = vmatprep.subr.bf16.mxu0 0
    %4882 = vmatpush1.bf16.msra.mxu0 %v4443
    %4883 = vmatprep.subr.bf16.mxu0 0
    %4884 = vmatpush2.bf16.msra.mxu0 %v4458
    %4885 = vmatprep.subr.bf16.mxu0 0
    %4886 = vmatpush2.bf16.msra.mxu0 %v4457
    %4887 = vmatprep.subr.bf16.mxu0 0
    %4888 = vmatpush2.bf16.msra.mxu0 %v4456
    %4889 = vmatprep.subr.bf16.mxu0 0
    %4890 = vmatpush2.bf16.msra.mxu0 %v4455
    %4891 = vmatprep.subr.bf16.mxu0 0
    %4892 = vmatpush2.bf16.msra.mxu0 %v4454
    %4893 = vmatprep.subr.bf16.mxu0 0
    %4894 = vmatpush2.bf16.msra.mxu0 %v4453
    %4895 = vmatprep.subr.bf16.mxu0 0
    %4896 = vmatpush2.bf16.msra.mxu0 %v4452
    %4897 = vmatprep.subr.bf16.mxu0 0
    %4898 = vmatpush2.bf16.msra.mxu0 %v4451
    %4899 = vmatprep.mubr.bf16.mxu0 %v3802
    %4900 = vmatmul.mubr.bf16.gmra.mxu0 %v3801
    %v4901 = vpop.f32.mrf.mxu0
    %v4902 = vadd.f32 %v4862, %v4901
    %v4903 = vpop.f32.mrf.mxu0
    %v4904 = vpop.f32.mrf.mxu0
    %v4905 = vpop.f32.mrf.mxu0
    %4906 = vdwg.mxu0
    %v4907 = vmul.f32 %v4902, 0.020408163
    %v4908 = vrot.slane %v4907, 4
    %v4909 = vadd.f32 %v4907, %v4908
    %v4910 = vrot.slane %v4909, 2
    %v4911 = vadd.f32 %v4909, %v4910
    %v4912 = vrot.slane %v4911, 1
    %v4913 = vadd.f32 %v4911, %v4912
    %v4914 = vrcp.pop 8.0
    %v4915 = vmul.f32 %v4913, %v4914
    %v4916 = vsub.f32 %v4907, %v4915
    %v4917 = vmul.f32 %v4916, %v4916
    %v4918 = vrot.slane %v4917, 4
    %v4919 = vadd.f32 %v4917, %v4918
    %v4920 = vrot.slane %v4919, 2
    %v4921 = vadd.f32 %v4919, %v4920
    %v4922 = vrot.slane %v4921, 1
    %v4923 = vadd.f32 %v4921, %v4922
    %v4924 = vmul.f32 %v4923, %v4914
    %v4925 = vadd.f32 %v4924, 1e-05
    %v4926 = vrsqrt.pop %v4925
    %v4927 = vmul.f32 %v4916, %v4926
    %v4928 = vld [vmem:[%s2] sm:$0x1]
    %v4930 = vlaneseq
    %v4931 = vshrl.u32 %v4930, 7
    %v4932 = vsub.s32 0, %v4931
    %v4933 = vrot.slane %v4928, %v4932
    %v4935 = vmul.f32 %v4927, %v4933
    %v4936 = vld [vmem:[%s3] sm:$0x1]
    %v4938 = vlaneseq
    %v4939 = vshrl.u32 %v4938, 7
    %v4940 = vsub.s32 0, %v4939
    %v4941 = vrot.slane %v4936, %v4940
    %v4943 = vadd.f32 %v4935, %v4941
    %4944 = vst [vmem:[#allocation2] sm:$0xff] %v4943
    // Predicated region
    $region18: #{tpu_custom_call.1} parent=1 // pred_check
      _
    $region19: #{tpu_custom_call.1} parent=1 // pred_check_branch
      %4946 = sbr.rel (0) target = $region21
    $region20: #{tpu_custom_call.1} parent=1 // pred_region
      %s4948 = ssub.s32 128, 128
      %4949 = vsyncadd [#allocation3], %s4948
      %s4951 = sshll.u32 [#allocation2], 4
      %s4952 = int_to_ptr.vmem [resolvable:$true] %s4951
      %4954 = dma.vmem_to_hbm [thread:$0]  %s4952, 128, %s4, [#allocation3]
    $region21: #{tpu_custom_call.1} parent=1 // pred_fallthru
      _
    // Predicated region
    $region22: #{tpu_custom_call.1} parent=1 // pred_check
      _
    $region23: #{tpu_custom_call.1} parent=1 // pred_check_branch
      %4956 = sbr.rel (0) target = $region25
    $region24: #{tpu_custom_call.1} parent=1 // pred_region
      %4957 = dma.done [#allocation3], 128
    $region25: #{tpu_custom_call.1} parent=1 // pred_fallthru
      _
    %4958 = vsyncpa [#allocation3], 1

</llo_original>
